<compile_context>
chip_gen: v7x
topology: tpu7x:2x2x1
jax: 0.10.0
libtpu: 0.0.40
codegen_flags: <defaults>
</compile_context>

<pallas_src>
import functools

import jax
import jax.numpy as jnp
from jax.experimental import pallas as pl
from jax.experimental.pallas import tpu as pltpu


# ----------------------------- Pallas kernel --------------------------------

def _lstm_head_kernel(T, B, H,
                      x_ref,      # (T, B, D)  f32   time-major input
                      wih1_ref,   # (D, 4H)    f32   layer-1 input weights (transposed)
                      whh1_ref,   # (H, 4H)    bf16  layer-1 recurrent weights (transposed)
                      w2_ref,     # (2, H, 4H) bf16  [Wih2^T, Whh2^T]
                      b12_ref,    # (2, 1, 4H) f32   [b1, b2] (b = b_ih + b_hh)
                      head1_ref,  # (H+1, 64)  f32   [fc1_w^T ; fc1_b]
                      head2_ref,  # (65, 1)    f32   [fc2_w^T ; fc2_b]
                      out_ref,    # (B, 1)     f32
                      xg_ref):    # scratch (T, B, 4H) f32
    G = 4 * H
    f32 = jnp.float32

    def dot(a, b):
        return jnp.dot(a, b, preferred_element_type=f32)

    def dot16(a, w_bf16):
        # bf16 MXU inputs (single-pass), f32 accumulation.
        return jnp.dot(a.astype(jnp.bfloat16), w_bf16, preferred_element_type=f32)

    # ---- non-recurrent layer-1 input projection, hoisted off the serial chain:
    #      xg[t] = x[t] @ Wih1^T + b1   (fused [i|f|g|o] along the 4H = 128 lane axis)
    wih1 = wih1_ref[...]
    b1 = b12_ref[0]
    for t in range(T):                       # independent tiny matmuls; pipeline on MXU
        xg_ref[t] = dot(x_ref[t], wih1) + b1

    # Hoist recurrent weights / biases (loop constants).
    whh1 = whh1_ref[...]
    wih2 = w2_ref[0]
    whh2 = w2_ref[1]
    b2 = b12_ref[1]

    # Fused-gate nonlinearity: one full-width tanh per layer per step.
    #   sigmoid(x) = 0.5 * tanh(0.5 x) + 0.5  on the i/f/o lanes, plain tanh on g lanes.
    lane = jax.lax.broadcasted_iota(jnp.int32, (1, G), 1)
    is_g = (lane >= 2 * H) & (lane < 3 * H)
    scale = jnp.where(is_g, 1.0, 0.5).astype(f32)   # pre- and post-scale
    shift = jnp.where(is_g, 0.0, 0.5).astype(f32)

    def act(gates):
        a = jnp.tanh(gates * scale) * scale + shift   # [sig(i)|sig(f)|tanh(g)|sig(o)]
        return (a[:, 0 * H:1 * H], a[:, 1 * H:2 * H],
                a[:, 2 * H:3 * H], a[:, 3 * H:4 * H])

    def step(t, carry):
        h1, c1, h2, c2 = carry
        # Layer-2 recurrent term first: depends only on last step's h2, so the
        # scheduler can overlap this MXU pass with layer-1's EUP/VPU chain.
        rec2 = dot16(h2, whh2)
        # ---- layer 1 (input projection precomputed; only h1 @ Whh1 is serial)
        i1, f1, g1, o1 = act(xg_ref[t] + dot16(h1, whh1))
        c1 = f1 * c1 + i1 * g1
        h1 = o1 * jnp.tanh(c1)
        # ---- layer 2 (input = this step's h1)
        i2, f2, g2, o2 = act(dot16(h1, wih2) + rec2 + b2)
        c2 = f2 * c2 + i2 * g2
        h2 = o2 * jnp.tanh(c2)
        return (h1, c1, h2, c2)

    z0 = jnp.zeros((B, H), f32)
    _, _, h2_last, _ = jax.lax.fori_loop(0, T, step, (z0, z0, z0, z0),
                                         unroll=True)

    # ---- head: Linear(H, 64) -> ReLU -> Linear(64, 1) on the last hidden state.
    z = jnp.maximum(dot(h2_last, head1_ref[0:H, :]) + head1_ref[H:H + 1, :], 0.0)
    out_ref[...] = dot(z, head2_ref[0:64, :]) + head2_ref[64:65, :]


# ------------------------------- wrapper -------------------------------------

def _prep_params(params):
    """PyTorch-shaped params -> kernel-friendly, gate-fused, consolidated operands."""
    H = params["weight_hh_l0"].shape[1]
    bf16 = jnp.bfloat16
    wih1 = params["weight_ih_l0"].T.astype(jnp.float32)            # (D, 4H)
    whh1 = params["weight_hh_l0"].T.astype(bf16)                   # (H, 4H)
    w2 = jnp.stack([params["weight_ih_l1"].T,
                    params["weight_hh_l1"].T]).astype(bf16)        # (2, H, 4H)
    b1 = (params["bias_ih_l0"] + params["bias_hh_l0"]).reshape(1, 4 * H)
    b2 = (params["bias_ih_l1"] + params["bias_hh_l1"]).reshape(1, 4 * H)
    b12 = jnp.stack([b1, b2]).astype(jnp.float32)                  # (2, 1, 4H)
    head1 = jnp.concatenate([params["fc1_w"].T,
                             params["fc1_b"][None, :]], axis=0)    # (H+1, 64)
    head2 = jnp.concatenate([params["fc2_w"].T,
                             params["fc2_b"][None, :]], axis=0)    # (65, 1)
    return wih1, whh1, w2, b12, head1, head2


@jax.jit
def rnn_forward(x, params):
    """x: (B, T, D) float32 (batch_first, like PyTorch) -> (B, 1) float32."""
    B, T, D = x.shape
    H = params["weight_hh_l0"].shape[1]
    wih1, whh1, w2, b12, head1, head2 = _prep_params(params)
    x_tm = jnp.transpose(x, (1, 0, 2))        # time-major (T, B, D)

    vmem = pl.BlockSpec(memory_space=pltpu.MemorySpace.VMEM)
    # Single kernel invocation (no grid): every operand is one resident VMEM block.
    return pl.pallas_call(
        functools.partial(_lstm_head_kernel, T, B, H),
        out_shape=jax.ShapeDtypeStruct((B, 1), jnp.float32),
        in_specs=[vmem] * 7,
        out_specs=vmem,
        scratch_shapes=[pltpu.VMEM((T, B, 4 * H), jnp.float32)],
    )(x_tm, wih1, whh1, w2, b12, head1, head2)


# ----------------------- deterministic parameter init ------------------------

def init_params(key, input_size, hidden_size):
    H = hidden_size
    ks = jax.random.split(key, 12)

    def u(k, shape, bound):
        return jax.random.uniform(k, shape, jnp.float32, -bound, bound)

    kl = 1.0 / float(H) ** 0.5         # PyTorch LSTM / Linear(H,64) bound
    k2 = 1.0 / float(64) ** 0.5        # Linear(64,1) bound
    return dict(
        weight_ih_l0=u(ks[0], (4 * H, input_size), kl),
        weight_hh_l0=u(ks[1], (4 * H, H), kl),
        bias_ih_l0=u(ks[2], (4 * H,), kl),
        bias_hh_l0=u(ks[3], (4 * H,), kl),
        weight_ih_l1=u(ks[4], (4 * H, H), kl),
        weight_hh_l1=u(ks[5], (4 * H, H), kl),
        bias_ih_l1=u(ks[6], (4 * H,), kl),
        bias_hh_l1=u(ks[7], (4 * H,), kl),
        fc1_w=u(ks[8], (64, H), kl),
        fc1_b=u(ks[9], (64,), kl),
        fc2_w=u(ks[10], (1, 64), k2),
        fc2_b=u(ks[11], (1,), k2),
    )


# --------------------------- pure-JAX reference -------------------------------

def rnn_reference(x, params):
    B, T, D = x.shape
    H = params["weight_hh_l0"].shape[1]

    def lstm_layer(xs, wih, whh, bih, bhh):
        h = jnp.zeros((B, H), jnp.float32)
        c = jnp.zeros((B, H), jnp.float32)
        ys = []
        for t in range(T):
            gates = xs[:, t] @ wih.T + bih + h @ whh.T + bhh
            i = jax.nn.sigmoid(gates[:, 0 * H:1 * H])
            f = jax.nn.sigmoid(gates[:, 1 * H:2 * H])
            g = jnp.tanh(gates[:, 2 * H:3 * H])
            o = jax.nn.sigmoid(gates[:, 3 * H:4 * H])
            c = f * c + i * g
            h = o * jnp.tanh(c)
            ys.append(h)
        return jnp.stack(ys, axis=1)

    y1 = lstm_layer(x, params["weight_ih_l0"], params["weight_hh_l0"],
                    params["bias_ih_l0"], params["bias_hh_l0"])
    y2 = lstm_layer(y1, params["weight_ih_l1"], params["weight_hh_l1"],
                    params["bias_ih_l1"], params["bias_hh_l1"])
    z = jnp.maximum(y2[:, -1] @ params["fc1_w"].T + params["fc1_b"], 0.0)
    return z @ params["fc2_w"].T + params["fc2_b"]


# --------------------------------- main ---------------------------------------

if __name__ == "__main__":
    B, T, D, H = 2, 8, 4, 32     # batch, seq_len, input_feature_size, hidden_size

    key = jax.random.PRNGKey(0)
    kx, kp = jax.random.split(key)
    x = jax.random.normal(kx, (B, T, D), jnp.float32)   # StandardScaler-like input
    params = init_params(kp, D, H)

    out = jax.block_until_ready(rnn_forward(x, params))
    ref = jax.block_until_ready(rnn_reference(x, params))

    assert out.shape == (B, 1), out.shape
    # Tolerance accounts for the deliberate bf16 MXU inputs on the recurrent dots
    # (f32 accumulation); observed deviation is well below this.
    assert jnp.allclose(out, ref, rtol=2e-2, atol=2e-2), (out, ref)
    print("KERNEL_OK")
</pallas_src>

<mosaic_0001>
module attributes {stable_mosaic.version = 11 : i64} {
  func.func @_lstm_head_kernel(%arg0: memref<8x2x4xf32, #tpu.memory_space<vmem>>, %arg1: memref<4x128xf32, #tpu.memory_space<vmem>>, %arg2: memref<32x128xbf16, #tpu.memory_space<vmem>>, %arg3: memref<2x32x128xbf16, #tpu.memory_space<vmem>>, %arg4: memref<2x1x128xf32, #tpu.memory_space<vmem>>, %arg5: memref<33x64xf32, #tpu.memory_space<vmem>>, %arg6: memref<65x1xf32, #tpu.memory_space<vmem>>, %arg7: memref<2x1xf32, #tpu.memory_space<vmem>>, %arg8: memref<8x2x128xf32, #tpu.memory_space<vmem>>) attributes {dimension_semantics = [], scalar_prefetch = 0 : i64, scratch_operands = 1 : i64, tpu.core_type = #tpu.core_type<tc>} {
    %c0 = arith.constant 0 : index
    %c0_0 = arith.constant 0 : index
    %0 = vector.load %arg1[%c0, %c0_0] : memref<4x128xf32, #tpu.memory_space<vmem>>, vector<4x128xf32>
    %c0_1 = arith.constant 0 : index
    %c0_2 = arith.constant 0 : index
    %c0_3 = arith.constant 0 : index
    %1 = vector.load %arg4[%c0_1, %c0_2, %c0_3] : memref<2x1x128xf32, #tpu.memory_space<vmem>>, vector<1x1x128xf32>
    %2 = vector.shape_cast %1 : vector<1x1x128xf32> to vector<1x128xf32>
    %c0_4 = arith.constant 0 : index
    %c0_5 = arith.constant 0 : index
    %c0_6 = arith.constant 0 : index
    %3 = vector.load %arg0[%c0_4, %c0_5, %c0_6] : memref<8x2x4xf32, #tpu.memory_space<vmem>>, vector<1x2x4xf32>
    %4 = vector.shape_cast %3 : vector<1x2x4xf32> to vector<2x4xf32>
    %cst = arith.constant dense<0.000000e+00> : vector<2x128xf32>
    %5 = tpu.matmul %4, %0, %cst {dimension_numbers = #tpu.dot_dimension_numbers<[1], [0], [0], [1], [0, 0, 1, 1], [], []>} : vector<2x4xf32>, vector<4x128xf32>, vector<2x128xf32> -> vector<2x128xf32>
    %6 = vector.broadcast %2 : vector<1x128xf32> to vector<2x128xf32>
    %7 = arith.addf %5, %6 : vector<2x128xf32>
    %c0_7 = arith.constant 0 : index
    %c0_8 = arith.constant 0 : index
    %c0_9 = arith.constant 0 : index
    %8 = vector.load %arg8[%c0_7, %c0_8, %c0_9] : memref<8x2x128xf32, #tpu.memory_space<vmem>>, vector<1x2x128xf32>
    %9 = vector.shape_cast %8 : vector<1x2x128xf32> to vector<2x128xf32>
    %10 = vector.shape_cast %7 : vector<2x128xf32> to vector<1x2x128xf32>
    tpu.vector_store %arg8[%c0_7, %c0_8, %c0_9], %10 {strides = array<i32>} : memref<8x2x128xf32, #tpu.memory_space<vmem>>, vector<1x2x128xf32>,
    %c1 = arith.constant 1 : index
    %c0_10 = arith.constant 0 : index
    %c0_11 = arith.constant 0 : index
    %11 = vector.load %arg0[%c1, %c0_10, %c0_11] : memref<8x2x4xf32, #tpu.memory_space<vmem>>, vector<1x2x4xf32>
    %12 = vector.shape_cast %11 : vector<1x2x4xf32> to vector<2x4xf32>
    %cst_12 = arith.constant dense<0.000000e+00> : vector<2x128xf32>
    %13 = tpu.matmul %12, %0, %cst_12 {dimension_numbers = #tpu.dot_dimension_numbers<[1], [0], [0], [1], [0, 0, 1, 1], [], []>} : vector<2x4xf32>, vector<4x128xf32>, vector<2x128xf32> -> vector<2x128xf32>
    %14 = vector.broadcast %2 : vector<1x128xf32> to vector<2x128xf32>
    %15 = arith.addf %13, %14 : vector<2x128xf32>
    %c1_13 = arith.constant 1 : index
    %c0_14 = arith.constant 0 : index
    %c0_15 = arith.constant 0 : index
    %16 = vector.load %arg8[%c1_13, %c0_14, %c0_15] : memref<8x2x128xf32, #tpu.memory_space<vmem>>, vector<1x2x128xf32>
    %17 = vector.shape_cast %16 : vector<1x2x128xf32> to vector<2x128xf32>
    %18 = vector.shape_cast %15 : vector<2x128xf32> to vector<1x2x128xf32>
    tpu.vector_store %arg8[%c1_13, %c0_14, %c0_15], %18 {strides = array<i32>} : memref<8x2x128xf32, #tpu.memory_space<vmem>>, vector<1x2x128xf32>,
    %c2 = arith.constant 2 : index
    %c0_16 = arith.constant 0 : index
    %c0_17 = arith.constant 0 : index
    %19 = vector.load %arg0[%c2, %c0_16, %c0_17] : memref<8x2x4xf32, #tpu.memory_space<vmem>>, vector<1x2x4xf32>
    %20 = vector.shape_cast %19 : vector<1x2x4xf32> to vector<2x4xf32>
    %cst_18 = arith.constant dense<0.000000e+00> : vector<2x128xf32>
    %21 = tpu.matmul %20, %0, %cst_18 {dimension_numbers = #tpu.dot_dimension_numbers<[1], [0], [0], [1], [0, 0, 1, 1], [], []>} : vector<2x4xf32>, vector<4x128xf32>, vector<2x128xf32> -> vector<2x128xf32>
    %22 = vector.broadcast %2 : vector<1x128xf32> to vector<2x128xf32>
    %23 = arith.addf %21, %22 : vector<2x128xf32>
    %c2_19 = arith.constant 2 : index
    %c0_20 = arith.constant 0 : index
    %c0_21 = arith.constant 0 : index
    %24 = vector.load %arg8[%c2_19, %c0_20, %c0_21] : memref<8x2x128xf32, #tpu.memory_space<vmem>>, vector<1x2x128xf32>
    %25 = vector.shape_cast %24 : vector<1x2x128xf32> to vector<2x128xf32>
    %26 = vector.shape_cast %23 : vector<2x128xf32> to vector<1x2x128xf32>
    tpu.vector_store %arg8[%c2_19, %c0_20, %c0_21], %26 {strides = array<i32>} : memref<8x2x128xf32, #tpu.memory_space<vmem>>, vector<1x2x128xf32>,
    %c3 = arith.constant 3 : index
    %c0_22 = arith.constant 0 : index
    %c0_23 = arith.constant 0 : index
    %27 = vector.load %arg0[%c3, %c0_22, %c0_23] : memref<8x2x4xf32, #tpu.memory_space<vmem>>, vector<1x2x4xf32>
    %28 = vector.shape_cast %27 : vector<1x2x4xf32> to vector<2x4xf32>
    %cst_24 = arith.constant dense<0.000000e+00> : vector<2x128xf32>
    %29 = tpu.matmul %28, %0, %cst_24 {dimension_numbers = #tpu.dot_dimension_numbers<[1], [0], [0], [1], [0, 0, 1, 1], [], []>} : vector<2x4xf32>, vector<4x128xf32>, vector<2x128xf32> -> vector<2x128xf32>
    %30 = vector.broadcast %2 : vector<1x128xf32> to vector<2x128xf32>
    %31 = arith.addf %29, %30 : vector<2x128xf32>
    %c3_25 = arith.constant 3 : index
    %c0_26 = arith.constant 0 : index
    %c0_27 = arith.constant 0 : index
    %32 = vector.load %arg8[%c3_25, %c0_26, %c0_27] : memref<8x2x128xf32, #tpu.memory_space<vmem>>, vector<1x2x128xf32>
    %33 = vector.shape_cast %32 : vector<1x2x128xf32> to vector<2x128xf32>
    %34 = vector.shape_cast %31 : vector<2x128xf32> to vector<1x2x128xf32>
    tpu.vector_store %arg8[%c3_25, %c0_26, %c0_27], %34 {strides = array<i32>} : memref<8x2x128xf32, #tpu.memory_space<vmem>>, vector<1x2x128xf32>,
    %c4 = arith.constant 4 : index
    %c0_28 = arith.constant 0 : index
    %c0_29 = arith.constant 0 : index
    %35 = vector.load %arg0[%c4, %c0_28, %c0_29] : memref<8x2x4xf32, #tpu.memory_space<vmem>>, vector<1x2x4xf32>
    %36 = vector.shape_cast %35 : vector<1x2x4xf32> to vector<2x4xf32>
    %cst_30 = arith.constant dense<0.000000e+00> : vector<2x128xf32>
    %37 = tpu.matmul %36, %0, %cst_30 {dimension_numbers = #tpu.dot_dimension_numbers<[1], [0], [0], [1], [0, 0, 1, 1], [], []>} : vector<2x4xf32>, vector<4x128xf32>, vector<2x128xf32> -> vector<2x128xf32>
    %38 = vector.broadcast %2 : vector<1x128xf32> to vector<2x128xf32>
    %39 = arith.addf %37, %38 : vector<2x128xf32>
    %c4_31 = arith.constant 4 : index
    %c0_32 = arith.constant 0 : index
    %c0_33 = arith.constant 0 : index
    %40 = vector.load %arg8[%c4_31, %c0_32, %c0_33] : memref<8x2x128xf32, #tpu.memory_space<vmem>>, vector<1x2x128xf32>
    %41 = vector.shape_cast %40 : vector<1x2x128xf32> to vector<2x128xf32>
    %42 = vector.shape_cast %39 : vector<2x128xf32> to vector<1x2x128xf32>
    tpu.vector_store %arg8[%c4_31, %c0_32, %c0_33], %42 {strides = array<i32>} : memref<8x2x128xf32, #tpu.memory_space<vmem>>, vector<1x2x128xf32>,
    %c5 = arith.constant 5 : index
    %c0_34 = arith.constant 0 : index
    %c0_35 = arith.constant 0 : index
    %43 = vector.load %arg0[%c5, %c0_34, %c0_35] : memref<8x2x4xf32, #tpu.memory_space<vmem>>, vector<1x2x4xf32>
    %44 = vector.shape_cast %43 : vector<1x2x4xf32> to vector<2x4xf32>
    %cst_36 = arith.constant dense<0.000000e+00> : vector<2x128xf32>
    %45 = tpu.matmul %44, %0, %cst_36 {dimension_numbers = #tpu.dot_dimension_numbers<[1], [0], [0], [1], [0, 0, 1, 1], [], []>} : vector<2x4xf32>, vector<4x128xf32>, vector<2x128xf32> -> vector<2x128xf32>
    %46 = vector.broadcast %2 : vector<1x128xf32> to vector<2x128xf32>
    %47 = arith.addf %45, %46 : vector<2x128xf32>
    %c5_37 = arith.constant 5 : index
    %c0_38 = arith.constant 0 : index
    %c0_39 = arith.constant 0 : index
    %48 = vector.load %arg8[%c5_37, %c0_38, %c0_39] : memref<8x2x128xf32, #tpu.memory_space<vmem>>, vector<1x2x128xf32>
    %49 = vector.shape_cast %48 : vector<1x2x128xf32> to vector<2x128xf32>
    %50 = vector.shape_cast %47 : vector<2x128xf32> to vector<1x2x128xf32>
    tpu.vector_store %arg8[%c5_37, %c0_38, %c0_39], %50 {strides = array<i32>} : memref<8x2x128xf32, #tpu.memory_space<vmem>>, vector<1x2x128xf32>,
    %c6 = arith.constant 6 : index
    %c0_40 = arith.constant 0 : index
    %c0_41 = arith.constant 0 : index
    %51 = vector.load %arg0[%c6, %c0_40, %c0_41] : memref<8x2x4xf32, #tpu.memory_space<vmem>>, vector<1x2x4xf32>
    %52 = vector.shape_cast %51 : vector<1x2x4xf32> to vector<2x4xf32>
    %cst_42 = arith.constant dense<0.000000e+00> : vector<2x128xf32>
    %53 = tpu.matmul %52, %0, %cst_42 {dimension_numbers = #tpu.dot_dimension_numbers<[1], [0], [0], [1], [0, 0, 1, 1], [], []>} : vector<2x4xf32>, vector<4x128xf32>, vector<2x128xf32> -> vector<2x128xf32>
    %54 = vector.broadcast %2 : vector<1x128xf32> to vector<2x128xf32>
    %55 = arith.addf %53, %54 : vector<2x128xf32>
    %c6_43 = arith.constant 6 : index
    %c0_44 = arith.constant 0 : index
    %c0_45 = arith.constant 0 : index
    %56 = vector.load %arg8[%c6_43, %c0_44, %c0_45] : memref<8x2x128xf32, #tpu.memory_space<vmem>>, vector<1x2x128xf32>
    %57 = vector.shape_cast %56 : vector<1x2x128xf32> to vector<2x128xf32>
    %58 = vector.shape_cast %55 : vector<2x128xf32> to vector<1x2x128xf32>
    tpu.vector_store %arg8[%c6_43, %c0_44, %c0_45], %58 {strides = array<i32>} : memref<8x2x128xf32, #tpu.memory_space<vmem>>, vector<1x2x128xf32>,
    %c7 = arith.constant 7 : index
    %c0_46 = arith.constant 0 : index
    %c0_47 = arith.constant 0 : index
    %59 = vector.load %arg0[%c7, %c0_46, %c0_47] : memref<8x2x4xf32, #tpu.memory_space<vmem>>, vector<1x2x4xf32>
    %60 = vector.shape_cast %59 : vector<1x2x4xf32> to vector<2x4xf32>
    %cst_48 = arith.constant dense<0.000000e+00> : vector<2x128xf32>
    %61 = tpu.matmul %60, %0, %cst_48 {dimension_numbers = #tpu.dot_dimension_numbers<[1], [0], [0], [1], [0, 0, 1, 1], [], []>} : vector<2x4xf32>, vector<4x128xf32>, vector<2x128xf32> -> vector<2x128xf32>
    %62 = vector.broadcast %2 : vector<1x128xf32> to vector<2x128xf32>
    %63 = arith.addf %61, %62 : vector<2x128xf32>
    %c7_49 = arith.constant 7 : index
    %c0_50 = arith.constant 0 : index
    %c0_51 = arith.constant 0 : index
    %64 = vector.load %arg8[%c7_49, %c0_50, %c0_51] : memref<8x2x128xf32, #tpu.memory_space<vmem>>, vector<1x2x128xf32>
    %65 = vector.shape_cast %64 : vector<1x2x128xf32> to vector<2x128xf32>
    %66 = vector.shape_cast %63 : vector<2x128xf32> to vector<1x2x128xf32>
    tpu.vector_store %arg8[%c7_49, %c0_50, %c0_51], %66 {strides = array<i32>} : memref<8x2x128xf32, #tpu.memory_space<vmem>>, vector<1x2x128xf32>,
    %c0_52 = arith.constant 0 : index
    %c0_53 = arith.constant 0 : index
    %67 = vector.load %arg2[%c0_52, %c0_53] : memref<32x128xbf16, #tpu.memory_space<vmem>>, vector<32x128xbf16>
    %c0_54 = arith.constant 0 : index
    %c0_55 = arith.constant 0 : index
    %c0_56 = arith.constant 0 : index
    %68 = vector.load %arg3[%c0_54, %c0_55, %c0_56] : memref<2x32x128xbf16, #tpu.memory_space<vmem>>, vector<1x32x128xbf16>
    %69 = vector.shape_cast %68 : vector<1x32x128xbf16> to vector<32x128xbf16>
    %c1_57 = arith.constant 1 : index
    %c0_58 = arith.constant 0 : index
    %c0_59 = arith.constant 0 : index
    %70 = vector.load %arg3[%c1_57, %c0_58, %c0_59] : memref<2x32x128xbf16, #tpu.memory_space<vmem>>, vector<1x32x128xbf16>
    %71 = vector.shape_cast %70 : vector<1x32x128xbf16> to vector<32x128xbf16>
    %c1_60 = arith.constant 1 : index
    %c0_61 = arith.constant 0 : index
    %c0_62 = arith.constant 0 : index
    %72 = vector.load %arg4[%c1_60, %c0_61, %c0_62] : memref<2x1x128xf32, #tpu.memory_space<vmem>>, vector<1x1x128xf32>
    %73 = vector.shape_cast %72 : vector<1x1x128xf32> to vector<1x128xf32>
    %74 = tpu.iota {dimensions = array<i32: 1>} : vector<1x128xi32>
    %c64_i32 = arith.constant 64 : i32
    %75 = vector.broadcast %c64_i32 : i32 to vector<1x128xi32>
    %76 = arith.cmpi sge, %74, %75 : vector<1x128xi32>
    %c96_i32 = arith.constant 96 : i32
    %77 = vector.broadcast %c96_i32 : i32 to vector<1x128xi32>
    %78 = arith.cmpi slt, %74, %77 : vector<1x128xi32>
    %79 = arith.andi %76, %78 : vector<1x128xi1>
    %cst_63 = arith.constant 1.000000e+00 : f32
    %cst_64 = arith.constant 5.000000e-01 : f32
    %80 = vector.broadcast %cst_63 : f32 to vector<1x128xf32>
    %81 = vector.broadcast %cst_64 : f32 to vector<1x128xf32>
    %82 = arith.select %79, %80, %81 : vector<1x128xi1>, vector<1x128xf32>
    %cst_65 = arith.constant 0.000000e+00 : f32
    %cst_66 = arith.constant 5.000000e-01 : f32
    %83 = vector.broadcast %cst_65 : f32 to vector<1x128xf32>
    %84 = vector.broadcast %cst_66 : f32 to vector<1x128xf32>
    %85 = arith.select %79, %83, %84 : vector<1x128xi1>, vector<1x128xf32>
    %cst_67 = arith.constant 0.000000e+00 : f32
    %86 = vector.broadcast %cst_67 : f32 to vector<2x32xf32>
    %c0_i32 = arith.constant 0 : i32
    %87 = arith.truncf %86 : vector<2x32xf32> to vector<2x32xbf16>
    %cst_68 = arith.constant dense<0.000000e+00> : vector<2x128xf32>
    %88 = tpu.matmul %87, %71, %cst_68 {dimension_numbers = #tpu.dot_dimension_numbers<[1], [0], [0], [1], [0, 0, 1, 1], [], []>} : vector<2x32xbf16>, vector<32x128xbf16>, vector<2x128xf32> -> vector<2x128xf32>
    %89 = arith.index_cast %c0_i32 : i32 to index
    %c0_69 = arith.constant 0 : index
    %c0_70 = arith.constant 0 : index
    %90 = vector.load %arg8[%89, %c0_69, %c0_70] : memref<8x2x128xf32, #tpu.memory_space<vmem>>, vector<1x2x128xf32>
    %91 = vector.shape_cast %90 : vector<1x2x128xf32> to vector<2x128xf32>
    %92 = arith.truncf %86 : vector<2x32xf32> to vector<2x32xbf16>
    %cst_71 = arith.constant dense<0.000000e+00> : vector<2x128xf32>
    %93 = tpu.matmul %92, %67, %cst_71 {dimension_numbers = #tpu.dot_dimension_numbers<[1], [0], [0], [1], [0, 0, 1, 1], [], []>} : vector<2x32xbf16>, vector<32x128xbf16>, vector<2x128xf32> -> vector<2x128xf32>
    %94 = arith.addf %91, %93 : vector<2x128xf32>
    %95 = vector.broadcast %82 : vector<1x128xf32> to vector<2x128xf32>
    %96 = arith.mulf %94, %95 : vector<2x128xf32>
    %97 = math.tanh %96 : vector<2x128xf32>
    %98 = vector.broadcast %82 : vector<1x128xf32> to vector<2x128xf32>
    %99 = arith.mulf %97, %98 : vector<2x128xf32>
    %100 = vector.broadcast %85 : vector<1x128xf32> to vector<2x128xf32>
    %101 = arith.addf %99, %100 : vector<2x128xf32>
    %102 = vector.extract_strided_slice %101 {offsets = [0, 0], sizes = [2, 32], strides = [1, 1]} : vector<2x128xf32> to vector<2x32xf32>
    %103 = vector.extract_strided_slice %101 {offsets = [0, 32], sizes = [2, 32], strides = [1, 1]} : vector<2x128xf32> to vector<2x32xf32>
    %104 = vector.extract_strided_slice %101 {offsets = [0, 64], sizes = [2, 32], strides = [1, 1]} : vector<2x128xf32> to vector<2x32xf32>
    %105 = vector.extract_strided_slice %101 {offsets = [0, 96], sizes = [2, 32], strides = [1, 1]} : vector<2x128xf32> to vector<2x32xf32>
    %106 = arith.mulf %103, %86 : vector<2x32xf32>
    %107 = arith.mulf %102, %104 : vector<2x32xf32>
    %108 = arith.addf %106, %107 : vector<2x32xf32>
    %109 = math.tanh %108 : vector<2x32xf32>
    %110 = arith.mulf %105, %109 : vector<2x32xf32>
    %111 = arith.truncf %110 : vector<2x32xf32> to vector<2x32xbf16>
    %cst_72 = arith.constant dense<0.000000e+00> : vector<2x128xf32>
    %112 = tpu.matmul %111, %69, %cst_72 {dimension_numbers = #tpu.dot_dimension_numbers<[1], [0], [0], [1], [0, 0, 1, 1], [], []>} : vector<2x32xbf16>, vector<32x128xbf16>, vector<2x128xf32> -> vector<2x128xf32>
    %113 = arith.addf %112, %88 : vector<2x128xf32>
    %114 = vector.broadcast %73 : vector<1x128xf32> to vector<2x128xf32>
    %115 = arith.addf %113, %114 : vector<2x128xf32>
    %116 = vector.broadcast %82 : vector<1x128xf32> to vector<2x128xf32>
    %117 = arith.mulf %115, %116 : vector<2x128xf32>
    %118 = math.tanh %117 : vector<2x128xf32>
    %119 = vector.broadcast %82 : vector<1x128xf32> to vector<2x128xf32>
    %120 = arith.mulf %118, %119 : vector<2x128xf32>
    %121 = vector.broadcast %85 : vector<1x128xf32> to vector<2x128xf32>
    %122 = arith.addf %120, %121 : vector<2x128xf32>
    %123 = vector.extract_strided_slice %122 {offsets = [0, 0], sizes = [2, 32], strides = [1, 1]} : vector<2x128xf32> to vector<2x32xf32>
    %124 = vector.extract_strided_slice %122 {offsets = [0, 32], sizes = [2, 32], strides = [1, 1]} : vector<2x128xf32> to vector<2x32xf32>
    %125 = vector.extract_strided_slice %122 {offsets = [0, 64], sizes = [2, 32], strides = [1, 1]} : vector<2x128xf32> to vector<2x32xf32>
    %126 = vector.extract_strided_slice %122 {offsets = [0, 96], sizes = [2, 32], strides = [1, 1]} : vector<2x128xf32> to vector<2x32xf32>
    %127 = arith.mulf %124, %86 : vector<2x32xf32>
    %128 = arith.mulf %123, %125 : vector<2x32xf32>
    %129 = arith.addf %127, %128 : vector<2x32xf32>
    %130 = math.tanh %129 : vector<2x32xf32>
    %131 = arith.mulf %126, %130 : vector<2x32xf32>
    %c1_i32 = arith.constant 1 : i32
    %132 = arith.truncf %131 : vector<2x32xf32> to vector<2x32xbf16>
    %cst_73 = arith.constant dense<0.000000e+00> : vector<2x128xf32>
    %133 = tpu.matmul %132, %71, %cst_73 {dimension_numbers = #tpu.dot_dimension_numbers<[1], [0], [0], [1], [0, 0, 1, 1], [], []>} : vector<2x32xbf16>, vector<32x128xbf16>, vector<2x128xf32> -> vector<2x128xf32>
    %134 = arith.index_cast %c1_i32 : i32 to index
    %c0_74 = arith.constant 0 : index
    %c0_75 = arith.constant 0 : index
    %135 = vector.load %arg8[%134, %c0_74, %c0_75] : memref<8x2x128xf32, #tpu.memory_space<vmem>>, vector<1x2x128xf32>
    %136 = vector.shape_cast %135 : vector<1x2x128xf32> to vector<2x128xf32>
    %137 = arith.truncf %110 : vector<2x32xf32> to vector<2x32xbf16>
    %cst_76 = arith.constant dense<0.000000e+00> : vector<2x128xf32>
    %138 = tpu.matmul %137, %67, %cst_76 {dimension_numbers = #tpu.dot_dimension_numbers<[1], [0], [0], [1], [0, 0, 1, 1], [], []>} : vector<2x32xbf16>, vector<32x128xbf16>, vector<2x128xf32> -> vector<2x128xf32>
    %139 = arith.addf %136, %138 : vector<2x128xf32>
    %140 = vector.broadcast %82 : vector<1x128xf32> to vector<2x128xf32>
    %141 = arith.mulf %139, %140 : vector<2x128xf32>
    %142 = math.tanh %141 : vector<2x128xf32>
    %143 = vector.broadcast %82 : vector<1x128xf32> to vector<2x128xf32>
    %144 = arith.mulf %142, %143 : vector<2x128xf32>
    %145 = vector.broadcast %85 : vector<1x128xf32> to vector<2x128xf32>
    %146 = arith.addf %144, %145 : vector<2x128xf32>
    %147 = vector.extract_strided_slice %146 {offsets = [0, 0], sizes = [2, 32], strides = [1, 1]} : vector<2x128xf32> to vector<2x32xf32>
    %148 = vector.extract_strided_slice %146 {offsets = [0, 32], sizes = [2, 32], strides = [1, 1]} : vector<2x128xf32> to vector<2x32xf32>
    %149 = vector.extract_strided_slice %146 {offsets = [0, 64], sizes = [2, 32], strides = [1, 1]} : vector<2x128xf32> to vector<2x32xf32>
    %150 = vector.extract_strided_slice %146 {offsets = [0, 96], sizes = [2, 32], strides = [1, 1]} : vector<2x128xf32> to vector<2x32xf32>
    %151 = arith.mulf %148, %108 : vector<2x32xf32>
    %152 = arith.mulf %147, %149 : vector<2x32xf32>
    %153 = arith.addf %151, %152 : vector<2x32xf32>
    %154 = math.tanh %153 : vector<2x32xf32>
    %155 = arith.mulf %150, %154 : vector<2x32xf32>
    %156 = arith.truncf %155 : vector<2x32xf32> to vector<2x32xbf16>
    %cst_77 = arith.constant dense<0.000000e+00> : vector<2x128xf32>
    %157 = tpu.matmul %156, %69, %cst_77 {dimension_numbers = #tpu.dot_dimension_numbers<[1], [0], [0], [1], [0, 0, 1, 1], [], []>} : vector<2x32xbf16>, vector<32x128xbf16>, vector<2x128xf32> -> vector<2x128xf32>
    %158 = arith.addf %157, %133 : vector<2x128xf32>
    %159 = vector.broadcast %73 : vector<1x128xf32> to vector<2x128xf32>
    %160 = arith.addf %158, %159 : vector<2x128xf32>
    %161 = vector.broadcast %82 : vector<1x128xf32> to vector<2x128xf32>
    %162 = arith.mulf %160, %161 : vector<2x128xf32>
    %163 = math.tanh %162 : vector<2x128xf32>
    %164 = vector.broadcast %82 : vector<1x128xf32> to vector<2x128xf32>
    %165 = arith.mulf %163, %164 : vector<2x128xf32>
    %166 = vector.broadcast %85 : vector<1x128xf32> to vector<2x128xf32>
    %167 = arith.addf %165, %166 : vector<2x128xf32>
    %168 = vector.extract_strided_slice %167 {offsets = [0, 0], sizes = [2, 32], strides = [1, 1]} : vector<2x128xf32> to vector<2x32xf32>
    %169 = vector.extract_strided_slice %167 {offsets = [0, 32], sizes = [2, 32], strides = [1, 1]} : vector<2x128xf32> to vector<2x32xf32>
    %170 = vector.extract_strided_slice %167 {offsets = [0, 64], sizes = [2, 32], strides = [1, 1]} : vector<2x128xf32> to vector<2x32xf32>
    %171 = vector.extract_strided_slice %167 {offsets = [0, 96], sizes = [2, 32], strides = [1, 1]} : vector<2x128xf32> to vector<2x32xf32>
    %172 = arith.mulf %169, %129 : vector<2x32xf32>
    %173 = arith.mulf %168, %170 : vector<2x32xf32>
    %174 = arith.addf %172, %173 : vector<2x32xf32>
    %175 = math.tanh %174 : vector<2x32xf32>
    %176 = arith.mulf %171, %175 : vector<2x32xf32>
    %c2_i32 = arith.constant 2 : i32
    %177 = arith.truncf %176 : vector<2x32xf32> to vector<2x32xbf16>
    %cst_78 = arith.constant dense<0.000000e+00> : vector<2x128xf32>
    %178 = tpu.matmul %177, %71, %cst_78 {dimension_numbers = #tpu.dot_dimension_numbers<[1], [0], [0], [1], [0, 0, 1, 1], [], []>} : vector<2x32xbf16>, vector<32x128xbf16>, vector<2x128xf32> -> vector<2x128xf32>
    %179 = arith.index_cast %c2_i32 : i32 to index
    %c0_79 = arith.constant 0 : index
    %c0_80 = arith.constant 0 : index
    %180 = vector.load %arg8[%179, %c0_79, %c0_80] : memref<8x2x128xf32, #tpu.memory_space<vmem>>, vector<1x2x128xf32>
    %181 = vector.shape_cast %180 : vector<1x2x128xf32> to vector<2x128xf32>
    %182 = arith.truncf %155 : vector<2x32xf32> to vector<2x32xbf16>
    %cst_81 = arith.constant dense<0.000000e+00> : vector<2x128xf32>
    %183 = tpu.matmul %182, %67, %cst_81 {dimension_numbers = #tpu.dot_dimension_numbers<[1], [0], [0], [1], [0, 0, 1, 1], [], []>} : vector<2x32xbf16>, vector<32x128xbf16>, vector<2x128xf32> -> vector<2x128xf32>
    %184 = arith.addf %181, %183 : vector<2x128xf32>
    %185 = vector.broadcast %82 : vector<1x128xf32> to vector<2x128xf32>
    %186 = arith.mulf %184, %185 : vector<2x128xf32>
    %187 = math.tanh %186 : vector<2x128xf32>
    %188 = vector.broadcast %82 : vector<1x128xf32> to vector<2x128xf32>
    %189 = arith.mulf %187, %188 : vector<2x128xf32>
    %190 = vector.broadcast %85 : vector<1x128xf32> to vector<2x128xf32>
    %191 = arith.addf %189, %190 : vector<2x128xf32>
    %192 = vector.extract_strided_slice %191 {offsets = [0, 0], sizes = [2, 32], strides = [1, 1]} : vector<2x128xf32> to vector<2x32xf32>
    %193 = vector.extract_strided_slice %191 {offsets = [0, 32], sizes = [2, 32], strides = [1, 1]} : vector<2x128xf32> to vector<2x32xf32>
    %194 = vector.extract_strided_slice %191 {offsets = [0, 64], sizes = [2, 32], strides = [1, 1]} : vector<2x128xf32> to vector<2x32xf32>
    %195 = vector.extract_strided_slice %191 {offsets = [0, 96], sizes = [2, 32], strides = [1, 1]} : vector<2x128xf32> to vector<2x32xf32>
    %196 = arith.mulf %193, %153 : vector<2x32xf32>
    %197 = arith.mulf %192, %194 : vector<2x32xf32>
    %198 = arith.addf %196, %197 : vector<2x32xf32>
    %199 = math.tanh %198 : vector<2x32xf32>
    %200 = arith.mulf %195, %199 : vector<2x32xf32>
    %201 = arith.truncf %200 : vector<2x32xf32> to vector<2x32xbf16>
    %cst_82 = arith.constant dense<0.000000e+00> : vector<2x128xf32>
    %202 = tpu.matmul %201, %69, %cst_82 {dimension_numbers = #tpu.dot_dimension_numbers<[1], [0], [0], [1], [0, 0, 1, 1], [], []>} : vector<2x32xbf16>, vector<32x128xbf16>, vector<2x128xf32> -> vector<2x128xf32>
    %203 = arith.addf %202, %178 : vector<2x128xf32>
    %204 = vector.broadcast %73 : vector<1x128xf32> to vector<2x128xf32>
    %205 = arith.addf %203, %204 : vector<2x128xf32>
    %206 = vector.broadcast %82 : vector<1x128xf32> to vector<2x128xf32>
    %207 = arith.mulf %205, %206 : vector<2x128xf32>
    %208 = math.tanh %207 : vector<2x128xf32>
    %209 = vector.broadcast %82 : vector<1x128xf32> to vector<2x128xf32>
    %210 = arith.mulf %208, %209 : vector<2x128xf32>
    %211 = vector.broadcast %85 : vector<1x128xf32> to vector<2x128xf32>
    %212 = arith.addf %210, %211 : vector<2x128xf32>
    %213 = vector.extract_strided_slice %212 {offsets = [0, 0], sizes = [2, 32], strides = [1, 1]} : vector<2x128xf32> to vector<2x32xf32>
    %214 = vector.extract_strided_slice %212 {offsets = [0, 32], sizes = [2, 32], strides = [1, 1]} : vector<2x128xf32> to vector<2x32xf32>
    %215 = vector.extract_strided_slice %212 {offsets = [0, 64], sizes = [2, 32], strides = [1, 1]} : vector<2x128xf32> to vector<2x32xf32>
    %216 = vector.extract_strided_slice %212 {offsets = [0, 96], sizes = [2, 32], strides = [1, 1]} : vector<2x128xf32> to vector<2x32xf32>
    %217 = arith.mulf %214, %174 : vector<2x32xf32>
    %218 = arith.mulf %213, %215 : vector<2x32xf32>
    %219 = arith.addf %217, %218 : vector<2x32xf32>
    %220 = math.tanh %219 : vector<2x32xf32>
    %221 = arith.mulf %216, %220 : vector<2x32xf32>
    %c3_i32 = arith.constant 3 : i32
    %222 = arith.truncf %221 : vector<2x32xf32> to vector<2x32xbf16>
    %cst_83 = arith.constant dense<0.000000e+00> : vector<2x128xf32>
    %223 = tpu.matmul %222, %71, %cst_83 {dimension_numbers = #tpu.dot_dimension_numbers<[1], [0], [0], [1], [0, 0, 1, 1], [], []>} : vector<2x32xbf16>, vector<32x128xbf16>, vector<2x128xf32> -> vector<2x128xf32>
    %224 = arith.index_cast %c3_i32 : i32 to index
    %c0_84 = arith.constant 0 : index
    %c0_85 = arith.constant 0 : index
    %225 = vector.load %arg8[%224, %c0_84, %c0_85] : memref<8x2x128xf32, #tpu.memory_space<vmem>>, vector<1x2x128xf32>
    %226 = vector.shape_cast %225 : vector<1x2x128xf32> to vector<2x128xf32>
    %227 = arith.truncf %200 : vector<2x32xf32> to vector<2x32xbf16>
    %cst_86 = arith.constant dense<0.000000e+00> : vector<2x128xf32>
    %228 = tpu.matmul %227, %67, %cst_86 {dimension_numbers = #tpu.dot_dimension_numbers<[1], [0], [0], [1], [0, 0, 1, 1], [], []>} : vector<2x32xbf16>, vector<32x128xbf16>, vector<2x128xf32> -> vector<2x128xf32>
    %229 = arith.addf %226, %228 : vector<2x128xf32>
    %230 = vector.broadcast %82 : vector<1x128xf32> to vector<2x128xf32>
    %231 = arith.mulf %229, %230 : vector<2x128xf32>
    %232 = math.tanh %231 : vector<2x128xf32>
    %233 = vector.broadcast %82 : vector<1x128xf32> to vector<2x128xf32>
    %234 = arith.mulf %232, %233 : vector<2x128xf32>
    %235 = vector.broadcast %85 : vector<1x128xf32> to vector<2x128xf32>
    %236 = arith.addf %234, %235 : vector<2x128xf32>
    %237 = vector.extract_strided_slice %236 {offsets = [0, 0], sizes = [2, 32], strides = [1, 1]} : vector<2x128xf32> to vector<2x32xf32>
    %238 = vector.extract_strided_slice %236 {offsets = [0, 32], sizes = [2, 32], strides = [1, 1]} : vector<2x128xf32> to vector<2x32xf32>
    %239 = vector.extract_strided_slice %236 {offsets = [0, 64], sizes = [2, 32], strides = [1, 1]} : vector<2x128xf32> to vector<2x32xf32>
    %240 = vector.extract_strided_slice %236 {offsets = [0, 96], sizes = [2, 32], strides = [1, 1]} : vector<2x128xf32> to vector<2x32xf32>
    %241 = arith.mulf %238, %198 : vector<2x32xf32>
    %242 = arith.mulf %237, %239 : vector<2x32xf32>
    %243 = arith.addf %241, %242 : vector<2x32xf32>
    %244 = math.tanh %243 : vector<2x32xf32>
    %245 = arith.mulf %240, %244 : vector<2x32xf32>
    %246 = arith.truncf %245 : vector<2x32xf32> to vector<2x32xbf16>
    %cst_87 = arith.constant dense<0.000000e+00> : vector<2x128xf32>
    %247 = tpu.matmul %246, %69, %cst_87 {dimension_numbers = #tpu.dot_dimension_numbers<[1], [0], [0], [1], [0, 0, 1, 1], [], []>} : vector<2x32xbf16>, vector<32x128xbf16>, vector<2x128xf32> -> vector<2x128xf32>
    %248 = arith.addf %247, %223 : vector<2x128xf32>
    %249 = vector.broadcast %73 : vector<1x128xf32> to vector<2x128xf32>
    %250 = arith.addf %248, %249 : vector<2x128xf32>
    %251 = vector.broadcast %82 : vector<1x128xf32> to vector<2x128xf32>
    %252 = arith.mulf %250, %251 : vector<2x128xf32>
    %253 = math.tanh %252 : vector<2x128xf32>
    %254 = vector.broadcast %82 : vector<1x128xf32> to vector<2x128xf32>
    %255 = arith.mulf %253, %254 : vector<2x128xf32>
    %256 = vector.broadcast %85 : vector<1x128xf32> to vector<2x128xf32>
    %257 = arith.addf %255, %256 : vector<2x128xf32>
    %258 = vector.extract_strided_slice %257 {offsets = [0, 0], sizes = [2, 32], strides = [1, 1]} : vector<2x128xf32> to vector<2x32xf32>
    %259 = vector.extract_strided_slice %257 {offsets = [0, 32], sizes = [2, 32], strides = [1, 1]} : vector<2x128xf32> to vector<2x32xf32>
    %260 = vector.extract_strided_slice %257 {offsets = [0, 64], sizes = [2, 32], strides = [1, 1]} : vector<2x128xf32> to vector<2x32xf32>
    %261 = vector.extract_strided_slice %257 {offsets = [0, 96], sizes = [2, 32], strides = [1, 1]} : vector<2x128xf32> to vector<2x32xf32>
    %262 = arith.mulf %259, %219 : vector<2x32xf32>
    %263 = arith.mulf %258, %260 : vector<2x32xf32>
    %264 = arith.addf %262, %263 : vector<2x32xf32>
    %265 = math.tanh %264 : vector<2x32xf32>
    %266 = arith.mulf %261, %265 : vector<2x32xf32>
    %c4_i32 = arith.constant 4 : i32
    %267 = arith.truncf %266 : vector<2x32xf32> to vector<2x32xbf16>
    %cst_88 = arith.constant dense<0.000000e+00> : vector<2x128xf32>
    %268 = tpu.matmul %267, %71, %cst_88 {dimension_numbers = #tpu.dot_dimension_numbers<[1], [0], [0], [1], [0, 0, 1, 1], [], []>} : vector<2x32xbf16>, vector<32x128xbf16>, vector<2x128xf32> -> vector<2x128xf32>
    %269 = arith.index_cast %c4_i32 : i32 to index
    %c0_89 = arith.constant 0 : index
    %c0_90 = arith.constant 0 : index
    %270 = vector.load %arg8[%269, %c0_89, %c0_90] : memref<8x2x128xf32, #tpu.memory_space<vmem>>, vector<1x2x128xf32>
    %271 = vector.shape_cast %270 : vector<1x2x128xf32> to vector<2x128xf32>
    %272 = arith.truncf %245 : vector<2x32xf32> to vector<2x32xbf16>
    %cst_91 = arith.constant dense<0.000000e+00> : vector<2x128xf32>
    %273 = tpu.matmul %272, %67, %cst_91 {dimension_numbers = #tpu.dot_dimension_numbers<[1], [0], [0], [1], [0, 0, 1, 1], [], []>} : vector<2x32xbf16>, vector<32x128xbf16>, vector<2x128xf32> -> vector<2x128xf32>
    %274 = arith.addf %271, %273 : vector<2x128xf32>
    %275 = vector.broadcast %82 : vector<1x128xf32> to vector<2x128xf32>
    %276 = arith.mulf %274, %275 : vector<2x128xf32>
    %277 = math.tanh %276 : vector<2x128xf32>
    %278 = vector.broadcast %82 : vector<1x128xf32> to vector<2x128xf32>
    %279 = arith.mulf %277, %278 : vector<2x128xf32>
    %280 = vector.broadcast %85 : vector<1x128xf32> to vector<2x128xf32>
    %281 = arith.addf %279, %280 : vector<2x128xf32>
    %282 = vector.extract_strided_slice %281 {offsets = [0, 0], sizes = [2, 32], strides = [1, 1]} : vector<2x128xf32> to vector<2x32xf32>
    %283 = vector.extract_strided_slice %281 {offsets = [0, 32], sizes = [2, 32], strides = [1, 1]} : vector<2x128xf32> to vector<2x32xf32>
    %284 = vector.extract_strided_slice %281 {offsets = [0, 64], sizes = [2, 32], strides = [1, 1]} : vector<2x128xf32> to vector<2x32xf32>
    %285 = vector.extract_strided_slice %281 {offsets = [0, 96], sizes = [2, 32], strides = [1, 1]} : vector<2x128xf32> to vector<2x32xf32>
    %286 = arith.mulf %283, %243 : vector<2x32xf32>
    %287 = arith.mulf %282, %284 : vector<2x32xf32>
    %288 = arith.addf %286, %287 : vector<2x32xf32>
    %289 = math.tanh %288 : vector<2x32xf32>
    %290 = arith.mulf %285, %289 : vector<2x32xf32>
    %291 = arith.truncf %290 : vector<2x32xf32> to vector<2x32xbf16>
    %cst_92 = arith.constant dense<0.000000e+00> : vector<2x128xf32>
    %292 = tpu.matmul %291, %69, %cst_92 {dimension_numbers = #tpu.dot_dimension_numbers<[1], [0], [0], [1], [0, 0, 1, 1], [], []>} : vector<2x32xbf16>, vector<32x128xbf16>, vector<2x128xf32> -> vector<2x128xf32>
    %293 = arith.addf %292, %268 : vector<2x128xf32>
    %294 = vector.broadcast %73 : vector<1x128xf32> to vector<2x128xf32>
    %295 = arith.addf %293, %294 : vector<2x128xf32>
    %296 = vector.broadcast %82 : vector<1x128xf32> to vector<2x128xf32>
    %297 = arith.mulf %295, %296 : vector<2x128xf32>
    %298 = math.tanh %297 : vector<2x128xf32>
    %299 = vector.broadcast %82 : vector<1x128xf32> to vector<2x128xf32>
    %300 = arith.mulf %298, %299 : vector<2x128xf32>
    %301 = vector.broadcast %85 : vector<1x128xf32> to vector<2x128xf32>
    %302 = arith.addf %300, %301 : vector<2x128xf32>
    %303 = vector.extract_strided_slice %302 {offsets = [0, 0], sizes = [2, 32], strides = [1, 1]} : vector<2x128xf32> to vector<2x32xf32>
    %304 = vector.extract_strided_slice %302 {offsets = [0, 32], sizes = [2, 32], strides = [1, 1]} : vector<2x128xf32> to vector<2x32xf32>
    %305 = vector.extract_strided_slice %302 {offsets = [0, 64], sizes = [2, 32], strides = [1, 1]} : vector<2x128xf32> to vector<2x32xf32>
    %306 = vector.extract_strided_slice %302 {offsets = [0, 96], sizes = [2, 32], strides = [1, 1]} : vector<2x128xf32> to vector<2x32xf32>
    %307 = arith.mulf %304, %264 : vector<2x32xf32>
    %308 = arith.mulf %303, %305 : vector<2x32xf32>
    %309 = arith.addf %307, %308 : vector<2x32xf32>
    %310 = math.tanh %309 : vector<2x32xf32>
    %311 = arith.mulf %306, %310 : vector<2x32xf32>
    %c5_i32 = arith.constant 5 : i32
    %312 = arith.truncf %311 : vector<2x32xf32> to vector<2x32xbf16>
    %cst_93 = arith.constant dense<0.000000e+00> : vector<2x128xf32>
    %313 = tpu.matmul %312, %71, %cst_93 {dimension_numbers = #tpu.dot_dimension_numbers<[1], [0], [0], [1], [0, 0, 1, 1], [], []>} : vector<2x32xbf16>, vector<32x128xbf16>, vector<2x128xf32> -> vector<2x128xf32>
    %314 = arith.index_cast %c5_i32 : i32 to index
    %c0_94 = arith.constant 0 : index
    %c0_95 = arith.constant 0 : index
    %315 = vector.load %arg8[%314, %c0_94, %c0_95] : memref<8x2x128xf32, #tpu.memory_space<vmem>>, vector<1x2x128xf32>
    %316 = vector.shape_cast %315 : vector<1x2x128xf32> to vector<2x128xf32>
    %317 = arith.truncf %290 : vector<2x32xf32> to vector<2x32xbf16>
    %cst_96 = arith.constant dense<0.000000e+00> : vector<2x128xf32>
    %318 = tpu.matmul %317, %67, %cst_96 {dimension_numbers = #tpu.dot_dimension_numbers<[1], [0], [0], [1], [0, 0, 1, 1], [], []>} : vector<2x32xbf16>, vector<32x128xbf16>, vector<2x128xf32> -> vector<2x128xf32>
    %319 = arith.addf %316, %318 : vector<2x128xf32>
    %320 = vector.broadcast %82 : vector<1x128xf32> to vector<2x128xf32>
    %321 = arith.mulf %319, %320 : vector<2x128xf32>
    %322 = math.tanh %321 : vector<2x128xf32>
    %323 = vector.broadcast %82 : vector<1x128xf32> to vector<2x128xf32>
    %324 = arith.mulf %322, %323 : vector<2x128xf32>
    %325 = vector.broadcast %85 : vector<1x128xf32> to vector<2x128xf32>
    %326 = arith.addf %324, %325 : vector<2x128xf32>
    %327 = vector.extract_strided_slice %326 {offsets = [0, 0], sizes = [2, 32], strides = [1, 1]} : vector<2x128xf32> to vector<2x32xf32>
    %328 = vector.extract_strided_slice %326 {offsets = [0, 32], sizes = [2, 32], strides = [1, 1]} : vector<2x128xf32> to vector<2x32xf32>
    %329 = vector.extract_strided_slice %326 {offsets = [0, 64], sizes = [2, 32], strides = [1, 1]} : vector<2x128xf32> to vector<2x32xf32>
    %330 = vector.extract_strided_slice %326 {offsets = [0, 96], sizes = [2, 32], strides = [1, 1]} : vector<2x128xf32> to vector<2x32xf32>
    %331 = arith.mulf %328, %288 : vector<2x32xf32>
    %332 = arith.mulf %327, %329 : vector<2x32xf32>
    %333 = arith.addf %331, %332 : vector<2x32xf32>
    %334 = math.tanh %333 : vector<2x32xf32>
    %335 = arith.mulf %330, %334 : vector<2x32xf32>
    %336 = arith.truncf %335 : vector<2x32xf32> to vector<2x32xbf16>
    %cst_97 = arith.constant dense<0.000000e+00> : vector<2x128xf32>
    %337 = tpu.matmul %336, %69, %cst_97 {dimension_numbers = #tpu.dot_dimension_numbers<[1], [0], [0], [1], [0, 0, 1, 1], [], []>} : vector<2x32xbf16>, vector<32x128xbf16>, vector<2x128xf32> -> vector<2x128xf32>
    %338 = arith.addf %337, %313 : vector<2x128xf32>
    %339 = vector.broadcast %73 : vector<1x128xf32> to vector<2x128xf32>
    %340 = arith.addf %338, %339 : vector<2x128xf32>
    %341 = vector.broadcast %82 : vector<1x128xf32> to vector<2x128xf32>
    %342 = arith.mulf %340, %341 : vector<2x128xf32>
    %343 = math.tanh %342 : vector<2x128xf32>
    %344 = vector.broadcast %82 : vector<1x128xf32> to vector<2x128xf32>
    %345 = arith.mulf %343, %344 : vector<2x128xf32>
    %346 = vector.broadcast %85 : vector<1x128xf32> to vector<2x128xf32>
    %347 = arith.addf %345, %346 : vector<2x128xf32>
    %348 = vector.extract_strided_slice %347 {offsets = [0, 0], sizes = [2, 32], strides = [1, 1]} : vector<2x128xf32> to vector<2x32xf32>
    %349 = vector.extract_strided_slice %347 {offsets = [0, 32], sizes = [2, 32], strides = [1, 1]} : vector<2x128xf32> to vector<2x32xf32>
    %350 = vector.extract_strided_slice %347 {offsets = [0, 64], sizes = [2, 32], strides = [1, 1]} : vector<2x128xf32> to vector<2x32xf32>
    %351 = vector.extract_strided_slice %347 {offsets = [0, 96], sizes = [2, 32], strides = [1, 1]} : vector<2x128xf32> to vector<2x32xf32>
    %352 = arith.mulf %349, %309 : vector<2x32xf32>
    %353 = arith.mulf %348, %350 : vector<2x32xf32>
    %354 = arith.addf %352, %353 : vector<2x32xf32>
    %355 = math.tanh %354 : vector<2x32xf32>
    %356 = arith.mulf %351, %355 : vector<2x32xf32>
    %c6_i32 = arith.constant 6 : i32
    %357 = arith.truncf %356 : vector<2x32xf32> to vector<2x32xbf16>
    %cst_98 = arith.constant dense<0.000000e+00> : vector<2x128xf32>
    %358 = tpu.matmul %357, %71, %cst_98 {dimension_numbers = #tpu.dot_dimension_numbers<[1], [0], [0], [1], [0, 0, 1, 1], [], []>} : vector<2x32xbf16>, vector<32x128xbf16>, vector<2x128xf32> -> vector<2x128xf32>
    %359 = arith.index_cast %c6_i32 : i32 to index
    %c0_99 = arith.constant 0 : index
    %c0_100 = arith.constant 0 : index
    %360 = vector.load %arg8[%359, %c0_99, %c0_100] : memref<8x2x128xf32, #tpu.memory_space<vmem>>, vector<1x2x128xf32>
    %361 = vector.shape_cast %360 : vector<1x2x128xf32> to vector<2x128xf32>
    %362 = arith.truncf %335 : vector<2x32xf32> to vector<2x32xbf16>
    %cst_101 = arith.constant dense<0.000000e+00> : vector<2x128xf32>
    %363 = tpu.matmul %362, %67, %cst_101 {dimension_numbers = #tpu.dot_dimension_numbers<[1], [0], [0], [1], [0, 0, 1, 1], [], []>} : vector<2x32xbf16>, vector<32x128xbf16>, vector<2x128xf32> -> vector<2x128xf32>
    %364 = arith.addf %361, %363 : vector<2x128xf32>
    %365 = vector.broadcast %82 : vector<1x128xf32> to vector<2x128xf32>
    %366 = arith.mulf %364, %365 : vector<2x128xf32>
    %367 = math.tanh %366 : vector<2x128xf32>
    %368 = vector.broadcast %82 : vector<1x128xf32> to vector<2x128xf32>
    %369 = arith.mulf %367, %368 : vector<2x128xf32>
    %370 = vector.broadcast %85 : vector<1x128xf32> to vector<2x128xf32>
    %371 = arith.addf %369, %370 : vector<2x128xf32>
    %372 = vector.extract_strided_slice %371 {offsets = [0, 0], sizes = [2, 32], strides = [1, 1]} : vector<2x128xf32> to vector<2x32xf32>
    %373 = vector.extract_strided_slice %371 {offsets = [0, 32], sizes = [2, 32], strides = [1, 1]} : vector<2x128xf32> to vector<2x32xf32>
    %374 = vector.extract_strided_slice %371 {offsets = [0, 64], sizes = [2, 32], strides = [1, 1]} : vector<2x128xf32> to vector<2x32xf32>
    %375 = vector.extract_strided_slice %371 {offsets = [0, 96], sizes = [2, 32], strides = [1, 1]} : vector<2x128xf32> to vector<2x32xf32>
    %376 = arith.mulf %373, %333 : vector<2x32xf32>
    %377 = arith.mulf %372, %374 : vector<2x32xf32>
    %378 = arith.addf %376, %377 : vector<2x32xf32>
    %379 = math.tanh %378 : vector<2x32xf32>
    %380 = arith.mulf %375, %379 : vector<2x32xf32>
    %381 = arith.truncf %380 : vector<2x32xf32> to vector<2x32xbf16>
    %cst_102 = arith.constant dense<0.000000e+00> : vector<2x128xf32>
    %382 = tpu.matmul %381, %69, %cst_102 {dimension_numbers = #tpu.dot_dimension_numbers<[1], [0], [0], [1], [0, 0, 1, 1], [], []>} : vector<2x32xbf16>, vector<32x128xbf16>, vector<2x128xf32> -> vector<2x128xf32>
    %383 = arith.addf %382, %358 : vector<2x128xf32>
    %384 = vector.broadcast %73 : vector<1x128xf32> to vector<2x128xf32>
    %385 = arith.addf %383, %384 : vector<2x128xf32>
    %386 = vector.broadcast %82 : vector<1x128xf32> to vector<2x128xf32>
    %387 = arith.mulf %385, %386 : vector<2x128xf32>
    %388 = math.tanh %387 : vector<2x128xf32>
    %389 = vector.broadcast %82 : vector<1x128xf32> to vector<2x128xf32>
    %390 = arith.mulf %388, %389 : vector<2x128xf32>
    %391 = vector.broadcast %85 : vector<1x128xf32> to vector<2x128xf32>
    %392 = arith.addf %390, %391 : vector<2x128xf32>
    %393 = vector.extract_strided_slice %392 {offsets = [0, 0], sizes = [2, 32], strides = [1, 1]} : vector<2x128xf32> to vector<2x32xf32>
    %394 = vector.extract_strided_slice %392 {offsets = [0, 32], sizes = [2, 32], strides = [1, 1]} : vector<2x128xf32> to vector<2x32xf32>
    %395 = vector.extract_strided_slice %392 {offsets = [0, 64], sizes = [2, 32], strides = [1, 1]} : vector<2x128xf32> to vector<2x32xf32>
    %396 = vector.extract_strided_slice %392 {offsets = [0, 96], sizes = [2, 32], strides = [1, 1]} : vector<2x128xf32> to vector<2x32xf32>
    %397 = arith.mulf %394, %354 : vector<2x32xf32>
    %398 = arith.mulf %393, %395 : vector<2x32xf32>
    %399 = arith.addf %397, %398 : vector<2x32xf32>
    %400 = math.tanh %399 : vector<2x32xf32>
    %401 = arith.mulf %396, %400 : vector<2x32xf32>
    %c7_i32 = arith.constant 7 : i32
    %402 = arith.truncf %401 : vector<2x32xf32> to vector<2x32xbf16>
    %cst_103 = arith.constant dense<0.000000e+00> : vector<2x128xf32>
    %403 = tpu.matmul %402, %71, %cst_103 {dimension_numbers = #tpu.dot_dimension_numbers<[1], [0], [0], [1], [0, 0, 1, 1], [], []>} : vector<2x32xbf16>, vector<32x128xbf16>, vector<2x128xf32> -> vector<2x128xf32>
    %404 = arith.index_cast %c7_i32 : i32 to index
    %c0_104 = arith.constant 0 : index
    %c0_105 = arith.constant 0 : index
    %405 = vector.load %arg8[%404, %c0_104, %c0_105] : memref<8x2x128xf32, #tpu.memory_space<vmem>>, vector<1x2x128xf32>
    %406 = vector.shape_cast %405 : vector<1x2x128xf32> to vector<2x128xf32>
    %407 = arith.truncf %380 : vector<2x32xf32> to vector<2x32xbf16>
    %cst_106 = arith.constant dense<0.000000e+00> : vector<2x128xf32>
    %408 = tpu.matmul %407, %67, %cst_106 {dimension_numbers = #tpu.dot_dimension_numbers<[1], [0], [0], [1], [0, 0, 1, 1], [], []>} : vector<2x32xbf16>, vector<32x128xbf16>, vector<2x128xf32> -> vector<2x128xf32>
    %409 = arith.addf %406, %408 : vector<2x128xf32>
    %410 = vector.broadcast %82 : vector<1x128xf32> to vector<2x128xf32>
    %411 = arith.mulf %409, %410 : vector<2x128xf32>
    %412 = math.tanh %411 : vector<2x128xf32>
    %413 = vector.broadcast %82 : vector<1x128xf32> to vector<2x128xf32>
    %414 = arith.mulf %412, %413 : vector<2x128xf32>
    %415 = vector.broadcast %85 : vector<1x128xf32> to vector<2x128xf32>
    %416 = arith.addf %414, %415 : vector<2x128xf32>
    %417 = vector.extract_strided_slice %416 {offsets = [0, 0], sizes = [2, 32], strides = [1, 1]} : vector<2x128xf32> to vector<2x32xf32>
    %418 = vector.extract_strided_slice %416 {offsets = [0, 32], sizes = [2, 32], strides = [1, 1]} : vector<2x128xf32> to vector<2x32xf32>
    %419 = vector.extract_strided_slice %416 {offsets = [0, 64], sizes = [2, 32], strides = [1, 1]} : vector<2x128xf32> to vector<2x32xf32>
    %420 = vector.extract_strided_slice %416 {offsets = [0, 96], sizes = [2, 32], strides = [1, 1]} : vector<2x128xf32> to vector<2x32xf32>
    %421 = arith.mulf %418, %378 : vector<2x32xf32>
    %422 = arith.mulf %417, %419 : vector<2x32xf32>
    %423 = arith.addf %421, %422 : vector<2x32xf32>
    %424 = math.tanh %423 : vector<2x32xf32>
    %425 = arith.mulf %420, %424 : vector<2x32xf32>
    %426 = arith.truncf %425 : vector<2x32xf32> to vector<2x32xbf16>
    %cst_107 = arith.constant dense<0.000000e+00> : vector<2x128xf32>
    %427 = tpu.matmul %426, %69, %cst_107 {dimension_numbers = #tpu.dot_dimension_numbers<[1], [0], [0], [1], [0, 0, 1, 1], [], []>} : vector<2x32xbf16>, vector<32x128xbf16>, vector<2x128xf32> -> vector<2x128xf32>
    %428 = arith.addf %427, %403 : vector<2x128xf32>
    %429 = vector.broadcast %73 : vector<1x128xf32> to vector<2x128xf32>
    %430 = arith.addf %428, %429 : vector<2x128xf32>
    %431 = vector.broadcast %82 : vector<1x128xf32> to vector<2x128xf32>
    %432 = arith.mulf %430, %431 : vector<2x128xf32>
    %433 = math.tanh %432 : vector<2x128xf32>
    %434 = vector.broadcast %82 : vector<1x128xf32> to vector<2x128xf32>
    %435 = arith.mulf %433, %434 : vector<2x128xf32>
    %436 = vector.broadcast %85 : vector<1x128xf32> to vector<2x128xf32>
    %437 = arith.addf %435, %436 : vector<2x128xf32>
    %438 = vector.extract_strided_slice %437 {offsets = [0, 0], sizes = [2, 32], strides = [1, 1]} : vector<2x128xf32> to vector<2x32xf32>
    %439 = vector.extract_strided_slice %437 {offsets = [0, 32], sizes = [2, 32], strides = [1, 1]} : vector<2x128xf32> to vector<2x32xf32>
    %440 = vector.extract_strided_slice %437 {offsets = [0, 64], sizes = [2, 32], strides = [1, 1]} : vector<2x128xf32> to vector<2x32xf32>
    %441 = vector.extract_strided_slice %437 {offsets = [0, 96], sizes = [2, 32], strides = [1, 1]} : vector<2x128xf32> to vector<2x32xf32>
    %442 = arith.mulf %439, %399 : vector<2x32xf32>
    %443 = arith.mulf %438, %440 : vector<2x32xf32>
    %444 = arith.addf %442, %443 : vector<2x32xf32>
    %445 = math.tanh %444 : vector<2x32xf32>
    %446 = arith.mulf %441, %445 : vector<2x32xf32>
    %c8_i32 = arith.constant 8 : i32
    %c0_108 = arith.constant 0 : index
    %c0_109 = arith.constant 0 : index
    %447 = vector.load %arg5[%c0_108, %c0_109] : memref<33x64xf32, #tpu.memory_space<vmem>>, vector<32x64xf32>
    %cst_110 = arith.constant dense<0.000000e+00> : vector<2x64xf32>
    %448 = tpu.matmul %446, %447, %cst_110 {dimension_numbers = #tpu.dot_dimension_numbers<[1], [0], [0], [1], [0, 0, 1, 1], [], []>} : vector<2x32xf32>, vector<32x64xf32>, vector<2x64xf32> -> vector<2x64xf32>
    %c32 = arith.constant 32 : index
    %c0_111 = arith.constant 0 : index
    %449 = vector.load %arg5[%c32, %c0_111] : memref<33x64xf32, #tpu.memory_space<vmem>>, vector<1x64xf32>
    %450 = vector.broadcast %449 : vector<1x64xf32> to vector<2x64xf32>
    %451 = arith.addf %448, %450 : vector<2x64xf32>
    %cst_112 = arith.constant 0.000000e+00 : f32
    %452 = vector.broadcast %cst_112 : f32 to vector<2x64xf32>
    %453 = arith.maximumf %451, %452 : vector<2x64xf32>
    %c0_113 = arith.constant 0 : index
    %c0_114 = arith.constant 0 : index
    %454 = vector.load %arg6[%c0_113, %c0_114] : memref<65x1xf32, #tpu.memory_space<vmem>>, vector<64x1xf32>
    %cst_115 = arith.constant dense<0.000000e+00> : vector<2x1xf32>
    %455 = tpu.matmul %453, %454, %cst_115 {dimension_numbers = #tpu.dot_dimension_numbers<[1], [0], [0], [1], [0, 0, 1, 1], [], []>} : vector<2x64xf32>, vector<64x1xf32>, vector<2x1xf32> -> vector<2x1xf32>
    %c64 = arith.constant 64 : index
    %c0_116 = arith.constant 0 : index
    %456 = vector.load %arg6[%c64, %c0_116] : memref<65x1xf32, #tpu.memory_space<vmem>>, vector<1x1xf32>
    %457 = vector.broadcast %456 : vector<1x1xf32> to vector<2x1xf32>
    %458 = arith.addf %455, %457 : vector<2x1xf32>
    %c0_117 = arith.constant 0 : index
    %c0_118 = arith.constant 0 : index
    %459 = vector.load %arg7[%c0_117, %c0_118] : memref<2x1xf32, #tpu.memory_space<vmem>>, vector<2x1xf32>
    tpu.vector_store %arg7[%c0_117, %c0_118], %458 {strides = array<i32>} : memref<2x1xf32, #tpu.memory_space<vmem>>, vector<2x1xf32>,
    return
  }
}

</mosaic_0001>

<llo_original>
// kernel: rnn_forward.1
$region0: #{rnn_forward.1}
  #allocation0 [shape = 'u32[]', space=smem, size = 0x4, offset = 0x4, fixed_abs, tag = 'smem constant byte address 0x4 - core index']
  #allocation1 [shape = 'u32[144,128]{1,0:T(1,128)}', space=vmem, size = 0x12000, scoped, tag = 'internal scratch']
  #allocation2 [shape = 'f32[8,2,128]{2,1,0:T(2,128)}', space=vmem, size = 0x2000, scoped, tag = 'scratch operand']
  %s0 = inlined_call_operand.vmem [shape: f32[8,2,4], index: 0, kind: input, shape index: {}]
  %s1 = inlined_call_operand.vmem [shape: f32[4,128], index: 1, kind: input, shape index: {}]
  %s2 = inlined_call_operand.vmem [shape: bf16[32,128], index: 2, kind: input, shape index: {}]
  %s3 = inlined_call_operand.vmem [shape: bf16[2,32,128], index: 3, kind: input, shape index: {}]
  %s4 = inlined_call_operand.vmem [shape: f32[2,1,128], index: 4, kind: input, shape index: {}]
  %s5 = inlined_call_operand.vmem [shape: f32[33,64], index: 5, kind: input, shape index: {}]
  %s6 = inlined_call_operand.vmem [shape: f32[65,1], index: 6, kind: input, shape index: {}]
  %s7 = inlined_call_operand.vmem [shape: f32[2,1], index: 7, kind: output, shape index: {}]
  %s8 = sld [smem:[#allocation0]]
  $region38: #{rnn_forward.1} parent=0
    _
  %s10 = ssub.s32 1, %s8
  %s11 = scalar_select 0, %s10, %s8
  // Predicated region
  $region2: #{rnn_forward.1} parent=0 // pred_check
    _
  $region3: #{rnn_forward.1} parent=0 // pred_check_branch
    %13 = sbr.rel (0) target = $region5
  $region4: #{rnn_forward.1} parent=0 // pred_region
    _
  $region5: #{rnn_forward.1} parent=0 // pred_fallthru
    _
  // Predicated region
  $region6: #{rnn_forward.1} parent=0 // pred_check
    _
  $region7: #{rnn_forward.1} parent=0 // pred_check_branch
    %15 = sbr.rel (0) target = $region9
  $region8: #{rnn_forward.1} parent=0 // pred_region
    _
  $region9: #{rnn_forward.1} parent=0 // pred_fallthru
    _
  // Predicated region
  $region10: #{rnn_forward.1} parent=0 // pred_check
    _
  $region11: #{rnn_forward.1} parent=0 // pred_check_branch
    %17 = sbr.rel (0) target = $region13
  $region12: #{rnn_forward.1} parent=0 // pred_region
    _
  $region13: #{rnn_forward.1} parent=0 // pred_fallthru
    _
  // Predicated region
  $region14: #{rnn_forward.1} parent=0 // pred_check
    _
  $region15: #{rnn_forward.1} parent=0 // pred_check_branch
    %19 = sbr.rel (0) target = $region17
  $region16: #{rnn_forward.1} parent=0 // pred_region
    _
  $region17: #{rnn_forward.1} parent=0 // pred_fallthru
    _
  // Predicated region
  $region18: #{rnn_forward.1} parent=0 // pred_check
    _
  $region19: #{rnn_forward.1} parent=0 // pred_check_branch
    %21 = sbr.rel (0) target = $region21
  $region20: #{rnn_forward.1} parent=0 // pred_region
    _
  $region21: #{rnn_forward.1} parent=0 // pred_fallthru
    _
  // Predicated region
  $region22: #{rnn_forward.1} parent=0 // pred_check
    _
  $region23: #{rnn_forward.1} parent=0 // pred_check_branch
    %23 = sbr.rel (0) target = $region25
  $region24: #{rnn_forward.1} parent=0 // pred_region
    _
  $region25: #{rnn_forward.1} parent=0 // pred_fallthru
    _
  // Predicated region
  $region26: #{rnn_forward.1} parent=0 // pred_check
    _
  $region27: #{rnn_forward.1} parent=0 // pred_check_branch
    %25 = sbr.rel (0) target = $region29
  $region28: #{rnn_forward.1} parent=0 // pred_region
    _
  $region29: #{rnn_forward.1} parent=0 // pred_fallthru
    _
  %v27 = vld [vmem:[%s1] sm:$0xf]
  %v28 = vld [vmem:[%s4] sm:$0x1]
  %v29 = vld [vmem:[%s0] sm:$0x3]
  %v31 = vlaneseq
  %v32 = vshrl.u32 %v31, 7
  %v33 = vsub.s32 0, %v32
  %v34 = vrot.slane %v28, %v33
  %vm36 = vcmask 31744
  %v38 = vsel %vm36, %v29, 0
  %vm40 = vcmask 1043456
  %v42 = vsel %vm40, %v27, 0
  %44 = vmatprep.subr.mxu0 0.0
  %45 = vmatpush1.msra.mxu0 %v42
  %46 = vmatprep.subr.mxu0 0.0
  %47 = vmatpush1.msra.mxu0 0.0
  %48 = vmatprep.subr.mxu0 0.0
  %49 = vmatpush1.msra.mxu0 0.0
  %50 = vmatprep.subr.mxu0 0.0
  %51 = vmatpush1.msra.mxu0 0.0
  %52 = vmatprep.subr.mxu0 0.0
  %53 = vmatpush1.msra.mxu0 0.0
  %54 = vmatprep.subr.mxu0 0.0
  %55 = vmatpush1.msra.mxu0 0.0
  %56 = vmatprep.subr.mxu0 0.0
  %57 = vmatpush1.msra.mxu0 0.0
  %58 = vmatprep.subr.mxu0 0.0
  %59 = vmatpush1.msra.mxu0 0.0
  %60 = vmatprep.subr.mxu0 0.0
  %61 = vmatpush1.msra.mxu0 0.0
  %62 = vmatprep.subr.mxu0 0.0
  %63 = vmatpush1.msra.mxu0 0.0
  %64 = vmatprep.subr.mxu0 0.0
  %65 = vmatpush1.msra.mxu0 0.0
  %66 = vmatprep.subr.mxu0 0.0
  %67 = vmatpush1.msra.mxu0 0.0
  %68 = vmatprep.subr.mxu0 0.0
  %69 = vmatpush1.msra.mxu0 0.0
  %70 = vmatprep.subr.mxu0 0.0
  %71 = vmatpush1.msra.mxu0 0.0
  %72 = vmatprep.subr.mxu0 0.0
  %73 = vmatpush1.msra.mxu0 0.0
  %74 = vmatprep.subr.mxu0 0.0
  %75 = vmatpush1.msra.mxu0 0.0
  %76 = vmatprep.subr.mxu0 0.0
  %77 = vmatpush1.msra.mxu0 0.0
  %78 = vmatprep.subr.mxu0 0.0
  %79 = vmatpush1.msra.mxu0 0.0
  %80 = vmatprep.subr.mxu0 0.0
  %81 = vmatpush1.msra.mxu0 0.0
  %82 = vmatprep.subr.mxu0 0.0
  %83 = vmatpush1.msra.mxu0 0.0
  %84 = vmatprep.subr.mxu0 0.0
  %85 = vmatpush1.msra.mxu0 0.0
  %86 = vmatprep.subr.mxu0 0.0
  %87 = vmatpush1.msra.mxu0 0.0
  %88 = vmatprep.subr.mxu0 0.0
  %89 = vmatpush1.msra.mxu0 0.0
  %90 = vmatprep.subr.mxu0 0.0
  %91 = vmatpush1.msra.mxu0 0.0
  %92 = vmatprep.subr.mxu0 0.0
  %93 = vmatpush1.msra.mxu0 0.0
  %94 = vmatprep.subr.mxu0 0.0
  %95 = vmatpush1.msra.mxu0 0.0
  %96 = vmatprep.subr.mxu0 0.0
  %97 = vmatpush1.msra.mxu0 0.0
  %98 = vmatprep.subr.mxu0 0.0
  %99 = vmatpush1.msra.mxu0 0.0
  %100 = vmatprep.subr.mxu0 0.0
  %101 = vmatpush1.msra.mxu0 0.0
  %102 = vmatprep.subr.mxu0 0.0
  %103 = vmatpush1.msra.mxu0 0.0
  %104 = vmatprep.subr.mxu0 0.0
  %105 = vmatpush1.msra.mxu0 0.0
  %106 = vmatprep.subr.mxu0 0.0
  %107 = vmatpush1.msra.mxu0 0.0
  %108 = vmatprep.mubr.f32.mxu0 0.0
  %109 = vmatmul.mubr.f32.gmra.mrb[0].mxu0 %v38
  %v110 = vpop.f32.mrb[0].mxu0
  %v111 = vadd.f32 %v34, %v110
  %v112 = vpop.f32.mrb[0].mxu0
  %113 = vdwg.mxu0
  %114 = vst [vmem:[#allocation2] sm:$0x3] %v111
  %s115 = scalar_lea.vmem %s0, 2
  %v116 = vld [vmem:[%s115] sm:$0x3]
  %v118 = vsel %vm36, %v116, 0
  %120 = vmatprep.subr.mxu0 0.0
  %121 = vmatpush1.msra.mxu0 %v42
  %122 = vmatprep.subr.mxu0 0.0
  %123 = vmatpush1.msra.mxu0 0.0
  %124 = vmatprep.subr.mxu0 0.0
  %125 = vmatpush1.msra.mxu0 0.0
  %126 = vmatprep.subr.mxu0 0.0
  %127 = vmatpush1.msra.mxu0 0.0
  %128 = vmatprep.subr.mxu0 0.0
  %129 = vmatpush1.msra.mxu0 0.0
  %130 = vmatprep.subr.mxu0 0.0
  %131 = vmatpush1.msra.mxu0 0.0
  %132 = vmatprep.subr.mxu0 0.0
  %133 = vmatpush1.msra.mxu0 0.0
  %134 = vmatprep.subr.mxu0 0.0
  %135 = vmatpush1.msra.mxu0 0.0
  %136 = vmatprep.subr.mxu0 0.0
  %137 = vmatpush1.msra.mxu0 0.0
  %138 = vmatprep.subr.mxu0 0.0
  %139 = vmatpush1.msra.mxu0 0.0
  %140 = vmatprep.subr.mxu0 0.0
  %141 = vmatpush1.msra.mxu0 0.0
  %142 = vmatprep.subr.mxu0 0.0
  %143 = vmatpush1.msra.mxu0 0.0
  %144 = vmatprep.subr.mxu0 0.0
  %145 = vmatpush1.msra.mxu0 0.0
  %146 = vmatprep.subr.mxu0 0.0
  %147 = vmatpush1.msra.mxu0 0.0
  %148 = vmatprep.subr.mxu0 0.0
  %149 = vmatpush1.msra.mxu0 0.0
  %150 = vmatprep.subr.mxu0 0.0
  %151 = vmatpush1.msra.mxu0 0.0
  %152 = vmatprep.subr.mxu0 0.0
  %153 = vmatpush1.msra.mxu0 0.0
  %154 = vmatprep.subr.mxu0 0.0
  %155 = vmatpush1.msra.mxu0 0.0
  %156 = vmatprep.subr.mxu0 0.0
  %157 = vmatpush1.msra.mxu0 0.0
  %158 = vmatprep.subr.mxu0 0.0
  %159 = vmatpush1.msra.mxu0 0.0
  %160 = vmatprep.subr.mxu0 0.0
  %161 = vmatpush1.msra.mxu0 0.0
  %162 = vmatprep.subr.mxu0 0.0
  %163 = vmatpush1.msra.mxu0 0.0
  %164 = vmatprep.subr.mxu0 0.0
  %165 = vmatpush1.msra.mxu0 0.0
  %166 = vmatprep.subr.mxu0 0.0
  %167 = vmatpush1.msra.mxu0 0.0
  %168 = vmatprep.subr.mxu0 0.0
  %169 = vmatpush1.msra.mxu0 0.0
  %170 = vmatprep.subr.mxu0 0.0
  %171 = vmatpush1.msra.mxu0 0.0
  %172 = vmatprep.subr.mxu0 0.0
  %173 = vmatpush1.msra.mxu0 0.0
  %174 = vmatprep.subr.mxu0 0.0
  %175 = vmatpush1.msra.mxu0 0.0
  %176 = vmatprep.subr.mxu0 0.0
  %177 = vmatpush1.msra.mxu0 0.0
  %178 = vmatprep.subr.mxu0 0.0
  %179 = vmatpush1.msra.mxu0 0.0
  %180 = vmatprep.subr.mxu0 0.0
  %181 = vmatpush1.msra.mxu0 0.0
  %182 = vmatprep.subr.mxu0 0.0
  %183 = vmatpush1.msra.mxu0 0.0
  %184 = vmatprep.mubr.f32.mxu0 0.0
  %185 = vmatmul.mubr.f32.gmra.mrb[0].mxu0 %v118
  %v186 = vpop.f32.mrb[0].mxu0
  %v187 = vadd.f32 %v34, %v186
  %v188 = vpop.f32.mrb[0].mxu0
  %189 = vdwg.mxu0
  %s190 = scalar_lea.vmem [#allocation2], 2
  %191 = vst [vmem:[%s190] sm:$0x3] %v187
  %s192 = scalar_lea.vmem %s0, 4
  %v193 = vld [vmem:[%s192] sm:$0x3]
  %v195 = vsel %vm36, %v193, 0
  %197 = vmatprep.subr.mxu0 0.0
  %198 = vmatpush1.msra.mxu0 %v42
  %199 = vmatprep.subr.mxu0 0.0
  %200 = vmatpush1.msra.mxu0 0.0
  %201 = vmatprep.subr.mxu0 0.0
  %202 = vmatpush1.msra.mxu0 0.0
  %203 = vmatprep.subr.mxu0 0.0
  %204 = vmatpush1.msra.mxu0 0.0
  %205 = vmatprep.subr.mxu0 0.0
  %206 = vmatpush1.msra.mxu0 0.0
  %207 = vmatprep.subr.mxu0 0.0
  %208 = vmatpush1.msra.mxu0 0.0
  %209 = vmatprep.subr.mxu0 0.0
  %210 = vmatpush1.msra.mxu0 0.0
  %211 = vmatprep.subr.mxu0 0.0
  %212 = vmatpush1.msra.mxu0 0.0
  %213 = vmatprep.subr.mxu0 0.0
  %214 = vmatpush1.msra.mxu0 0.0
  %215 = vmatprep.subr.mxu0 0.0
  %216 = vmatpush1.msra.mxu0 0.0
  %217 = vmatprep.subr.mxu0 0.0
  %218 = vmatpush1.msra.mxu0 0.0
  %219 = vmatprep.subr.mxu0 0.0
  %220 = vmatpush1.msra.mxu0 0.0
  %221 = vmatprep.subr.mxu0 0.0
  %222 = vmatpush1.msra.mxu0 0.0
  %223 = vmatprep.subr.mxu0 0.0
  %224 = vmatpush1.msra.mxu0 0.0
  %225 = vmatprep.subr.mxu0 0.0
  %226 = vmatpush1.msra.mxu0 0.0
  %227 = vmatprep.subr.mxu0 0.0
  %228 = vmatpush1.msra.mxu0 0.0
  %229 = vmatprep.subr.mxu0 0.0
  %230 = vmatpush1.msra.mxu0 0.0
  %231 = vmatprep.subr.mxu0 0.0
  %232 = vmatpush1.msra.mxu0 0.0
  %233 = vmatprep.subr.mxu0 0.0
  %234 = vmatpush1.msra.mxu0 0.0
  %235 = vmatprep.subr.mxu0 0.0
  %236 = vmatpush1.msra.mxu0 0.0
  %237 = vmatprep.subr.mxu0 0.0
  %238 = vmatpush1.msra.mxu0 0.0
  %239 = vmatprep.subr.mxu0 0.0
  %240 = vmatpush1.msra.mxu0 0.0
  %241 = vmatprep.subr.mxu0 0.0
  %242 = vmatpush1.msra.mxu0 0.0
  %243 = vmatprep.subr.mxu0 0.0
  %244 = vmatpush1.msra.mxu0 0.0
  %245 = vmatprep.subr.mxu0 0.0
  %246 = vmatpush1.msra.mxu0 0.0
  %247 = vmatprep.subr.mxu0 0.0
  %248 = vmatpush1.msra.mxu0 0.0
  %249 = vmatprep.subr.mxu0 0.0
  %250 = vmatpush1.msra.mxu0 0.0
  %251 = vmatprep.subr.mxu0 0.0
  %252 = vmatpush1.msra.mxu0 0.0
  %253 = vmatprep.subr.mxu0 0.0
  %254 = vmatpush1.msra.mxu0 0.0
  %255 = vmatprep.subr.mxu0 0.0
  %256 = vmatpush1.msra.mxu0 0.0
  %257 = vmatprep.subr.mxu0 0.0
  %258 = vmatpush1.msra.mxu0 0.0
  %259 = vmatprep.subr.mxu0 0.0
  %260 = vmatpush1.msra.mxu0 0.0
  %261 = vmatprep.mubr.f32.mxu0 0.0
  %262 = vmatmul.mubr.f32.gmra.mrb[0].mxu0 %v195
  %v263 = vpop.f32.mrb[0].mxu0
  %v264 = vadd.f32 %v34, %v263
  %v265 = vpop.f32.mrb[0].mxu0
  %266 = vdwg.mxu0
  %s267 = scalar_lea.vmem [#allocation2], 4
  %268 = vst [vmem:[%s267] sm:$0x3] %v264
  %s269 = scalar_lea.vmem %s0, 6
  %v270 = vld [vmem:[%s269] sm:$0x3]
  %v272 = vsel %vm36, %v270, 0
  %274 = vmatprep.subr.mxu0 0.0
  %275 = vmatpush1.msra.mxu0 %v42
  %276 = vmatprep.subr.mxu0 0.0
  %277 = vmatpush1.msra.mxu0 0.0
  %278 = vmatprep.subr.mxu0 0.0
  %279 = vmatpush1.msra.mxu0 0.0
  %280 = vmatprep.subr.mxu0 0.0
  %281 = vmatpush1.msra.mxu0 0.0
  %282 = vmatprep.subr.mxu0 0.0
  %283 = vmatpush1.msra.mxu0 0.0
  %284 = vmatprep.subr.mxu0 0.0
  %285 = vmatpush1.msra.mxu0 0.0
  %286 = vmatprep.subr.mxu0 0.0
  %287 = vmatpush1.msra.mxu0 0.0
  %288 = vmatprep.subr.mxu0 0.0
  %289 = vmatpush1.msra.mxu0 0.0
  %290 = vmatprep.subr.mxu0 0.0
  %291 = vmatpush1.msra.mxu0 0.0
  %292 = vmatprep.subr.mxu0 0.0
  %293 = vmatpush1.msra.mxu0 0.0
  %294 = vmatprep.subr.mxu0 0.0
  %295 = vmatpush1.msra.mxu0 0.0
  %296 = vmatprep.subr.mxu0 0.0
  %297 = vmatpush1.msra.mxu0 0.0
  %298 = vmatprep.subr.mxu0 0.0
  %299 = vmatpush1.msra.mxu0 0.0
  %300 = vmatprep.subr.mxu0 0.0
  %301 = vmatpush1.msra.mxu0 0.0
  %302 = vmatprep.subr.mxu0 0.0
  %303 = vmatpush1.msra.mxu0 0.0
  %304 = vmatprep.subr.mxu0 0.0
  %305 = vmatpush1.msra.mxu0 0.0
  %306 = vmatprep.subr.mxu0 0.0
  %307 = vmatpush1.msra.mxu0 0.0
  %308 = vmatprep.subr.mxu0 0.0
  %309 = vmatpush1.msra.mxu0 0.0
  %310 = vmatprep.subr.mxu0 0.0
  %311 = vmatpush1.msra.mxu0 0.0
  %312 = vmatprep.subr.mxu0 0.0
  %313 = vmatpush1.msra.mxu0 0.0
  %314 = vmatprep.subr.mxu0 0.0
  %315 = vmatpush1.msra.mxu0 0.0
  %316 = vmatprep.subr.mxu0 0.0
  %317 = vmatpush1.msra.mxu0 0.0
  %318 = vmatprep.subr.mxu0 0.0
  %319 = vmatpush1.msra.mxu0 0.0
  %320 = vmatprep.subr.mxu0 0.0
  %321 = vmatpush1.msra.mxu0 0.0
  %322 = vmatprep.subr.mxu0 0.0
  %323 = vmatpush1.msra.mxu0 0.0
  %324 = vmatprep.subr.mxu0 0.0
  %325 = vmatpush1.msra.mxu0 0.0
  %326 = vmatprep.subr.mxu0 0.0
  %327 = vmatpush1.msra.mxu0 0.0
  %328 = vmatprep.subr.mxu0 0.0
  %329 = vmatpush1.msra.mxu0 0.0
  %330 = vmatprep.subr.mxu0 0.0
  %331 = vmatpush1.msra.mxu0 0.0
  %332 = vmatprep.subr.mxu0 0.0
  %333 = vmatpush1.msra.mxu0 0.0
  %334 = vmatprep.subr.mxu0 0.0
  %335 = vmatpush1.msra.mxu0 0.0
  %336 = vmatprep.subr.mxu0 0.0
  %337 = vmatpush1.msra.mxu0 0.0
  %338 = vmatprep.mubr.f32.mxu0 0.0
  %339 = vmatmul.mubr.f32.gmra.mrb[0].mxu0 %v272
  %v340 = vpop.f32.mrb[0].mxu0
  %v341 = vadd.f32 %v34, %v340
  %v342 = vpop.f32.mrb[0].mxu0
  %343 = vdwg.mxu0
  %s344 = scalar_lea.vmem [#allocation2], 6
  %345 = vst [vmem:[%s344] sm:$0x3] %v341
  %s346 = scalar_lea.vmem %s0, 8
  %v347 = vld [vmem:[%s346] sm:$0x3]
  %v349 = vsel %vm36, %v347, 0
  %351 = vmatprep.subr.mxu0 0.0
  %352 = vmatpush1.msra.mxu0 %v42
  %353 = vmatprep.subr.mxu0 0.0
  %354 = vmatpush1.msra.mxu0 0.0
  %355 = vmatprep.subr.mxu0 0.0
  %356 = vmatpush1.msra.mxu0 0.0
  %357 = vmatprep.subr.mxu0 0.0
  %358 = vmatpush1.msra.mxu0 0.0
  %359 = vmatprep.subr.mxu0 0.0
  %360 = vmatpush1.msra.mxu0 0.0
  %361 = vmatprep.subr.mxu0 0.0
  %362 = vmatpush1.msra.mxu0 0.0
  %363 = vmatprep.subr.mxu0 0.0
  %364 = vmatpush1.msra.mxu0 0.0
  %365 = vmatprep.subr.mxu0 0.0
  %366 = vmatpush1.msra.mxu0 0.0
  %367 = vmatprep.subr.mxu0 0.0
  %368 = vmatpush1.msra.mxu0 0.0
  %369 = vmatprep.subr.mxu0 0.0
  %370 = vmatpush1.msra.mxu0 0.0
  %371 = vmatprep.subr.mxu0 0.0
  %372 = vmatpush1.msra.mxu0 0.0
  %373 = vmatprep.subr.mxu0 0.0
  %374 = vmatpush1.msra.mxu0 0.0
  %375 = vmatprep.subr.mxu0 0.0
  %376 = vmatpush1.msra.mxu0 0.0
  %377 = vmatprep.subr.mxu0 0.0
  %378 = vmatpush1.msra.mxu0 0.0
  %379 = vmatprep.subr.mxu0 0.0
  %380 = vmatpush1.msra.mxu0 0.0
  %381 = vmatprep.subr.mxu0 0.0
  %382 = vmatpush1.msra.mxu0 0.0
  %383 = vmatprep.subr.mxu0 0.0
  %384 = vmatpush1.msra.mxu0 0.0
  %385 = vmatprep.subr.mxu0 0.0
  %386 = vmatpush1.msra.mxu0 0.0
  %387 = vmatprep.subr.mxu0 0.0
  %388 = vmatpush1.msra.mxu0 0.0
  %389 = vmatprep.subr.mxu0 0.0
  %390 = vmatpush1.msra.mxu0 0.0
  %391 = vmatprep.subr.mxu0 0.0
  %392 = vmatpush1.msra.mxu0 0.0
  %393 = vmatprep.subr.mxu0 0.0
  %394 = vmatpush1.msra.mxu0 0.0
  %395 = vmatprep.subr.mxu0 0.0
  %396 = vmatpush1.msra.mxu0 0.0
  %397 = vmatprep.subr.mxu0 0.0
  %398 = vmatpush1.msra.mxu0 0.0
  %399 = vmatprep.subr.mxu0 0.0
  %400 = vmatpush1.msra.mxu0 0.0
  %401 = vmatprep.subr.mxu0 0.0
  %402 = vmatpush1.msra.mxu0 0.0
  %403 = vmatprep.subr.mxu0 0.0
  %404 = vmatpush1.msra.mxu0 0.0
  %405 = vmatprep.subr.mxu0 0.0
  %406 = vmatpush1.msra.mxu0 0.0
  %407 = vmatprep.subr.mxu0 0.0
  %408 = vmatpush1.msra.mxu0 0.0
  %409 = vmatprep.subr.mxu0 0.0
  %410 = vmatpush1.msra.mxu0 0.0
  %411 = vmatprep.subr.mxu0 0.0
  %412 = vmatpush1.msra.mxu0 0.0
  %413 = vmatprep.subr.mxu0 0.0
  %414 = vmatpush1.msra.mxu0 0.0
  %415 = vmatprep.mubr.f32.mxu0 0.0
  %416 = vmatmul.mubr.f32.gmra.mrb[0].mxu0 %v349
  %v417 = vpop.f32.mrb[0].mxu0
  %v418 = vadd.f32 %v34, %v417
  %v419 = vpop.f32.mrb[0].mxu0
  %420 = vdwg.mxu0
  %s421 = scalar_lea.vmem [#allocation2], 8
  %422 = vst [vmem:[%s421] sm:$0x3] %v418
  %s423 = scalar_lea.vmem %s0, 10
  %v424 = vld [vmem:[%s423] sm:$0x3]
  %v426 = vsel %vm36, %v424, 0
  %428 = vmatprep.subr.mxu0 0.0
  %429 = vmatpush1.msra.mxu0 %v42
  %430 = vmatprep.subr.mxu0 0.0
  %431 = vmatpush1.msra.mxu0 0.0
  %432 = vmatprep.subr.mxu0 0.0
  %433 = vmatpush1.msra.mxu0 0.0
  %434 = vmatprep.subr.mxu0 0.0
  %435 = vmatpush1.msra.mxu0 0.0
  %436 = vmatprep.subr.mxu0 0.0
  %437 = vmatpush1.msra.mxu0 0.0
  %438 = vmatprep.subr.mxu0 0.0
  %439 = vmatpush1.msra.mxu0 0.0
  %440 = vmatprep.subr.mxu0 0.0
  %441 = vmatpush1.msra.mxu0 0.0
  %442 = vmatprep.subr.mxu0 0.0
  %443 = vmatpush1.msra.mxu0 0.0
  %444 = vmatprep.subr.mxu0 0.0
  %445 = vmatpush1.msra.mxu0 0.0
  %446 = vmatprep.subr.mxu0 0.0
  %447 = vmatpush1.msra.mxu0 0.0
  %448 = vmatprep.subr.mxu0 0.0
  %449 = vmatpush1.msra.mxu0 0.0
  %450 = vmatprep.subr.mxu0 0.0
  %451 = vmatpush1.msra.mxu0 0.0
  %452 = vmatprep.subr.mxu0 0.0
  %453 = vmatpush1.msra.mxu0 0.0
  %454 = vmatprep.subr.mxu0 0.0
  %455 = vmatpush1.msra.mxu0 0.0
  %456 = vmatprep.subr.mxu0 0.0
  %457 = vmatpush1.msra.mxu0 0.0
  %458 = vmatprep.subr.mxu0 0.0
  %459 = vmatpush1.msra.mxu0 0.0
  %460 = vmatprep.subr.mxu0 0.0
  %461 = vmatpush1.msra.mxu0 0.0
  %462 = vmatprep.subr.mxu0 0.0
  %463 = vmatpush1.msra.mxu0 0.0
  %464 = vmatprep.subr.mxu0 0.0
  %465 = vmatpush1.msra.mxu0 0.0
  %466 = vmatprep.subr.mxu0 0.0
  %467 = vmatpush1.msra.mxu0 0.0
  %468 = vmatprep.subr.mxu0 0.0
  %469 = vmatpush1.msra.mxu0 0.0
  %470 = vmatprep.subr.mxu0 0.0
  %471 = vmatpush1.msra.mxu0 0.0
  %472 = vmatprep.subr.mxu0 0.0
  %473 = vmatpush1.msra.mxu0 0.0
  %474 = vmatprep.subr.mxu0 0.0
  %475 = vmatpush1.msra.mxu0 0.0
  %476 = vmatprep.subr.mxu0 0.0
  %477 = vmatpush1.msra.mxu0 0.0
  %478 = vmatprep.subr.mxu0 0.0
  %479 = vmatpush1.msra.mxu0 0.0
  %480 = vmatprep.subr.mxu0 0.0
  %481 = vmatpush1.msra.mxu0 0.0
  %482 = vmatprep.subr.mxu0 0.0
  %483 = vmatpush1.msra.mxu0 0.0
  %484 = vmatprep.subr.mxu0 0.0
  %485 = vmatpush1.msra.mxu0 0.0
  %486 = vmatprep.subr.mxu0 0.0
  %487 = vmatpush1.msra.mxu0 0.0
  %488 = vmatprep.subr.mxu0 0.0
  %489 = vmatpush1.msra.mxu0 0.0
  %490 = vmatprep.subr.mxu0 0.0
  %491 = vmatpush1.msra.mxu0 0.0
  %492 = vmatprep.mubr.f32.mxu0 0.0
  %493 = vmatmul.mubr.f32.gmra.mrb[0].mxu0 %v426
  %v494 = vpop.f32.mrb[0].mxu0
  %v495 = vadd.f32 %v34, %v494
  %v496 = vpop.f32.mrb[0].mxu0
  %497 = vdwg.mxu0
  %s498 = scalar_lea.vmem [#allocation2], 10
  %499 = vst [vmem:[%s498] sm:$0x3] %v495
  %s500 = scalar_lea.vmem %s0, 12
  %v501 = vld [vmem:[%s500] sm:$0x3]
  %v503 = vsel %vm36, %v501, 0
  %505 = vmatprep.subr.mxu0 0.0
  %506 = vmatpush1.msra.mxu0 %v42
  %507 = vmatprep.subr.mxu0 0.0
  %508 = vmatpush1.msra.mxu0 0.0
  %509 = vmatprep.subr.mxu0 0.0
  %510 = vmatpush1.msra.mxu0 0.0
  %511 = vmatprep.subr.mxu0 0.0
  %512 = vmatpush1.msra.mxu0 0.0
  %513 = vmatprep.subr.mxu0 0.0
  %514 = vmatpush1.msra.mxu0 0.0
  %515 = vmatprep.subr.mxu0 0.0
  %516 = vmatpush1.msra.mxu0 0.0
  %517 = vmatprep.subr.mxu0 0.0
  %518 = vmatpush1.msra.mxu0 0.0
  %519 = vmatprep.subr.mxu0 0.0
  %520 = vmatpush1.msra.mxu0 0.0
  %521 = vmatprep.subr.mxu0 0.0
  %522 = vmatpush1.msra.mxu0 0.0
  %523 = vmatprep.subr.mxu0 0.0
  %524 = vmatpush1.msra.mxu0 0.0
  %525 = vmatprep.subr.mxu0 0.0
  %526 = vmatpush1.msra.mxu0 0.0
  %527 = vmatprep.subr.mxu0 0.0
  %528 = vmatpush1.msra.mxu0 0.0
  %529 = vmatprep.subr.mxu0 0.0
  %530 = vmatpush1.msra.mxu0 0.0
  %531 = vmatprep.subr.mxu0 0.0
  %532 = vmatpush1.msra.mxu0 0.0
  %533 = vmatprep.subr.mxu0 0.0
  %534 = vmatpush1.msra.mxu0 0.0
  %535 = vmatprep.subr.mxu0 0.0
  %536 = vmatpush1.msra.mxu0 0.0
  %537 = vmatprep.subr.mxu0 0.0
  %538 = vmatpush1.msra.mxu0 0.0
  %539 = vmatprep.subr.mxu0 0.0
  %540 = vmatpush1.msra.mxu0 0.0
  %541 = vmatprep.subr.mxu0 0.0
  %542 = vmatpush1.msra.mxu0 0.0
  %543 = vmatprep.subr.mxu0 0.0
  %544 = vmatpush1.msra.mxu0 0.0
  %545 = vmatprep.subr.mxu0 0.0
  %546 = vmatpush1.msra.mxu0 0.0
  %547 = vmatprep.subr.mxu0 0.0
  %548 = vmatpush1.msra.mxu0 0.0
  %549 = vmatprep.subr.mxu0 0.0
  %550 = vmatpush1.msra.mxu0 0.0
  %551 = vmatprep.subr.mxu0 0.0
  %552 = vmatpush1.msra.mxu0 0.0
  %553 = vmatprep.subr.mxu0 0.0
  %554 = vmatpush1.msra.mxu0 0.0
  %555 = vmatprep.subr.mxu0 0.0
  %556 = vmatpush1.msra.mxu0 0.0
  %557 = vmatprep.subr.mxu0 0.0
  %558 = vmatpush1.msra.mxu0 0.0
  %559 = vmatprep.subr.mxu0 0.0
  %560 = vmatpush1.msra.mxu0 0.0
  %561 = vmatprep.subr.mxu0 0.0
  %562 = vmatpush1.msra.mxu0 0.0
  %563 = vmatprep.subr.mxu0 0.0
  %564 = vmatpush1.msra.mxu0 0.0
  %565 = vmatprep.subr.mxu0 0.0
  %566 = vmatpush1.msra.mxu0 0.0
  %567 = vmatprep.subr.mxu0 0.0
  %568 = vmatpush1.msra.mxu0 0.0
  %569 = vmatprep.mubr.f32.mxu0 0.0
  %570 = vmatmul.mubr.f32.gmra.mrb[0].mxu0 %v503
  %v571 = vpop.f32.mrb[0].mxu0
  %v572 = vadd.f32 %v34, %v571
  %v573 = vpop.f32.mrb[0].mxu0
  %574 = vdwg.mxu0
  %s575 = scalar_lea.vmem [#allocation2], 12
  %576 = vst [vmem:[%s575] sm:$0x3] %v572
  %s577 = scalar_lea.vmem %s0, 14
  %v578 = vld [vmem:[%s577] sm:$0x3]
  %v580 = vsel %vm36, %v578, 0
  %582 = vmatprep.subr.mxu0 0.0
  %583 = vmatpush1.msra.mxu0 %v42
  %584 = vmatprep.subr.mxu0 0.0
  %585 = vmatpush1.msra.mxu0 0.0
  %586 = vmatprep.subr.mxu0 0.0
  %587 = vmatpush1.msra.mxu0 0.0
  %588 = vmatprep.subr.mxu0 0.0
  %589 = vmatpush1.msra.mxu0 0.0
  %590 = vmatprep.subr.mxu0 0.0
  %591 = vmatpush1.msra.mxu0 0.0
  %592 = vmatprep.subr.mxu0 0.0
  %593 = vmatpush1.msra.mxu0 0.0
  %594 = vmatprep.subr.mxu0 0.0
  %595 = vmatpush1.msra.mxu0 0.0
  %596 = vmatprep.subr.mxu0 0.0
  %597 = vmatpush1.msra.mxu0 0.0
  %598 = vmatprep.subr.mxu0 0.0
  %599 = vmatpush1.msra.mxu0 0.0
  %600 = vmatprep.subr.mxu0 0.0
  %601 = vmatpush1.msra.mxu0 0.0
  %602 = vmatprep.subr.mxu0 0.0
  %603 = vmatpush1.msra.mxu0 0.0
  %604 = vmatprep.subr.mxu0 0.0
  %605 = vmatpush1.msra.mxu0 0.0
  %606 = vmatprep.subr.mxu0 0.0
  %607 = vmatpush1.msra.mxu0 0.0
  %608 = vmatprep.subr.mxu0 0.0
  %609 = vmatpush1.msra.mxu0 0.0
  %610 = vmatprep.subr.mxu0 0.0
  %611 = vmatpush1.msra.mxu0 0.0
  %612 = vmatprep.subr.mxu0 0.0
  %613 = vmatpush1.msra.mxu0 0.0
  %614 = vmatprep.subr.mxu0 0.0
  %615 = vmatpush1.msra.mxu0 0.0
  %616 = vmatprep.subr.mxu0 0.0
  %617 = vmatpush1.msra.mxu0 0.0
  %618 = vmatprep.subr.mxu0 0.0
  %619 = vmatpush1.msra.mxu0 0.0
  %620 = vmatprep.subr.mxu0 0.0
  %621 = vmatpush1.msra.mxu0 0.0
  %622 = vmatprep.subr.mxu0 0.0
  %623 = vmatpush1.msra.mxu0 0.0
  %624 = vmatprep.subr.mxu0 0.0
  %625 = vmatpush1.msra.mxu0 0.0
  %626 = vmatprep.subr.mxu0 0.0
  %627 = vmatpush1.msra.mxu0 0.0
  %628 = vmatprep.subr.mxu0 0.0
  %629 = vmatpush1.msra.mxu0 0.0
  %630 = vmatprep.subr.mxu0 0.0
  %631 = vmatpush1.msra.mxu0 0.0
  %632 = vmatprep.subr.mxu0 0.0
  %633 = vmatpush1.msra.mxu0 0.0
  %634 = vmatprep.subr.mxu0 0.0
  %635 = vmatpush1.msra.mxu0 0.0
  %636 = vmatprep.subr.mxu0 0.0
  %637 = vmatpush1.msra.mxu0 0.0
  %638 = vmatprep.subr.mxu0 0.0
  %639 = vmatpush1.msra.mxu0 0.0
  %640 = vmatprep.subr.mxu0 0.0
  %641 = vmatpush1.msra.mxu0 0.0
  %642 = vmatprep.subr.mxu0 0.0
  %643 = vmatpush1.msra.mxu0 0.0
  %644 = vmatprep.subr.mxu0 0.0
  %645 = vmatpush1.msra.mxu0 0.0
  %646 = vmatprep.mubr.f32.mxu0 0.0
  %647 = vmatmul.mubr.f32.gmra.mrb[0].mxu0 %v580
  %v648 = vpop.f32.mrb[0].mxu0
  %v649 = vadd.f32 %v34, %v648
  %v650 = vpop.f32.mrb[0].mxu0
  %651 = vdwg.mxu0
  %s652 = scalar_lea.vmem [#allocation2], 14
  %653 = vst [vmem:[%s652] sm:$0x3] %v649
  %v654 = vld [vmem:[%s2] sm:$0xf]
  %v655 = vld [vmem:[%s2 + $0x4] sm:$0xf]
  %v656 = vld [vmem:[%s2 + $0x8] sm:$0xf]
  %v657 = vld [vmem:[%s2 + $0xc] sm:$0xf]
  %v658 = vld [vmem:[%s3] sm:$0xf]
  %v659 = vld [vmem:[%s3 + $0x4] sm:$0xf]
  %v660 = vld [vmem:[%s3 + $0x8] sm:$0xf]
  %v661 = vld [vmem:[%s3 + $0xc] sm:$0xf]
  %s662 = scalar_lea.vmem %s3, 16
  %v663 = vld [vmem:[%s662] sm:$0xf]
  %v664 = vld [vmem:[%s662 + $0x4] sm:$0xf]
  %v665 = vld [vmem:[%s662 + $0x8] sm:$0xf]
  %v666 = vld [vmem:[%s662 + $0xc] sm:$0xf]
  %s667 = scalar_lea.vmem %s4, 1
  %v668 = vld [vmem:[%s667] sm:$0x1]
  %v669 = vlaneseq
  %v670 = vand.u32 %v669, 127
  %vm671 = vcmp.ge.s32.totalorder %v670, 64
  %vm672 = vcmp.lt.s32.totalorder %v670, 96
  %vm673 = vmand %vm671, %vm672
  %v674 = vsel %vm673, 1.0, 0.5
  %v675 = vsel %vm673, 0.0, 0.5
  %v680 = vunpack.c.l.b16 %v663
  %v681 = vunpack.c.l.b16 %v664
  %v682 = vunpack.c.l.b16 %v665
  %v683 = vunpack.c.l.b16 %v666
  %v684 = vpack.c.b16 %v681, %v680
  %v685 = vpack.c.b16 %v683, %v682
  %vm688 = vcmask 261120
  %v690 = vsel %vm688, 0, 0
  %692 = vmatprep.subr.bf16.mxu0 0
  %693 = vmatpush1.bf16.msra.mxu0 %v684
  %694 = vmatprep.subr.bf16.mxu0 0
  %695 = vmatpush1.bf16.msra.mxu0 %v685
  %696 = vmatprep.subr.bf16.mxu0 0
  %697 = vmatpush1.bf16.msra.mxu0 0
  %698 = vmatprep.subr.bf16.mxu0 0
  %699 = vmatpush1.bf16.msra.mxu0 0
  %700 = vmatprep.subr.bf16.mxu0 0
  %701 = vmatpush1.bf16.msra.mxu0 0
  %702 = vmatprep.subr.bf16.mxu0 0
  %703 = vmatpush1.bf16.msra.mxu0 0
  %704 = vmatprep.subr.bf16.mxu0 0
  %705 = vmatpush1.bf16.msra.mxu0 0
  %706 = vmatprep.subr.bf16.mxu0 0
  %707 = vmatpush1.bf16.msra.mxu0 0
  %708 = vmatprep.subr.bf16.mxu0 0
  %709 = vmatpush1.bf16.msra.mxu0 0
  %710 = vmatprep.subr.bf16.mxu0 0
  %711 = vmatpush1.bf16.msra.mxu0 0
  %712 = vmatprep.subr.bf16.mxu0 0
  %713 = vmatpush1.bf16.msra.mxu0 0
  %714 = vmatprep.subr.bf16.mxu0 0
  %715 = vmatpush1.bf16.msra.mxu0 0
  %716 = vmatprep.subr.bf16.mxu0 0
  %717 = vmatpush1.bf16.msra.mxu0 0
  %718 = vmatprep.subr.bf16.mxu0 0
  %719 = vmatpush1.bf16.msra.mxu0 0
  %720 = vmatprep.subr.bf16.mxu0 0
  %721 = vmatpush1.bf16.msra.mxu0 0
  %722 = vmatprep.subr.bf16.mxu0 0
  %723 = vmatpush1.bf16.msra.mxu0 0
  %724 = vmatprep.mubr.bf16.mxu0 0
  %725 = vmatmul.mubr.bf16.gmra.mrb[0].mxu0 %v690
  %v726 = vpop.f32.mrb[0].mxu0
  %v727 = vadd.f32 0.0, %v726
  %v728 = vpop.f32.mrb[0].mxu0
  %v729 = vpop.f32.mrb[0].mxu0
  %v730 = vpop.f32.mrb[0].mxu0
  %731 = vdwg.mxu0
  %v732 = vld [vmem:[#allocation2] sm:$0x3]
  %v737 = vunpack.c.l.b16 %v654
  %v738 = vunpack.c.l.b16 %v655
  %v739 = vunpack.c.l.b16 %v656
  %v740 = vunpack.c.l.b16 %v657
  %v741 = vpack.c.b16 %v738, %v737
  %v742 = vpack.c.b16 %v740, %v739
  %745 = vmatprep.subr.bf16.mxu0 0
  %746 = vmatpush1.bf16.msra.mxu0 %v741
  %747 = vmatprep.subr.bf16.mxu0 0
  %748 = vmatpush1.bf16.msra.mxu0 %v742
  %749 = vmatprep.subr.bf16.mxu0 0
  %750 = vmatpush1.bf16.msra.mxu0 0
  %751 = vmatprep.subr.bf16.mxu0 0
  %752 = vmatpush1.bf16.msra.mxu0 0
  %753 = vmatprep.subr.bf16.mxu0 0
  %754 = vmatpush1.bf16.msra.mxu0 0
  %755 = vmatprep.subr.bf16.mxu0 0
  %756 = vmatpush1.bf16.msra.mxu0 0
  %757 = vmatprep.subr.bf16.mxu0 0
  %758 = vmatpush1.bf16.msra.mxu0 0
  %759 = vmatprep.subr.bf16.mxu0 0
  %760 = vmatpush1.bf16.msra.mxu0 0
  %761 = vmatprep.subr.bf16.mxu0 0
  %762 = vmatpush1.bf16.msra.mxu0 0
  %763 = vmatprep.subr.bf16.mxu0 0
  %764 = vmatpush1.bf16.msra.mxu0 0
  %765 = vmatprep.subr.bf16.mxu0 0
  %766 = vmatpush1.bf16.msra.mxu0 0
  %767 = vmatprep.subr.bf16.mxu0 0
  %768 = vmatpush1.bf16.msra.mxu0 0
  %769 = vmatprep.subr.bf16.mxu0 0
  %770 = vmatpush1.bf16.msra.mxu0 0
  %771 = vmatprep.subr.bf16.mxu0 0
  %772 = vmatpush1.bf16.msra.mxu0 0
  %773 = vmatprep.subr.bf16.mxu0 0
  %774 = vmatpush1.bf16.msra.mxu0 0
  %775 = vmatprep.subr.bf16.mxu0 0
  %776 = vmatpush1.bf16.msra.mxu0 0
  %777 = vmatprep.mubr.bf16.mxu0 0
  %778 = vmatmul.mubr.bf16.gmra.mrb[0].mxu0 %v690
  %v779 = vpop.f32.mrb[0].mxu0
  %v780 = vadd.f32 0.0, %v779
  %v781 = vpop.f32.mrb[0].mxu0
  %v782 = vpop.f32.mrb[0].mxu0
  %v783 = vpop.f32.mrb[0].mxu0
  %784 = vdwg.mxu0
  %v785 = vadd.f32 %v732, %v780
  %v786 = vmul.f32 %v785, %v674
  %v787 = vtanh.pop %v786
  %v788 = vmul.f32 %v787, %v674
  %v789 = vadd.f32 %v788, %v675
  %v790 = vmul.f32 %v789, 0.0
  %792 = vrot.lane.b32.xlu0 %v789, 64
  %v793 = vpop.permute.xlu0 %792
  %v795 = vmul.f32 %v789, %v793
  %797 = vrot.lane.b32.xlu0 %v795, 32
  %v798 = vpop.permute.xlu0 %797
  %v800 = vadd.f32 %v790, %v798
  %v801 = vtanh.pop %v800
  %803 = vrot.lane.b32.xlu0 %v801, 64
  %v804 = vpop.permute.xlu0 %803
  %v806 = vmul.f32 %v789, %v804
  %v807 = vpack.c.bf16 %v806, %v806
  %809 = vrot.lane.b32.xlu0 %v807, 32
  %v810 = vpop.permute.xlu0 %809
  %v815 = vunpack.c.l.b16 %v658
  %v816 = vunpack.c.l.b16 %v659
  %v817 = vunpack.c.l.b16 %v660
  %v818 = vunpack.c.l.b16 %v661
  %v819 = vpack.c.b16 %v816, %v815
  %v820 = vpack.c.b16 %v818, %v817
  %v824 = vsel %vm688, %v810, 0
  %826 = vmatprep.subr.bf16.mxu0 0
  %827 = vmatpush1.bf16.msra.mxu0 %v819
  %828 = vmatprep.subr.bf16.mxu0 0
  %829 = vmatpush1.bf16.msra.mxu0 %v820
  %830 = vmatprep.subr.bf16.mxu0 0
  %831 = vmatpush1.bf16.msra.mxu0 0
  %832 = vmatprep.subr.bf16.mxu0 0
  %833 = vmatpush1.bf16.msra.mxu0 0
  %834 = vmatprep.subr.bf16.mxu0 0
  %835 = vmatpush1.bf16.msra.mxu0 0
  %836 = vmatprep.subr.bf16.mxu0 0
  %837 = vmatpush1.bf16.msra.mxu0 0
  %838 = vmatprep.subr.bf16.mxu0 0
  %839 = vmatpush1.bf16.msra.mxu0 0
  %840 = vmatprep.subr.bf16.mxu0 0
  %841 = vmatpush1.bf16.msra.mxu0 0
  %842 = vmatprep.subr.bf16.mxu0 0
  %843 = vmatpush1.bf16.msra.mxu0 0
  %844 = vmatprep.subr.bf16.mxu0 0
  %845 = vmatpush1.bf16.msra.mxu0 0
  %846 = vmatprep.subr.bf16.mxu0 0
  %847 = vmatpush1.bf16.msra.mxu0 0
  %848 = vmatprep.subr.bf16.mxu0 0
  %849 = vmatpush1.bf16.msra.mxu0 0
  %850 = vmatprep.subr.bf16.mxu0 0
  %851 = vmatpush1.bf16.msra.mxu0 0
  %852 = vmatprep.subr.bf16.mxu0 0
  %853 = vmatpush1.bf16.msra.mxu0 0
  %854 = vmatprep.subr.bf16.mxu0 0
  %855 = vmatpush1.bf16.msra.mxu0 0
  %856 = vmatprep.subr.bf16.mxu0 0
  %857 = vmatpush1.bf16.msra.mxu0 0
  %858 = vmatprep.mubr.bf16.mxu0 0
  %859 = vmatmul.mubr.bf16.gmra.mrb[0].mxu0 %v824
  %v860 = vpop.f32.mrb[0].mxu0
  %v861 = vadd.f32 %v727, %v860
  %v862 = vpop.f32.mrb[0].mxu0
  %v863 = vpop.f32.mrb[0].mxu0
  %v864 = vpop.f32.mrb[0].mxu0
  %865 = vdwg.mxu0
  %v867 = vlaneseq
  %v868 = vshrl.u32 %v867, 7
  %v869 = vsub.s32 0, %v868
  %v870 = vrot.slane %v668, %v869
  %v872 = vadd.f32 %v861, %v870
  %v873 = vmul.f32 %v872, %v674
  %v874 = vtanh.pop %v873
  %v875 = vmul.f32 %v874, %v674
  %v876 = vadd.f32 %v875, %v675
  %v877 = vmul.f32 %v876, 0.0
  %879 = vrot.lane.b32.xlu0 %v876, 64
  %v880 = vpop.permute.xlu0 %879
  %v882 = vmul.f32 %v876, %v880
  %884 = vrot.lane.b32.xlu0 %v882, 32
  %v885 = vpop.permute.xlu0 %884
  %v887 = vadd.f32 %v877, %v885
  %v888 = vtanh.pop %v887
  %890 = vrot.lane.b32.xlu0 %v888, 64
  %v891 = vpop.permute.xlu0 %890
  %v893 = vmul.f32 %v876, %v891
  %v894 = vpack.c.bf16 %v893, %v893
  %896 = vrot.lane.b32.xlu0 %v894, 32
  %v897 = vpop.permute.xlu0 %896
  %v899 = vsel %vm688, %v897, 0
  %901 = vmatprep.subr.bf16.mxu0 0
  %902 = vmatpush1.bf16.msra.mxu0 %v684
  %903 = vmatprep.subr.bf16.mxu0 0
  %904 = vmatpush1.bf16.msra.mxu0 %v685
  %905 = vmatprep.subr.bf16.mxu0 0
  %906 = vmatpush1.bf16.msra.mxu0 0
  %907 = vmatprep.subr.bf16.mxu0 0
  %908 = vmatpush1.bf16.msra.mxu0 0
  %909 = vmatprep.subr.bf16.mxu0 0
  %910 = vmatpush1.bf16.msra.mxu0 0
  %911 = vmatprep.subr.bf16.mxu0 0
  %912 = vmatpush1.bf16.msra.mxu0 0
  %913 = vmatprep.subr.bf16.mxu0 0
  %914 = vmatpush1.bf16.msra.mxu0 0
  %915 = vmatprep.subr.bf16.mxu0 0
  %916 = vmatpush1.bf16.msra.mxu0 0
  %917 = vmatprep.subr.bf16.mxu0 0
  %918 = vmatpush1.bf16.msra.mxu0 0
  %919 = vmatprep.subr.bf16.mxu0 0
  %920 = vmatpush1.bf16.msra.mxu0 0
  %921 = vmatprep.subr.bf16.mxu0 0
  %922 = vmatpush1.bf16.msra.mxu0 0
  %923 = vmatprep.subr.bf16.mxu0 0
  %924 = vmatpush1.bf16.msra.mxu0 0
  %925 = vmatprep.subr.bf16.mxu0 0
  %926 = vmatpush1.bf16.msra.mxu0 0
  %927 = vmatprep.subr.bf16.mxu0 0
  %928 = vmatpush1.bf16.msra.mxu0 0
  %929 = vmatprep.subr.bf16.mxu0 0
  %930 = vmatpush1.bf16.msra.mxu0 0
  %931 = vmatprep.subr.bf16.mxu0 0
  %932 = vmatpush1.bf16.msra.mxu0 0
  %933 = vmatprep.mubr.bf16.mxu0 0
  %934 = vmatmul.mubr.bf16.gmra.mrb[0].mxu0 %v899
  %v935 = vpop.f32.mrb[0].mxu0
  %v936 = vadd.f32 0.0, %v935
  %v937 = vpop.f32.mrb[0].mxu0
  %v938 = vpop.f32.mrb[0].mxu0
  %v939 = vpop.f32.mrb[0].mxu0
  %940 = vdwg.mxu0
  %v941 = vld [vmem:[%s190] sm:$0x3]
  %942 = vmatprep.subr.bf16.mxu0 0
  %943 = vmatpush1.bf16.msra.mxu0 %v741
  %944 = vmatprep.subr.bf16.mxu0 0
  %945 = vmatpush1.bf16.msra.mxu0 %v742
  %946 = vmatprep.subr.bf16.mxu0 0
  %947 = vmatpush1.bf16.msra.mxu0 0
  %948 = vmatprep.subr.bf16.mxu0 0
  %949 = vmatpush1.bf16.msra.mxu0 0
  %950 = vmatprep.subr.bf16.mxu0 0
  %951 = vmatpush1.bf16.msra.mxu0 0
  %952 = vmatprep.subr.bf16.mxu0 0
  %953 = vmatpush1.bf16.msra.mxu0 0
  %954 = vmatprep.subr.bf16.mxu0 0
  %955 = vmatpush1.bf16.msra.mxu0 0
  %956 = vmatprep.subr.bf16.mxu0 0
  %957 = vmatpush1.bf16.msra.mxu0 0
  %958 = vmatprep.subr.bf16.mxu0 0
  %959 = vmatpush1.bf16.msra.mxu0 0
  %960 = vmatprep.subr.bf16.mxu0 0
  %961 = vmatpush1.bf16.msra.mxu0 0
  %962 = vmatprep.subr.bf16.mxu0 0
  %963 = vmatpush1.bf16.msra.mxu0 0
  %964 = vmatprep.subr.bf16.mxu0 0
  %965 = vmatpush1.bf16.msra.mxu0 0
  %966 = vmatprep.subr.bf16.mxu0 0
  %967 = vmatpush1.bf16.msra.mxu0 0
  %968 = vmatprep.subr.bf16.mxu0 0
  %969 = vmatpush1.bf16.msra.mxu0 0
  %970 = vmatprep.subr.bf16.mxu0 0
  %971 = vmatpush1.bf16.msra.mxu0 0
  %972 = vmatprep.subr.bf16.mxu0 0
  %973 = vmatpush1.bf16.msra.mxu0 0
  %974 = vmatprep.mubr.bf16.mxu0 0
  %975 = vmatmul.mubr.bf16.gmra.mrb[0].mxu0 %v824
  %v976 = vpop.f32.mrb[0].mxu0
  %v977 = vadd.f32 0.0, %v976
  %v978 = vpop.f32.mrb[0].mxu0
  %v979 = vpop.f32.mrb[0].mxu0
  %v980 = vpop.f32.mrb[0].mxu0
  %981 = vdwg.mxu0
  %v982 = vadd.f32 %v941, %v977
  %v983 = vmul.f32 %v982, %v674
  %v984 = vtanh.pop %v983
  %v985 = vmul.f32 %v984, %v674
  %v986 = vadd.f32 %v985, %v675
  %v987 = vmul.f32 %v986, %v800
  %989 = vrot.lane.b32.xlu0 %v986, 64
  %v990 = vpop.permute.xlu0 %989
  %v992 = vmul.f32 %v986, %v990
  %994 = vrot.lane.b32.xlu0 %v992, 32
  %v995 = vpop.permute.xlu0 %994
  %v997 = vadd.f32 %v987, %v995
  %v998 = vtanh.pop %v997
  %1000 = vrot.lane.b32.xlu0 %v998, 64
  %v1001 = vpop.permute.xlu0 %1000
  %v1003 = vmul.f32 %v986, %v1001
  %v1004 = vpack.c.bf16 %v1003, %v1003
  %1006 = vrot.lane.b32.xlu0 %v1004, 32
  %v1007 = vpop.permute.xlu0 %1006
  %v1009 = vsel %vm688, %v1007, 0
  %1011 = vmatprep.subr.bf16.mxu0 0
  %1012 = vmatpush1.bf16.msra.mxu0 %v819
  %1013 = vmatprep.subr.bf16.mxu0 0
  %1014 = vmatpush1.bf16.msra.mxu0 %v820
  %1015 = vmatprep.subr.bf16.mxu0 0
  %1016 = vmatpush1.bf16.msra.mxu0 0
  %1017 = vmatprep.subr.bf16.mxu0 0
  %1018 = vmatpush1.bf16.msra.mxu0 0
  %1019 = vmatprep.subr.bf16.mxu0 0
  %1020 = vmatpush1.bf16.msra.mxu0 0
  %1021 = vmatprep.subr.bf16.mxu0 0
  %1022 = vmatpush1.bf16.msra.mxu0 0
  %1023 = vmatprep.subr.bf16.mxu0 0
  %1024 = vmatpush1.bf16.msra.mxu0 0
  %1025 = vmatprep.subr.bf16.mxu0 0
  %1026 = vmatpush1.bf16.msra.mxu0 0
  %1027 = vmatprep.subr.bf16.mxu0 0
  %1028 = vmatpush1.bf16.msra.mxu0 0
  %1029 = vmatprep.subr.bf16.mxu0 0
  %1030 = vmatpush1.bf16.msra.mxu0 0
  %1031 = vmatprep.subr.bf16.mxu0 0
  %1032 = vmatpush1.bf16.msra.mxu0 0
  %1033 = vmatprep.subr.bf16.mxu0 0
  %1034 = vmatpush1.bf16.msra.mxu0 0
  %1035 = vmatprep.subr.bf16.mxu0 0
  %1036 = vmatpush1.bf16.msra.mxu0 0
  %1037 = vmatprep.subr.bf16.mxu0 0
  %1038 = vmatpush1.bf16.msra.mxu0 0
  %1039 = vmatprep.subr.bf16.mxu0 0
  %1040 = vmatpush1.bf16.msra.mxu0 0
  %1041 = vmatprep.subr.bf16.mxu0 0
  %1042 = vmatpush1.bf16.msra.mxu0 0
  %1043 = vmatprep.mubr.bf16.mxu0 0
  %1044 = vmatmul.mubr.bf16.gmra.mrb[0].mxu0 %v1009
  %v1045 = vpop.f32.mrb[0].mxu0
  %v1046 = vadd.f32 %v936, %v1045
  %v1047 = vpop.f32.mrb[0].mxu0
  %v1048 = vpop.f32.mrb[0].mxu0
  %v1049 = vpop.f32.mrb[0].mxu0
  %1050 = vdwg.mxu0
  %v1051 = vadd.f32 %v1046, %v870
  %v1052 = vmul.f32 %v1051, %v674
  %v1053 = vtanh.pop %v1052
  %v1054 = vmul.f32 %v1053, %v674
  %v1055 = vadd.f32 %v1054, %v675
  %v1056 = vmul.f32 %v1055, %v887
  %1058 = vrot.lane.b32.xlu0 %v1055, 64
  %v1059 = vpop.permute.xlu0 %1058
  %v1061 = vmul.f32 %v1055, %v1059
  %1063 = vrot.lane.b32.xlu0 %v1061, 32
  %v1064 = vpop.permute.xlu0 %1063
  %v1066 = vadd.f32 %v1056, %v1064
  %v1067 = vtanh.pop %v1066
  %1069 = vrot.lane.b32.xlu0 %v1067, 64
  %v1070 = vpop.permute.xlu0 %1069
  %v1072 = vmul.f32 %v1055, %v1070
  %v1073 = vpack.c.bf16 %v1072, %v1072
  %1075 = vrot.lane.b32.xlu0 %v1073, 32
  %v1076 = vpop.permute.xlu0 %1075
  %v1078 = vsel %vm688, %v1076, 0
  %1080 = vmatprep.subr.bf16.mxu0 0
  %1081 = vmatpush1.bf16.msra.mxu0 %v684
  %1082 = vmatprep.subr.bf16.mxu0 0
  %1083 = vmatpush1.bf16.msra.mxu0 %v685
  %1084 = vmatprep.subr.bf16.mxu0 0
  %1085 = vmatpush1.bf16.msra.mxu0 0
  %1086 = vmatprep.subr.bf16.mxu0 0
  %1087 = vmatpush1.bf16.msra.mxu0 0
  %1088 = vmatprep.subr.bf16.mxu0 0
  %1089 = vmatpush1.bf16.msra.mxu0 0
  %1090 = vmatprep.subr.bf16.mxu0 0
  %1091 = vmatpush1.bf16.msra.mxu0 0
  %1092 = vmatprep.subr.bf16.mxu0 0
  %1093 = vmatpush1.bf16.msra.mxu0 0
  %1094 = vmatprep.subr.bf16.mxu0 0
  %1095 = vmatpush1.bf16.msra.mxu0 0
  %1096 = vmatprep.subr.bf16.mxu0 0
  %1097 = vmatpush1.bf16.msra.mxu0 0
  %1098 = vmatprep.subr.bf16.mxu0 0
  %1099 = vmatpush1.bf16.msra.mxu0 0
  %1100 = vmatprep.subr.bf16.mxu0 0
  %1101 = vmatpush1.bf16.msra.mxu0 0
  %1102 = vmatprep.subr.bf16.mxu0 0
  %1103 = vmatpush1.bf16.msra.mxu0 0
  %1104 = vmatprep.subr.bf16.mxu0 0
  %1105 = vmatpush1.bf16.msra.mxu0 0
  %1106 = vmatprep.subr.bf16.mxu0 0
  %1107 = vmatpush1.bf16.msra.mxu0 0
  %1108 = vmatprep.subr.bf16.mxu0 0
  %1109 = vmatpush1.bf16.msra.mxu0 0
  %1110 = vmatprep.subr.bf16.mxu0 0
  %1111 = vmatpush1.bf16.msra.mxu0 0
  %1112 = vmatprep.mubr.bf16.mxu0 0
  %1113 = vmatmul.mubr.bf16.gmra.mrb[0].mxu0 %v1078
  %v1114 = vpop.f32.mrb[0].mxu0
  %v1115 = vadd.f32 0.0, %v1114
  %v1116 = vpop.f32.mrb[0].mxu0
  %v1117 = vpop.f32.mrb[0].mxu0
  %v1118 = vpop.f32.mrb[0].mxu0
  %1119 = vdwg.mxu0
  %v1120 = vld [vmem:[%s267] sm:$0x3]
  %1121 = vmatprep.subr.bf16.mxu0 0
  %1122 = vmatpush1.bf16.msra.mxu0 %v741
  %1123 = vmatprep.subr.bf16.mxu0 0
  %1124 = vmatpush1.bf16.msra.mxu0 %v742
  %1125 = vmatprep.subr.bf16.mxu0 0
  %1126 = vmatpush1.bf16.msra.mxu0 0
  %1127 = vmatprep.subr.bf16.mxu0 0
  %1128 = vmatpush1.bf16.msra.mxu0 0
  %1129 = vmatprep.subr.bf16.mxu0 0
  %1130 = vmatpush1.bf16.msra.mxu0 0
  %1131 = vmatprep.subr.bf16.mxu0 0
  %1132 = vmatpush1.bf16.msra.mxu0 0
  %1133 = vmatprep.subr.bf16.mxu0 0
  %1134 = vmatpush1.bf16.msra.mxu0 0
  %1135 = vmatprep.subr.bf16.mxu0 0
  %1136 = vmatpush1.bf16.msra.mxu0 0
  %1137 = vmatprep.subr.bf16.mxu0 0
  %1138 = vmatpush1.bf16.msra.mxu0 0
  %1139 = vmatprep.subr.bf16.mxu0 0
  %1140 = vmatpush1.bf16.msra.mxu0 0
  %1141 = vmatprep.subr.bf16.mxu0 0
  %1142 = vmatpush1.bf16.msra.mxu0 0
  %1143 = vmatprep.subr.bf16.mxu0 0
  %1144 = vmatpush1.bf16.msra.mxu0 0
  %1145 = vmatprep.subr.bf16.mxu0 0
  %1146 = vmatpush1.bf16.msra.mxu0 0
  %1147 = vmatprep.subr.bf16.mxu0 0
  %1148 = vmatpush1.bf16.msra.mxu0 0
  %1149 = vmatprep.subr.bf16.mxu0 0
  %1150 = vmatpush1.bf16.msra.mxu0 0
  %1151 = vmatprep.subr.bf16.mxu0 0
  %1152 = vmatpush1.bf16.msra.mxu0 0
  %1153 = vmatprep.mubr.bf16.mxu0 0
  %1154 = vmatmul.mubr.bf16.gmra.mrb[0].mxu0 %v1009
  %v1155 = vpop.f32.mrb[0].mxu0
  %v1156 = vadd.f32 0.0, %v1155
  %v1157 = vpop.f32.mrb[0].mxu0
  %v1158 = vpop.f32.mrb[0].mxu0
  %v1159 = vpop.f32.mrb[0].mxu0
  %1160 = vdwg.mxu0
  %v1161 = vadd.f32 %v1120, %v1156
  %v1162 = vmul.f32 %v1161, %v674
  %v1163 = vtanh.pop %v1162
  %v1164 = vmul.f32 %v1163, %v674
  %v1165 = vadd.f32 %v1164, %v675
  %v1166 = vmul.f32 %v1165, %v997
  %1168 = vrot.lane.b32.xlu0 %v1165, 64
  %v1169 = vpop.permute.xlu0 %1168
  %v1171 = vmul.f32 %v1165, %v1169
  %1173 = vrot.lane.b32.xlu0 %v1171, 32
  %v1174 = vpop.permute.xlu0 %1173
  %v1176 = vadd.f32 %v1166, %v1174
  %v1177 = vtanh.pop %v1176
  %1179 = vrot.lane.b32.xlu0 %v1177, 64
  %v1180 = vpop.permute.xlu0 %1179
  %v1182 = vmul.f32 %v1165, %v1180
  %v1183 = vpack.c.bf16 %v1182, %v1182
  %1185 = vrot.lane.b32.xlu0 %v1183, 32
  %v1186 = vpop.permute.xlu0 %1185
  %v1188 = vsel %vm688, %v1186, 0
  %1190 = vmatprep.subr.bf16.mxu0 0
  %1191 = vmatpush1.bf16.msra.mxu0 %v819
  %1192 = vmatprep.subr.bf16.mxu0 0
  %1193 = vmatpush1.bf16.msra.mxu0 %v820
  %1194 = vmatprep.subr.bf16.mxu0 0
  %1195 = vmatpush1.bf16.msra.mxu0 0
  %1196 = vmatprep.subr.bf16.mxu0 0
  %1197 = vmatpush1.bf16.msra.mxu0 0
  %1198 = vmatprep.subr.bf16.mxu0 0
  %1199 = vmatpush1.bf16.msra.mxu0 0
  %1200 = vmatprep.subr.bf16.mxu0 0
  %1201 = vmatpush1.bf16.msra.mxu0 0
  %1202 = vmatprep.subr.bf16.mxu0 0
  %1203 = vmatpush1.bf16.msra.mxu0 0
  %1204 = vmatprep.subr.bf16.mxu0 0
  %1205 = vmatpush1.bf16.msra.mxu0 0
  %1206 = vmatprep.subr.bf16.mxu0 0
  %1207 = vmatpush1.bf16.msra.mxu0 0
  %1208 = vmatprep.subr.bf16.mxu0 0
  %1209 = vmatpush1.bf16.msra.mxu0 0
  %1210 = vmatprep.subr.bf16.mxu0 0
  %1211 = vmatpush1.bf16.msra.mxu0 0
  %1212 = vmatprep.subr.bf16.mxu0 0
  %1213 = vmatpush1.bf16.msra.mxu0 0
  %1214 = vmatprep.subr.bf16.mxu0 0
  %1215 = vmatpush1.bf16.msra.mxu0 0
  %1216 = vmatprep.subr.bf16.mxu0 0
  %1217 = vmatpush1.bf16.msra.mxu0 0
  %1218 = vmatprep.subr.bf16.mxu0 0
  %1219 = vmatpush1.bf16.msra.mxu0 0
  %1220 = vmatprep.subr.bf16.mxu0 0
  %1221 = vmatpush1.bf16.msra.mxu0 0
  %1222 = vmatprep.mubr.bf16.mxu0 0
  %1223 = vmatmul.mubr.bf16.gmra.mrb[0].mxu0 %v1188
  %v1224 = vpop.f32.mrb[0].mxu0
  %v1225 = vadd.f32 %v1115, %v1224
  %v1226 = vpop.f32.mrb[0].mxu0
  %v1227 = vpop.f32.mrb[0].mxu0
  %v1228 = vpop.f32.mrb[0].mxu0
  %1229 = vdwg.mxu0
  %v1230 = vadd.f32 %v1225, %v870
  %v1231 = vmul.f32 %v1230, %v674
  %v1232 = vtanh.pop %v1231
  %v1233 = vmul.f32 %v1232, %v674
  %v1234 = vadd.f32 %v1233, %v675
  %v1235 = vmul.f32 %v1234, %v1066
  %1237 = vrot.lane.b32.xlu0 %v1234, 64
  %v1238 = vpop.permute.xlu0 %1237
  %v1240 = vmul.f32 %v1234, %v1238
  %1242 = vrot.lane.b32.xlu0 %v1240, 32
  %v1243 = vpop.permute.xlu0 %1242
  %v1245 = vadd.f32 %v1235, %v1243
  %v1246 = vtanh.pop %v1245
  %1248 = vrot.lane.b32.xlu0 %v1246, 64
  %v1249 = vpop.permute.xlu0 %1248
  %v1251 = vmul.f32 %v1234, %v1249
  %v1252 = vpack.c.bf16 %v1251, %v1251
  %1254 = vrot.lane.b32.xlu0 %v1252, 32
  %v1255 = vpop.permute.xlu0 %1254
  %v1257 = vsel %vm688, %v1255, 0
  %1259 = vmatprep.subr.bf16.mxu0 0
  %1260 = vmatpush1.bf16.msra.mxu0 %v684
  %1261 = vmatprep.subr.bf16.mxu0 0
  %1262 = vmatpush1.bf16.msra.mxu0 %v685
  %1263 = vmatprep.subr.bf16.mxu0 0
  %1264 = vmatpush1.bf16.msra.mxu0 0
  %1265 = vmatprep.subr.bf16.mxu0 0
  %1266 = vmatpush1.bf16.msra.mxu0 0
  %1267 = vmatprep.subr.bf16.mxu0 0
  %1268 = vmatpush1.bf16.msra.mxu0 0
  %1269 = vmatprep.subr.bf16.mxu0 0
  %1270 = vmatpush1.bf16.msra.mxu0 0
  %1271 = vmatprep.subr.bf16.mxu0 0
  %1272 = vmatpush1.bf16.msra.mxu0 0
  %1273 = vmatprep.subr.bf16.mxu0 0
  %1274 = vmatpush1.bf16.msra.mxu0 0
  %1275 = vmatprep.subr.bf16.mxu0 0
  %1276 = vmatpush1.bf16.msra.mxu0 0
  %1277 = vmatprep.subr.bf16.mxu0 0
  %1278 = vmatpush1.bf16.msra.mxu0 0
  %1279 = vmatprep.subr.bf16.mxu0 0
  %1280 = vmatpush1.bf16.msra.mxu0 0
  %1281 = vmatprep.subr.bf16.mxu0 0
  %1282 = vmatpush1.bf16.msra.mxu0 0
  %1283 = vmatprep.subr.bf16.mxu0 0
  %1284 = vmatpush1.bf16.msra.mxu0 0
  %1285 = vmatprep.subr.bf16.mxu0 0
  %1286 = vmatpush1.bf16.msra.mxu0 0
  %1287 = vmatprep.subr.bf16.mxu0 0
  %1288 = vmatpush1.bf16.msra.mxu0 0
  %1289 = vmatprep.subr.bf16.mxu0 0
  %1290 = vmatpush1.bf16.msra.mxu0 0
  %1291 = vmatprep.mubr.bf16.mxu0 0
  %1292 = vmatmul.mubr.bf16.gmra.mrb[0].mxu0 %v1257
  %v1293 = vpop.f32.mrb[0].mxu0
  %v1294 = vadd.f32 0.0, %v1293
  %v1295 = vpop.f32.mrb[0].mxu0
  %v1296 = vpop.f32.mrb[0].mxu0
  %v1297 = vpop.f32.mrb[0].mxu0
  %1298 = vdwg.mxu0
  %v1299 = vld [vmem:[%s344] sm:$0x3]
  %1300 = vmatprep.subr.bf16.mxu0 0
  %1301 = vmatpush1.bf16.msra.mxu0 %v741
  %1302 = vmatprep.subr.bf16.mxu0 0
  %1303 = vmatpush1.bf16.msra.mxu0 %v742
  %1304 = vmatprep.subr.bf16.mxu0 0
  %1305 = vmatpush1.bf16.msra.mxu0 0
  %1306 = vmatprep.subr.bf16.mxu0 0
  %1307 = vmatpush1.bf16.msra.mxu0 0
  %1308 = vmatprep.subr.bf16.mxu0 0
  %1309 = vmatpush1.bf16.msra.mxu0 0
  %1310 = vmatprep.subr.bf16.mxu0 0
  %1311 = vmatpush1.bf16.msra.mxu0 0
  %1312 = vmatprep.subr.bf16.mxu0 0
  %1313 = vmatpush1.bf16.msra.mxu0 0
  %1314 = vmatprep.subr.bf16.mxu0 0
  %1315 = vmatpush1.bf16.msra.mxu0 0
  %1316 = vmatprep.subr.bf16.mxu0 0
  %1317 = vmatpush1.bf16.msra.mxu0 0
  %1318 = vmatprep.subr.bf16.mxu0 0
  %1319 = vmatpush1.bf16.msra.mxu0 0
  %1320 = vmatprep.subr.bf16.mxu0 0
  %1321 = vmatpush1.bf16.msra.mxu0 0
  %1322 = vmatprep.subr.bf16.mxu0 0
  %1323 = vmatpush1.bf16.msra.mxu0 0
  %1324 = vmatprep.subr.bf16.mxu0 0
  %1325 = vmatpush1.bf16.msra.mxu0 0
  %1326 = vmatprep.subr.bf16.mxu0 0
  %1327 = vmatpush1.bf16.msra.mxu0 0
  %1328 = vmatprep.subr.bf16.mxu0 0
  %1329 = vmatpush1.bf16.msra.mxu0 0
  %1330 = vmatprep.subr.bf16.mxu0 0
  %1331 = vmatpush1.bf16.msra.mxu0 0
  %1332 = vmatprep.mubr.bf16.mxu0 0
  %1333 = vmatmul.mubr.bf16.gmra.mrb[0].mxu0 %v1188
  %v1334 = vpop.f32.mrb[0].mxu0
  %v1335 = vadd.f32 0.0, %v1334
  %v1336 = vpop.f32.mrb[0].mxu0
  %v1337 = vpop.f32.mrb[0].mxu0
  %v1338 = vpop.f32.mrb[0].mxu0
  %1339 = vdwg.mxu0
  %v1340 = vadd.f32 %v1299, %v1335
  %v1341 = vmul.f32 %v1340, %v674
  %v1342 = vtanh.pop %v1341
  %v1343 = vmul.f32 %v1342, %v674
  %v1344 = vadd.f32 %v1343, %v675
  %v1345 = vmul.f32 %v1344, %v1176
  %1347 = vrot.lane.b32.xlu0 %v1344, 64
  %v1348 = vpop.permute.xlu0 %1347
  %v1350 = vmul.f32 %v1344, %v1348
  %1352 = vrot.lane.b32.xlu0 %v1350, 32
  %v1353 = vpop.permute.xlu0 %1352
  %v1355 = vadd.f32 %v1345, %v1353
  %v1356 = vtanh.pop %v1355
  %1358 = vrot.lane.b32.xlu0 %v1356, 64
  %v1359 = vpop.permute.xlu0 %1358
  %v1361 = vmul.f32 %v1344, %v1359
  %v1362 = vpack.c.bf16 %v1361, %v1361
  %1364 = vrot.lane.b32.xlu0 %v1362, 32
  %v1365 = vpop.permute.xlu0 %1364
  %v1367 = vsel %vm688, %v1365, 0
  %1369 = vmatprep.subr.bf16.mxu0 0
  %1370 = vmatpush1.bf16.msra.mxu0 %v819
  %1371 = vmatprep.subr.bf16.mxu0 0
  %1372 = vmatpush1.bf16.msra.mxu0 %v820
  %1373 = vmatprep.subr.bf16.mxu0 0
  %1374 = vmatpush1.bf16.msra.mxu0 0
  %1375 = vmatprep.subr.bf16.mxu0 0
  %1376 = vmatpush1.bf16.msra.mxu0 0
  %1377 = vmatprep.subr.bf16.mxu0 0
  %1378 = vmatpush1.bf16.msra.mxu0 0
  %1379 = vmatprep.subr.bf16.mxu0 0
  %1380 = vmatpush1.bf16.msra.mxu0 0
  %1381 = vmatprep.subr.bf16.mxu0 0
  %1382 = vmatpush1.bf16.msra.mxu0 0
  %1383 = vmatprep.subr.bf16.mxu0 0
  %1384 = vmatpush1.bf16.msra.mxu0 0
  %1385 = vmatprep.subr.bf16.mxu0 0
  %1386 = vmatpush1.bf16.msra.mxu0 0
  %1387 = vmatprep.subr.bf16.mxu0 0
  %1388 = vmatpush1.bf16.msra.mxu0 0
  %1389 = vmatprep.subr.bf16.mxu0 0
  %1390 = vmatpush1.bf16.msra.mxu0 0
  %1391 = vmatprep.subr.bf16.mxu0 0
  %1392 = vmatpush1.bf16.msra.mxu0 0
  %1393 = vmatprep.subr.bf16.mxu0 0
  %1394 = vmatpush1.bf16.msra.mxu0 0
  %1395 = vmatprep.subr.bf16.mxu0 0
  %1396 = vmatpush1.bf16.msra.mxu0 0
  %1397 = vmatprep.subr.bf16.mxu0 0
  %1398 = vmatpush1.bf16.msra.mxu0 0
  %1399 = vmatprep.subr.bf16.mxu0 0
  %1400 = vmatpush1.bf16.msra.mxu0 0
  %1401 = vmatprep.mubr.bf16.mxu0 0
  %1402 = vmatmul.mubr.bf16.gmra.mrb[0].mxu0 %v1367
  %v1403 = vpop.f32.mrb[0].mxu0
  %v1404 = vadd.f32 %v1294, %v1403
  %v1405 = vpop.f32.mrb[0].mxu0
  %v1406 = vpop.f32.mrb[0].mxu0
  %v1407 = vpop.f32.mrb[0].mxu0
  %1408 = vdwg.mxu0
  %v1409 = vadd.f32 %v1404, %v870
  %v1410 = vmul.f32 %v1409, %v674
  %v1411 = vtanh.pop %v1410
  %v1412 = vmul.f32 %v1411, %v674
  %v1413 = vadd.f32 %v1412, %v675
  %v1414 = vmul.f32 %v1413, %v1245
  %1416 = vrot.lane.b32.xlu0 %v1413, 64
  %v1417 = vpop.permute.xlu0 %1416
  %v1419 = vmul.f32 %v1413, %v1417
  %1421 = vrot.lane.b32.xlu0 %v1419, 32
  %v1422 = vpop.permute.xlu0 %1421
  %v1424 = vadd.f32 %v1414, %v1422
  %v1425 = vtanh.pop %v1424
  %1427 = vrot.lane.b32.xlu0 %v1425, 64
  %v1428 = vpop.permute.xlu0 %1427
  %v1430 = vmul.f32 %v1413, %v1428
  %v1431 = vpack.c.bf16 %v1430, %v1430
  %1433 = vrot.lane.b32.xlu0 %v1431, 32
  %v1434 = vpop.permute.xlu0 %1433
  %v1436 = vsel %vm688, %v1434, 0
  %1438 = vmatprep.subr.bf16.mxu0 0
  %1439 = vmatpush1.bf16.msra.mxu0 %v684
  %1440 = vmatprep.subr.bf16.mxu0 0
  %1441 = vmatpush1.bf16.msra.mxu0 %v685
  %1442 = vmatprep.subr.bf16.mxu0 0
  %1443 = vmatpush1.bf16.msra.mxu0 0
  %1444 = vmatprep.subr.bf16.mxu0 0
  %1445 = vmatpush1.bf16.msra.mxu0 0
  %1446 = vmatprep.subr.bf16.mxu0 0
  %1447 = vmatpush1.bf16.msra.mxu0 0
  %1448 = vmatprep.subr.bf16.mxu0 0
  %1449 = vmatpush1.bf16.msra.mxu0 0
  %1450 = vmatprep.subr.bf16.mxu0 0
  %1451 = vmatpush1.bf16.msra.mxu0 0
  %1452 = vmatprep.subr.bf16.mxu0 0
  %1453 = vmatpush1.bf16.msra.mxu0 0
  %1454 = vmatprep.subr.bf16.mxu0 0
  %1455 = vmatpush1.bf16.msra.mxu0 0
  %1456 = vmatprep.subr.bf16.mxu0 0
  %1457 = vmatpush1.bf16.msra.mxu0 0
  %1458 = vmatprep.subr.bf16.mxu0 0
  %1459 = vmatpush1.bf16.msra.mxu0 0
  %1460 = vmatprep.subr.bf16.mxu0 0
  %1461 = vmatpush1.bf16.msra.mxu0 0
  %1462 = vmatprep.subr.bf16.mxu0 0
  %1463 = vmatpush1.bf16.msra.mxu0 0
  %1464 = vmatprep.subr.bf16.mxu0 0
  %1465 = vmatpush1.bf16.msra.mxu0 0
  %1466 = vmatprep.subr.bf16.mxu0 0
  %1467 = vmatpush1.bf16.msra.mxu0 0
  %1468 = vmatprep.subr.bf16.mxu0 0
  %1469 = vmatpush1.bf16.msra.mxu0 0
  %1470 = vmatprep.mubr.bf16.mxu0 0
  %1471 = vmatmul.mubr.bf16.gmra.mrb[0].mxu0 %v1436
  %v1472 = vpop.f32.mrb[0].mxu0
  %v1473 = vadd.f32 0.0, %v1472
  %v1474 = vpop.f32.mrb[0].mxu0
  %v1475 = vpop.f32.mrb[0].mxu0
  %v1476 = vpop.f32.mrb[0].mxu0
  %1477 = vdwg.mxu0
  %v1478 = vld [vmem:[%s421] sm:$0x3]
  %1479 = vmatprep.subr.bf16.mxu0 0
  %1480 = vmatpush1.bf16.msra.mxu0 %v741
  %1481 = vmatprep.subr.bf16.mxu0 0
  %1482 = vmatpush1.bf16.msra.mxu0 %v742
  %1483 = vmatprep.subr.bf16.mxu0 0
  %1484 = vmatpush1.bf16.msra.mxu0 0
  %1485 = vmatprep.subr.bf16.mxu0 0
  %1486 = vmatpush1.bf16.msra.mxu0 0
  %1487 = vmatprep.subr.bf16.mxu0 0
  %1488 = vmatpush1.bf16.msra.mxu0 0
  %1489 = vmatprep.subr.bf16.mxu0 0
  %1490 = vmatpush1.bf16.msra.mxu0 0
  %1491 = vmatprep.subr.bf16.mxu0 0
  %1492 = vmatpush1.bf16.msra.mxu0 0
  %1493 = vmatprep.subr.bf16.mxu0 0
  %1494 = vmatpush1.bf16.msra.mxu0 0
  %1495 = vmatprep.subr.bf16.mxu0 0
  %1496 = vmatpush1.bf16.msra.mxu0 0
  %1497 = vmatprep.subr.bf16.mxu0 0
  %1498 = vmatpush1.bf16.msra.mxu0 0
  %1499 = vmatprep.subr.bf16.mxu0 0
  %1500 = vmatpush1.bf16.msra.mxu0 0
  %1501 = vmatprep.subr.bf16.mxu0 0
  %1502 = vmatpush1.bf16.msra.mxu0 0
  %1503 = vmatprep.subr.bf16.mxu0 0
  %1504 = vmatpush1.bf16.msra.mxu0 0
  %1505 = vmatprep.subr.bf16.mxu0 0
  %1506 = vmatpush1.bf16.msra.mxu0 0
  %1507 = vmatprep.subr.bf16.mxu0 0
  %1508 = vmatpush1.bf16.msra.mxu0 0
  %1509 = vmatprep.subr.bf16.mxu0 0
  %1510 = vmatpush1.bf16.msra.mxu0 0
  %1511 = vmatprep.mubr.bf16.mxu0 0
  %1512 = vmatmul.mubr.bf16.gmra.mrb[0].mxu0 %v1367
  %v1513 = vpop.f32.mrb[0].mxu0
  %v1514 = vadd.f32 0.0, %v1513
  %v1515 = vpop.f32.mrb[0].mxu0
  %v1516 = vpop.f32.mrb[0].mxu0
  %v1517 = vpop.f32.mrb[0].mxu0
  %1518 = vdwg.mxu0
  %v1519 = vadd.f32 %v1478, %v1514
  %v1520 = vmul.f32 %v1519, %v674
  %v1521 = vtanh.pop %v1520
  %v1522 = vmul.f32 %v1521, %v674
  %v1523 = vadd.f32 %v1522, %v675
  %v1524 = vmul.f32 %v1523, %v1355
  %1526 = vrot.lane.b32.xlu0 %v1523, 64
  %v1527 = vpop.permute.xlu0 %1526
  %v1529 = vmul.f32 %v1523, %v1527
  %1531 = vrot.lane.b32.xlu0 %v1529, 32
  %v1532 = vpop.permute.xlu0 %1531
  %v1534 = vadd.f32 %v1524, %v1532
  %v1535 = vtanh.pop %v1534
  %1537 = vrot.lane.b32.xlu0 %v1535, 64
  %v1538 = vpop.permute.xlu0 %1537
  %v1540 = vmul.f32 %v1523, %v1538
  %v1541 = vpack.c.bf16 %v1540, %v1540
  %1543 = vrot.lane.b32.xlu0 %v1541, 32
  %v1544 = vpop.permute.xlu0 %1543
  %v1546 = vsel %vm688, %v1544, 0
  %1548 = vmatprep.subr.bf16.mxu0 0
  %1549 = vmatpush1.bf16.msra.mxu0 %v819
  %1550 = vmatprep.subr.bf16.mxu0 0
  %1551 = vmatpush1.bf16.msra.mxu0 %v820
  %1552 = vmatprep.subr.bf16.mxu0 0
  %1553 = vmatpush1.bf16.msra.mxu0 0
  %1554 = vmatprep.subr.bf16.mxu0 0
  %1555 = vmatpush1.bf16.msra.mxu0 0
  %1556 = vmatprep.subr.bf16.mxu0 0
  %1557 = vmatpush1.bf16.msra.mxu0 0
  %1558 = vmatprep.subr.bf16.mxu0 0
  %1559 = vmatpush1.bf16.msra.mxu0 0
  %1560 = vmatprep.subr.bf16.mxu0 0
  %1561 = vmatpush1.bf16.msra.mxu0 0
  %1562 = vmatprep.subr.bf16.mxu0 0
  %1563 = vmatpush1.bf16.msra.mxu0 0
  %1564 = vmatprep.subr.bf16.mxu0 0
  %1565 = vmatpush1.bf16.msra.mxu0 0
  %1566 = vmatprep.subr.bf16.mxu0 0
  %1567 = vmatpush1.bf16.msra.mxu0 0
  %1568 = vmatprep.subr.bf16.mxu0 0
  %1569 = vmatpush1.bf16.msra.mxu0 0
  %1570 = vmatprep.subr.bf16.mxu0 0
  %1571 = vmatpush1.bf16.msra.mxu0 0
  %1572 = vmatprep.subr.bf16.mxu0 0
  %1573 = vmatpush1.bf16.msra.mxu0 0
  %1574 = vmatprep.subr.bf16.mxu0 0
  %1575 = vmatpush1.bf16.msra.mxu0 0
  %1576 = vmatprep.subr.bf16.mxu0 0
  %1577 = vmatpush1.bf16.msra.mxu0 0
  %1578 = vmatprep.subr.bf16.mxu0 0
  %1579 = vmatpush1.bf16.msra.mxu0 0
  %1580 = vmatprep.mubr.bf16.mxu0 0
  %1581 = vmatmul.mubr.bf16.gmra.mrb[0].mxu0 %v1546
  %v1582 = vpop.f32.mrb[0].mxu0
  %v1583 = vadd.f32 %v1473, %v1582
  %v1584 = vpop.f32.mrb[0].mxu0
  %v1585 = vpop.f32.mrb[0].mxu0
  %v1586 = vpop.f32.mrb[0].mxu0
  %1587 = vdwg.mxu0
  %v1588 = vadd.f32 %v1583, %v870
  %v1589 = vmul.f32 %v1588, %v674
  %v1590 = vtanh.pop %v1589
  %v1591 = vmul.f32 %v1590, %v674
  %v1592 = vadd.f32 %v1591, %v675
  %v1593 = vmul.f32 %v1592, %v1424
  %1595 = vrot.lane.b32.xlu0 %v1592, 64
  %v1596 = vpop.permute.xlu0 %1595
  %v1598 = vmul.f32 %v1592, %v1596
  %1600 = vrot.lane.b32.xlu0 %v1598, 32
  %v1601 = vpop.permute.xlu0 %1600
  %v1603 = vadd.f32 %v1593, %v1601
  %v1604 = vtanh.pop %v1603
  %1606 = vrot.lane.b32.xlu0 %v1604, 64
  %v1607 = vpop.permute.xlu0 %1606
  %v1609 = vmul.f32 %v1592, %v1607
  %v1610 = vpack.c.bf16 %v1609, %v1609
  %1612 = vrot.lane.b32.xlu0 %v1610, 32
  %v1613 = vpop.permute.xlu0 %1612
  %v1615 = vsel %vm688, %v1613, 0
  %1617 = vmatprep.subr.bf16.mxu0 0
  %1618 = vmatpush1.bf16.msra.mxu0 %v684
  %1619 = vmatprep.subr.bf16.mxu0 0
  %1620 = vmatpush1.bf16.msra.mxu0 %v685
  %1621 = vmatprep.subr.bf16.mxu0 0
  %1622 = vmatpush1.bf16.msra.mxu0 0
  %1623 = vmatprep.subr.bf16.mxu0 0
  %1624 = vmatpush1.bf16.msra.mxu0 0
  %1625 = vmatprep.subr.bf16.mxu0 0
  %1626 = vmatpush1.bf16.msra.mxu0 0
  %1627 = vmatprep.subr.bf16.mxu0 0
  %1628 = vmatpush1.bf16.msra.mxu0 0
  %1629 = vmatprep.subr.bf16.mxu0 0
  %1630 = vmatpush1.bf16.msra.mxu0 0
  %1631 = vmatprep.subr.bf16.mxu0 0
  %1632 = vmatpush1.bf16.msra.mxu0 0
  %1633 = vmatprep.subr.bf16.mxu0 0
  %1634 = vmatpush1.bf16.msra.mxu0 0
  %1635 = vmatprep.subr.bf16.mxu0 0
  %1636 = vmatpush1.bf16.msra.mxu0 0
  %1637 = vmatprep.subr.bf16.mxu0 0
  %1638 = vmatpush1.bf16.msra.mxu0 0
  %1639 = vmatprep.subr.bf16.mxu0 0
  %1640 = vmatpush1.bf16.msra.mxu0 0
  %1641 = vmatprep.subr.bf16.mxu0 0
  %1642 = vmatpush1.bf16.msra.mxu0 0
  %1643 = vmatprep.subr.bf16.mxu0 0
  %1644 = vmatpush1.bf16.msra.mxu0 0
  %1645 = vmatprep.subr.bf16.mxu0 0
  %1646 = vmatpush1.bf16.msra.mxu0 0
  %1647 = vmatprep.subr.bf16.mxu0 0
  %1648 = vmatpush1.bf16.msra.mxu0 0
  %1649 = vmatprep.mubr.bf16.mxu0 0
  %1650 = vmatmul.mubr.bf16.gmra.mrb[0].mxu0 %v1615
  %v1651 = vpop.f32.mrb[0].mxu0
  %v1652 = vadd.f32 0.0, %v1651
  %v1653 = vpop.f32.mrb[0].mxu0
  %v1654 = vpop.f32.mrb[0].mxu0
  %v1655 = vpop.f32.mrb[0].mxu0
  %1656 = vdwg.mxu0
  %v1657 = vld [vmem:[%s498] sm:$0x3]
  %1658 = vmatprep.subr.bf16.mxu0 0
  %1659 = vmatpush1.bf16.msra.mxu0 %v741
  %1660 = vmatprep.subr.bf16.mxu0 0
  %1661 = vmatpush1.bf16.msra.mxu0 %v742
  %1662 = vmatprep.subr.bf16.mxu0 0
  %1663 = vmatpush1.bf16.msra.mxu0 0
  %1664 = vmatprep.subr.bf16.mxu0 0
  %1665 = vmatpush1.bf16.msra.mxu0 0
  %1666 = vmatprep.subr.bf16.mxu0 0
  %1667 = vmatpush1.bf16.msra.mxu0 0
  %1668 = vmatprep.subr.bf16.mxu0 0
  %1669 = vmatpush1.bf16.msra.mxu0 0
  %1670 = vmatprep.subr.bf16.mxu0 0
  %1671 = vmatpush1.bf16.msra.mxu0 0
  %1672 = vmatprep.subr.bf16.mxu0 0
  %1673 = vmatpush1.bf16.msra.mxu0 0
  %1674 = vmatprep.subr.bf16.mxu0 0
  %1675 = vmatpush1.bf16.msra.mxu0 0
  %1676 = vmatprep.subr.bf16.mxu0 0
  %1677 = vmatpush1.bf16.msra.mxu0 0
  %1678 = vmatprep.subr.bf16.mxu0 0
  %1679 = vmatpush1.bf16.msra.mxu0 0
  %1680 = vmatprep.subr.bf16.mxu0 0
  %1681 = vmatpush1.bf16.msra.mxu0 0
  %1682 = vmatprep.subr.bf16.mxu0 0
  %1683 = vmatpush1.bf16.msra.mxu0 0
  %1684 = vmatprep.subr.bf16.mxu0 0
  %1685 = vmatpush1.bf16.msra.mxu0 0
  %1686 = vmatprep.subr.bf16.mxu0 0
  %1687 = vmatpush1.bf16.msra.mxu0 0
  %1688 = vmatprep.subr.bf16.mxu0 0
  %1689 = vmatpush1.bf16.msra.mxu0 0
  %1690 = vmatprep.mubr.bf16.mxu0 0
  %1691 = vmatmul.mubr.bf16.gmra.mrb[0].mxu0 %v1546
  %v1692 = vpop.f32.mrb[0].mxu0
  %v1693 = vadd.f32 0.0, %v1692
  %v1694 = vpop.f32.mrb[0].mxu0
  %v1695 = vpop.f32.mrb[0].mxu0
  %v1696 = vpop.f32.mrb[0].mxu0
  %1697 = vdwg.mxu0
  %v1698 = vadd.f32 %v1657, %v1693
  %v1699 = vmul.f32 %v1698, %v674
  %v1700 = vtanh.pop %v1699
  %v1701 = vmul.f32 %v1700, %v674
  %v1702 = vadd.f32 %v1701, %v675
  %v1703 = vmul.f32 %v1702, %v1534
  %1705 = vrot.lane.b32.xlu0 %v1702, 64
  %v1706 = vpop.permute.xlu0 %1705
  %v1708 = vmul.f32 %v1702, %v1706
  %1710 = vrot.lane.b32.xlu0 %v1708, 32
  %v1711 = vpop.permute.xlu0 %1710
  %v1713 = vadd.f32 %v1703, %v1711
  %v1714 = vtanh.pop %v1713
  %1716 = vrot.lane.b32.xlu0 %v1714, 64
  %v1717 = vpop.permute.xlu0 %1716
  %v1719 = vmul.f32 %v1702, %v1717
  %v1720 = vpack.c.bf16 %v1719, %v1719
  %1722 = vrot.lane.b32.xlu0 %v1720, 32
  %v1723 = vpop.permute.xlu0 %1722
  %v1725 = vsel %vm688, %v1723, 0
  %1727 = vmatprep.subr.bf16.mxu0 0
  %1728 = vmatpush1.bf16.msra.mxu0 %v819
  %1729 = vmatprep.subr.bf16.mxu0 0
  %1730 = vmatpush1.bf16.msra.mxu0 %v820
  %1731 = vmatprep.subr.bf16.mxu0 0
  %1732 = vmatpush1.bf16.msra.mxu0 0
  %1733 = vmatprep.subr.bf16.mxu0 0
  %1734 = vmatpush1.bf16.msra.mxu0 0
  %1735 = vmatprep.subr.bf16.mxu0 0
  %1736 = vmatpush1.bf16.msra.mxu0 0
  %1737 = vmatprep.subr.bf16.mxu0 0
  %1738 = vmatpush1.bf16.msra.mxu0 0
  %1739 = vmatprep.subr.bf16.mxu0 0
  %1740 = vmatpush1.bf16.msra.mxu0 0
  %1741 = vmatprep.subr.bf16.mxu0 0
  %1742 = vmatpush1.bf16.msra.mxu0 0
  %1743 = vmatprep.subr.bf16.mxu0 0
  %1744 = vmatpush1.bf16.msra.mxu0 0
  %1745 = vmatprep.subr.bf16.mxu0 0
  %1746 = vmatpush1.bf16.msra.mxu0 0
  %1747 = vmatprep.subr.bf16.mxu0 0
  %1748 = vmatpush1.bf16.msra.mxu0 0
  %1749 = vmatprep.subr.bf16.mxu0 0
  %1750 = vmatpush1.bf16.msra.mxu0 0
  %1751 = vmatprep.subr.bf16.mxu0 0
  %1752 = vmatpush1.bf16.msra.mxu0 0
  %1753 = vmatprep.subr.bf16.mxu0 0
  %1754 = vmatpush1.bf16.msra.mxu0 0
  %1755 = vmatprep.subr.bf16.mxu0 0
  %1756 = vmatpush1.bf16.msra.mxu0 0
  %1757 = vmatprep.subr.bf16.mxu0 0
  %1758 = vmatpush1.bf16.msra.mxu0 0
  %1759 = vmatprep.mubr.bf16.mxu0 0
  %1760 = vmatmul.mubr.bf16.gmra.mrb[0].mxu0 %v1725
  %v1761 = vpop.f32.mrb[0].mxu0
  %v1762 = vadd.f32 %v1652, %v1761
  %v1763 = vpop.f32.mrb[0].mxu0
  %v1764 = vpop.f32.mrb[0].mxu0
  %v1765 = vpop.f32.mrb[0].mxu0
  %1766 = vdwg.mxu0
  %v1767 = vadd.f32 %v1762, %v870
  %v1768 = vmul.f32 %v1767, %v674
  %v1769 = vtanh.pop %v1768
  %v1770 = vmul.f32 %v1769, %v674
  %v1771 = vadd.f32 %v1770, %v675
  %v1772 = vmul.f32 %v1771, %v1603
  %1774 = vrot.lane.b32.xlu0 %v1771, 64
  %v1775 = vpop.permute.xlu0 %1774
  %v1777 = vmul.f32 %v1771, %v1775
  %1779 = vrot.lane.b32.xlu0 %v1777, 32
  %v1780 = vpop.permute.xlu0 %1779
  %v1782 = vadd.f32 %v1772, %v1780
  %v1783 = vtanh.pop %v1782
  %1785 = vrot.lane.b32.xlu0 %v1783, 64
  %v1786 = vpop.permute.xlu0 %1785
  %v1788 = vmul.f32 %v1771, %v1786
  %v1789 = vpack.c.bf16 %v1788, %v1788
  %1791 = vrot.lane.b32.xlu0 %v1789, 32
  %v1792 = vpop.permute.xlu0 %1791
  %v1794 = vsel %vm688, %v1792, 0
  %1796 = vmatprep.subr.bf16.mxu0 0
  %1797 = vmatpush1.bf16.msra.mxu0 %v684
  %1798 = vmatprep.subr.bf16.mxu0 0
  %1799 = vmatpush1.bf16.msra.mxu0 %v685
  %1800 = vmatprep.subr.bf16.mxu0 0
  %1801 = vmatpush1.bf16.msra.mxu0 0
  %1802 = vmatprep.subr.bf16.mxu0 0
  %1803 = vmatpush1.bf16.msra.mxu0 0
  %1804 = vmatprep.subr.bf16.mxu0 0
  %1805 = vmatpush1.bf16.msra.mxu0 0
  %1806 = vmatprep.subr.bf16.mxu0 0
  %1807 = vmatpush1.bf16.msra.mxu0 0
  %1808 = vmatprep.subr.bf16.mxu0 0
  %1809 = vmatpush1.bf16.msra.mxu0 0
  %1810 = vmatprep.subr.bf16.mxu0 0
  %1811 = vmatpush1.bf16.msra.mxu0 0
  %1812 = vmatprep.subr.bf16.mxu0 0
  %1813 = vmatpush1.bf16.msra.mxu0 0
  %1814 = vmatprep.subr.bf16.mxu0 0
  %1815 = vmatpush1.bf16.msra.mxu0 0
  %1816 = vmatprep.subr.bf16.mxu0 0
  %1817 = vmatpush1.bf16.msra.mxu0 0
  %1818 = vmatprep.subr.bf16.mxu0 0
  %1819 = vmatpush1.bf16.msra.mxu0 0
  %1820 = vmatprep.subr.bf16.mxu0 0
  %1821 = vmatpush1.bf16.msra.mxu0 0
  %1822 = vmatprep.subr.bf16.mxu0 0
  %1823 = vmatpush1.bf16.msra.mxu0 0
  %1824 = vmatprep.subr.bf16.mxu0 0
  %1825 = vmatpush1.bf16.msra.mxu0 0
  %1826 = vmatprep.subr.bf16.mxu0 0
  %1827 = vmatpush1.bf16.msra.mxu0 0
  %1828 = vmatprep.mubr.bf16.mxu0 0
  %1829 = vmatmul.mubr.bf16.gmra.mrb[0].mxu0 %v1794
  %v1830 = vpop.f32.mrb[0].mxu0
  %v1831 = vadd.f32 0.0, %v1830
  %v1832 = vpop.f32.mrb[0].mxu0
  %v1833 = vpop.f32.mrb[0].mxu0
  %v1834 = vpop.f32.mrb[0].mxu0
  %1835 = vdwg.mxu0
  %v1836 = vld [vmem:[%s575] sm:$0x3]
  %1837 = vmatprep.subr.bf16.mxu0 0
  %1838 = vmatpush1.bf16.msra.mxu0 %v741
  %1839 = vmatprep.subr.bf16.mxu0 0
  %1840 = vmatpush1.bf16.msra.mxu0 %v742
  %1841 = vmatprep.subr.bf16.mxu0 0
  %1842 = vmatpush1.bf16.msra.mxu0 0
  %1843 = vmatprep.subr.bf16.mxu0 0
  %1844 = vmatpush1.bf16.msra.mxu0 0
  %1845 = vmatprep.subr.bf16.mxu0 0
  %1846 = vmatpush1.bf16.msra.mxu0 0
  %1847 = vmatprep.subr.bf16.mxu0 0
  %1848 = vmatpush1.bf16.msra.mxu0 0
  %1849 = vmatprep.subr.bf16.mxu0 0
  %1850 = vmatpush1.bf16.msra.mxu0 0
  %1851 = vmatprep.subr.bf16.mxu0 0
  %1852 = vmatpush1.bf16.msra.mxu0 0
  %1853 = vmatprep.subr.bf16.mxu0 0
  %1854 = vmatpush1.bf16.msra.mxu0 0
  %1855 = vmatprep.subr.bf16.mxu0 0
  %1856 = vmatpush1.bf16.msra.mxu0 0
  %1857 = vmatprep.subr.bf16.mxu0 0
  %1858 = vmatpush1.bf16.msra.mxu0 0
  %1859 = vmatprep.subr.bf16.mxu0 0
  %1860 = vmatpush1.bf16.msra.mxu0 0
  %1861 = vmatprep.subr.bf16.mxu0 0
  %1862 = vmatpush1.bf16.msra.mxu0 0
  %1863 = vmatprep.subr.bf16.mxu0 0
  %1864 = vmatpush1.bf16.msra.mxu0 0
  %1865 = vmatprep.subr.bf16.mxu0 0
  %1866 = vmatpush1.bf16.msra.mxu0 0
  %1867 = vmatprep.subr.bf16.mxu0 0
  %1868 = vmatpush1.bf16.msra.mxu0 0
  %1869 = vmatprep.mubr.bf16.mxu0 0
  %1870 = vmatmul.mubr.bf16.gmra.mrb[0].mxu0 %v1725
  %v1871 = vpop.f32.mrb[0].mxu0
  %v1872 = vadd.f32 0.0, %v1871
  %v1873 = vpop.f32.mrb[0].mxu0
  %v1874 = vpop.f32.mrb[0].mxu0
  %v1875 = vpop.f32.mrb[0].mxu0
  %1876 = vdwg.mxu0
  %v1877 = vadd.f32 %v1836, %v1872
  %v1878 = vmul.f32 %v1877, %v674
  %v1879 = vtanh.pop %v1878
  %v1880 = vmul.f32 %v1879, %v674
  %v1881 = vadd.f32 %v1880, %v675
  %v1882 = vmul.f32 %v1881, %v1713
  %1884 = vrot.lane.b32.xlu0 %v1881, 64
  %v1885 = vpop.permute.xlu0 %1884
  %v1887 = vmul.f32 %v1881, %v1885
  %1889 = vrot.lane.b32.xlu0 %v1887, 32
  %v1890 = vpop.permute.xlu0 %1889
  %v1892 = vadd.f32 %v1882, %v1890
  %v1893 = vtanh.pop %v1892
  %1895 = vrot.lane.b32.xlu0 %v1893, 64
  %v1896 = vpop.permute.xlu0 %1895
  %v1898 = vmul.f32 %v1881, %v1896
  %v1899 = vpack.c.bf16 %v1898, %v1898
  %1901 = vrot.lane.b32.xlu0 %v1899, 32
  %v1902 = vpop.permute.xlu0 %1901
  %v1904 = vsel %vm688, %v1902, 0
  %1906 = vmatprep.subr.bf16.mxu0 0
  %1907 = vmatpush1.bf16.msra.mxu0 %v819
  %1908 = vmatprep.subr.bf16.mxu0 0
  %1909 = vmatpush1.bf16.msra.mxu0 %v820
  %1910 = vmatprep.subr.bf16.mxu0 0
  %1911 = vmatpush1.bf16.msra.mxu0 0
  %1912 = vmatprep.subr.bf16.mxu0 0
  %1913 = vmatpush1.bf16.msra.mxu0 0
  %1914 = vmatprep.subr.bf16.mxu0 0
  %1915 = vmatpush1.bf16.msra.mxu0 0
  %1916 = vmatprep.subr.bf16.mxu0 0
  %1917 = vmatpush1.bf16.msra.mxu0 0
  %1918 = vmatprep.subr.bf16.mxu0 0
  %1919 = vmatpush1.bf16.msra.mxu0 0
  %1920 = vmatprep.subr.bf16.mxu0 0
  %1921 = vmatpush1.bf16.msra.mxu0 0
  %1922 = vmatprep.subr.bf16.mxu0 0
  %1923 = vmatpush1.bf16.msra.mxu0 0
  %1924 = vmatprep.subr.bf16.mxu0 0
  %1925 = vmatpush1.bf16.msra.mxu0 0
  %1926 = vmatprep.subr.bf16.mxu0 0
  %1927 = vmatpush1.bf16.msra.mxu0 0
  %1928 = vmatprep.subr.bf16.mxu0 0
  %1929 = vmatpush1.bf16.msra.mxu0 0
  %1930 = vmatprep.subr.bf16.mxu0 0
  %1931 = vmatpush1.bf16.msra.mxu0 0
  %1932 = vmatprep.subr.bf16.mxu0 0
  %1933 = vmatpush1.bf16.msra.mxu0 0
  %1934 = vmatprep.subr.bf16.mxu0 0
  %1935 = vmatpush1.bf16.msra.mxu0 0
  %1936 = vmatprep.subr.bf16.mxu0 0
  %1937 = vmatpush1.bf16.msra.mxu0 0
  %1938 = vmatprep.mubr.bf16.mxu0 0
  %1939 = vmatmul.mubr.bf16.gmra.mrb[0].mxu0 %v1904
  %v1940 = vpop.f32.mrb[0].mxu0
  %v1941 = vadd.f32 %v1831, %v1940
  %v1942 = vpop.f32.mrb[0].mxu0
  %v1943 = vpop.f32.mrb[0].mxu0
  %v1944 = vpop.f32.mrb[0].mxu0
  %1945 = vdwg.mxu0
  %v1946 = vadd.f32 %v1941, %v870
  %v1947 = vmul.f32 %v1946, %v674
  %v1948 = vtanh.pop %v1947
  %v1949 = vmul.f32 %v1948, %v674
  %v1950 = vadd.f32 %v1949, %v675
  %v1951 = vmul.f32 %v1950, %v1782
  %1953 = vrot.lane.b32.xlu0 %v1950, 64
  %v1954 = vpop.permute.xlu0 %1953
  %v1956 = vmul.f32 %v1950, %v1954
  %1958 = vrot.lane.b32.xlu0 %v1956, 32
  %v1959 = vpop.permute.xlu0 %1958
  %v1961 = vadd.f32 %v1951, %v1959
  %v1962 = vtanh.pop %v1961
  %1964 = vrot.lane.b32.xlu0 %v1962, 64
  %v1965 = vpop.permute.xlu0 %1964
  %v1967 = vmul.f32 %v1950, %v1965
  %v1968 = vpack.c.bf16 %v1967, %v1967
  %1970 = vrot.lane.b32.xlu0 %v1968, 32
  %v1971 = vpop.permute.xlu0 %1970
  %v1973 = vsel %vm688, %v1971, 0
  %1975 = vmatprep.subr.bf16.mxu0 0
  %1976 = vmatpush1.bf16.msra.mxu0 %v684
  %1977 = vmatprep.subr.bf16.mxu0 0
  %1978 = vmatpush1.bf16.msra.mxu0 %v685
  %1979 = vmatprep.subr.bf16.mxu0 0
  %1980 = vmatpush1.bf16.msra.mxu0 0
  %1981 = vmatprep.subr.bf16.mxu0 0
  %1982 = vmatpush1.bf16.msra.mxu0 0
  %1983 = vmatprep.subr.bf16.mxu0 0
  %1984 = vmatpush1.bf16.msra.mxu0 0
  %1985 = vmatprep.subr.bf16.mxu0 0
  %1986 = vmatpush1.bf16.msra.mxu0 0
  %1987 = vmatprep.subr.bf16.mxu0 0
  %1988 = vmatpush1.bf16.msra.mxu0 0
  %1989 = vmatprep.subr.bf16.mxu0 0
  %1990 = vmatpush1.bf16.msra.mxu0 0
  %1991 = vmatprep.subr.bf16.mxu0 0
  %1992 = vmatpush1.bf16.msra.mxu0 0
  %1993 = vmatprep.subr.bf16.mxu0 0
  %1994 = vmatpush1.bf16.msra.mxu0 0
  %1995 = vmatprep.subr.bf16.mxu0 0
  %1996 = vmatpush1.bf16.msra.mxu0 0
  %1997 = vmatprep.subr.bf16.mxu0 0
  %1998 = vmatpush1.bf16.msra.mxu0 0
  %1999 = vmatprep.subr.bf16.mxu0 0
  %2000 = vmatpush1.bf16.msra.mxu0 0
  %2001 = vmatprep.subr.bf16.mxu0 0
  %2002 = vmatpush1.bf16.msra.mxu0 0
  %2003 = vmatprep.subr.bf16.mxu0 0
  %2004 = vmatpush1.bf16.msra.mxu0 0
  %2005 = vmatprep.subr.bf16.mxu0 0
  %2006 = vmatpush1.bf16.msra.mxu0 0
  %2007 = vmatprep.mubr.bf16.mxu0 0
  %2008 = vmatmul.mubr.bf16.gmra.mrb[0].mxu0 %v1973
  %v2009 = vpop.f32.mrb[0].mxu0
  %v2010 = vadd.f32 0.0, %v2009
  %v2011 = vpop.f32.mrb[0].mxu0
  %v2012 = vpop.f32.mrb[0].mxu0
  %v2013 = vpop.f32.mrb[0].mxu0
  %2014 = vdwg.mxu0
  %v2015 = vld [vmem:[%s652] sm:$0x3]
  %2016 = vmatprep.subr.bf16.mxu0 0
  %2017 = vmatpush1.bf16.msra.mxu0 %v741
  %2018 = vmatprep.subr.bf16.mxu0 0
  %2019 = vmatpush1.bf16.msra.mxu0 %v742
  %2020 = vmatprep.subr.bf16.mxu0 0
  %2021 = vmatpush1.bf16.msra.mxu0 0
  %2022 = vmatprep.subr.bf16.mxu0 0
  %2023 = vmatpush1.bf16.msra.mxu0 0
  %2024 = vmatprep.subr.bf16.mxu0 0
  %2025 = vmatpush1.bf16.msra.mxu0 0
  %2026 = vmatprep.subr.bf16.mxu0 0
  %2027 = vmatpush1.bf16.msra.mxu0 0
  %2028 = vmatprep.subr.bf16.mxu0 0
  %2029 = vmatpush1.bf16.msra.mxu0 0
  %2030 = vmatprep.subr.bf16.mxu0 0
  %2031 = vmatpush1.bf16.msra.mxu0 0
  %2032 = vmatprep.subr.bf16.mxu0 0
  %2033 = vmatpush1.bf16.msra.mxu0 0
  %2034 = vmatprep.subr.bf16.mxu0 0
  %2035 = vmatpush1.bf16.msra.mxu0 0
  %2036 = vmatprep.subr.bf16.mxu0 0
  %2037 = vmatpush1.bf16.msra.mxu0 0
  %2038 = vmatprep.subr.bf16.mxu0 0
  %2039 = vmatpush1.bf16.msra.mxu0 0
  %2040 = vmatprep.subr.bf16.mxu0 0
  %2041 = vmatpush1.bf16.msra.mxu0 0
  %2042 = vmatprep.subr.bf16.mxu0 0
  %2043 = vmatpush1.bf16.msra.mxu0 0
  %2044 = vmatprep.subr.bf16.mxu0 0
  %2045 = vmatpush1.bf16.msra.mxu0 0
  %2046 = vmatprep.subr.bf16.mxu0 0
  %2047 = vmatpush1.bf16.msra.mxu0 0
  %2048 = vmatprep.mubr.bf16.mxu0 0
  %2049 = vmatmul.mubr.bf16.gmra.mrb[0].mxu0 %v1904
  %v2050 = vpop.f32.mrb[0].mxu0
  %v2051 = vadd.f32 0.0, %v2050
  %v2052 = vpop.f32.mrb[0].mxu0
  %v2053 = vpop.f32.mrb[0].mxu0
  %v2054 = vpop.f32.mrb[0].mxu0
  %2055 = vdwg.mxu0
  %v2056 = vadd.f32 %v2015, %v2051
  %v2057 = vmul.f32 %v2056, %v674
  %v2058 = vtanh.pop %v2057
  %v2059 = vmul.f32 %v2058, %v674
  %v2060 = vadd.f32 %v2059, %v675
  %v2061 = vmul.f32 %v2060, %v1892
  %2063 = vrot.lane.b32.xlu0 %v2060, 64
  %v2064 = vpop.permute.xlu0 %2063
  %v2066 = vmul.f32 %v2060, %v2064
  %2068 = vrot.lane.b32.xlu0 %v2066, 32
  %v2069 = vpop.permute.xlu0 %2068
  %v2071 = vadd.f32 %v2061, %v2069
  %v2072 = vtanh.pop %v2071
  %2074 = vrot.lane.b32.xlu0 %v2072, 64
  %v2075 = vpop.permute.xlu0 %2074
  %v2077 = vmul.f32 %v2060, %v2075
  %v2078 = vpack.c.bf16 %v2077, %v2077
  %2080 = vrot.lane.b32.xlu0 %v2078, 32
  %v2081 = vpop.permute.xlu0 %2080
  %v2083 = vsel %vm688, %v2081, 0
  %2085 = vmatprep.subr.bf16.mxu0 0
  %2086 = vmatpush1.bf16.msra.mxu0 %v819
  %2087 = vmatprep.subr.bf16.mxu0 0
  %2088 = vmatpush1.bf16.msra.mxu0 %v820
  %2089 = vmatprep.subr.bf16.mxu0 0
  %2090 = vmatpush1.bf16.msra.mxu0 0
  %2091 = vmatprep.subr.bf16.mxu0 0
  %2092 = vmatpush1.bf16.msra.mxu0 0
  %2093 = vmatprep.subr.bf16.mxu0 0
  %2094 = vmatpush1.bf16.msra.mxu0 0
  %2095 = vmatprep.subr.bf16.mxu0 0
  %2096 = vmatpush1.bf16.msra.mxu0 0
  %2097 = vmatprep.subr.bf16.mxu0 0
  %2098 = vmatpush1.bf16.msra.mxu0 0
  %2099 = vmatprep.subr.bf16.mxu0 0
  %2100 = vmatpush1.bf16.msra.mxu0 0
  %2101 = vmatprep.subr.bf16.mxu0 0
  %2102 = vmatpush1.bf16.msra.mxu0 0
  %2103 = vmatprep.subr.bf16.mxu0 0
  %2104 = vmatpush1.bf16.msra.mxu0 0
  %2105 = vmatprep.subr.bf16.mxu0 0
  %2106 = vmatpush1.bf16.msra.mxu0 0
  %2107 = vmatprep.subr.bf16.mxu0 0
  %2108 = vmatpush1.bf16.msra.mxu0 0
  %2109 = vmatprep.subr.bf16.mxu0 0
  %2110 = vmatpush1.bf16.msra.mxu0 0
  %2111 = vmatprep.subr.bf16.mxu0 0
  %2112 = vmatpush1.bf16.msra.mxu0 0
  %2113 = vmatprep.subr.bf16.mxu0 0
  %2114 = vmatpush1.bf16.msra.mxu0 0
  %2115 = vmatprep.subr.bf16.mxu0 0
  %2116 = vmatpush1.bf16.msra.mxu0 0
  %2117 = vmatprep.mubr.bf16.mxu0 0
  %2118 = vmatmul.mubr.bf16.gmra.mrb[0].mxu0 %v2083
  %v2119 = vpop.f32.mrb[0].mxu0
  %v2120 = vadd.f32 %v2010, %v2119
  %v2121 = vpop.f32.mrb[0].mxu0
  %v2122 = vpop.f32.mrb[0].mxu0
  %v2123 = vpop.f32.mrb[0].mxu0
  %2124 = vdwg.mxu0
  %v2125 = vadd.f32 %v2120, %v870
  %v2126 = vmul.f32 %v2125, %v674
  %v2127 = vtanh.pop %v2126
  %v2128 = vmul.f32 %v2127, %v674
  %v2129 = vadd.f32 %v2128, %v675
  %v2130 = vmul.f32 %v2129, %v1961
  %2132 = vrot.lane.b32.xlu0 %v2129, 64
  %v2133 = vpop.permute.xlu0 %2132
  %v2135 = vmul.f32 %v2129, %v2133
  %2137 = vrot.lane.b32.xlu0 %v2135, 32
  %v2138 = vpop.permute.xlu0 %2137
  %v2140 = vadd.f32 %v2130, %v2138
  %v2141 = vtanh.pop %v2140
  %2143 = vrot.lane.b32.xlu0 %v2141, 64
  %v2144 = vpop.permute.xlu0 %2143
  %v2146 = vmul.f32 %v2129, %v2144
  %v2147 = vld [vmem:[%s5] sm:$0xff]
  %v2148 = vld [vmem:[%s5 + $0x8] sm:$0xff]
  %v2149 = vld [vmem:[%s5 + $0x10] sm:$0xff]
  %v2150 = vld [vmem:[%s5 + $0x18] sm:$0xff]
  %v2151 = vld [vmem:[%s5 + $0x20] sm:$0x1]
  %v2152 = vlaneseq
  %v2153 = vshrl.u32 %v2152, 7
  %v2154 = vsub.s32 0, %v2153
  %v2155 = vrot.slane %v2151, %v2154
  %2157 = vrot.lane.b32.xlu0 %v2146, 32
  %v2158 = vpop.permute.xlu0 %2157
  %v2159 = vsel %vm688, %v2158, 0
  %2161 = vmatprep.subr.mxu0 0.0
  %2162 = vmatpush1.msra.mxu0 %v2147
  %2163 = vmatprep.subr.mxu0 0.0
  %2164 = vmatpush1.msra.mxu0 %v2148
  %2165 = vmatprep.subr.mxu0 0.0
  %2166 = vmatpush1.msra.mxu0 %v2149
  %2167 = vmatprep.subr.mxu0 0.0
  %2168 = vmatpush1.msra.mxu0 %v2150
  %2169 = vmatprep.subr.mxu0 0.0
  %2170 = vmatpush1.msra.mxu0 0.0
  %2171 = vmatprep.subr.mxu0 0.0
  %2172 = vmatpush1.msra.mxu0 0.0
  %2173 = vmatprep.subr.mxu0 0.0
  %2174 = vmatpush1.msra.mxu0 0.0
  %2175 = vmatprep.subr.mxu0 0.0
  %2176 = vmatpush1.msra.mxu0 0.0
  %2177 = vmatprep.subr.mxu0 0.0
  %2178 = vmatpush1.msra.mxu0 0.0
  %2179 = vmatprep.subr.mxu0 0.0
  %2180 = vmatpush1.msra.mxu0 0.0
  %2181 = vmatprep.subr.mxu0 0.0
  %2182 = vmatpush1.msra.mxu0 0.0
  %2183 = vmatprep.subr.mxu0 0.0
  %2184 = vmatpush1.msra.mxu0 0.0
  %2185 = vmatprep.subr.mxu0 0.0
  %2186 = vmatpush1.msra.mxu0 0.0
  %2187 = vmatprep.subr.mxu0 0.0
  %2188 = vmatpush1.msra.mxu0 0.0
  %2189 = vmatprep.subr.mxu0 0.0
  %2190 = vmatpush1.msra.mxu0 0.0
  %2191 = vmatprep.subr.mxu0 0.0
  %2192 = vmatpush1.msra.mxu0 0.0
  %2193 = vmatprep.subr.mxu0 0.0
  %2194 = vmatpush1.msra.mxu0 0.0
  %2195 = vmatprep.subr.mxu0 0.0
  %2196 = vmatpush1.msra.mxu0 0.0
  %2197 = vmatprep.subr.mxu0 0.0
  %2198 = vmatpush1.msra.mxu0 0.0
  %2199 = vmatprep.subr.mxu0 0.0
  %2200 = vmatpush1.msra.mxu0 0.0
  %2201 = vmatprep.subr.mxu0 0.0
  %2202 = vmatpush1.msra.mxu0 0.0
  %2203 = vmatprep.subr.mxu0 0.0
  %2204 = vmatpush1.msra.mxu0 0.0
  %2205 = vmatprep.subr.mxu0 0.0
  %2206 = vmatpush1.msra.mxu0 0.0
  %2207 = vmatprep.subr.mxu0 0.0
  %2208 = vmatpush1.msra.mxu0 0.0
  %2209 = vmatprep.subr.mxu0 0.0
  %2210 = vmatpush1.msra.mxu0 0.0
  %2211 = vmatprep.subr.mxu0 0.0
  %2212 = vmatpush1.msra.mxu0 0.0
  %2213 = vmatprep.subr.mxu0 0.0
  %2214 = vmatpush1.msra.mxu0 0.0
  %2215 = vmatprep.subr.mxu0 0.0
  %2216 = vmatpush1.msra.mxu0 0.0
  %2217 = vmatprep.subr.mxu0 0.0
  %2218 = vmatpush1.msra.mxu0 0.0
  %2219 = vmatprep.subr.mxu0 0.0
  %2220 = vmatpush1.msra.mxu0 0.0
  %2221 = vmatprep.subr.mxu0 0.0
  %2222 = vmatpush1.msra.mxu0 0.0
  %2223 = vmatprep.subr.mxu0 0.0
  %2224 = vmatpush1.msra.mxu0 0.0
  %2225 = vmatprep.mubr.f32.mxu0 0.0
  %2226 = vmatmul.mubr.f32.gmra.mrb[0].mxu0 %v2159
  %v2227 = vpop.f32.mrb[0].mxu0
  %v2228 = vadd.f32 %v2155, %v2227
  %v2229 = vpop.f32.mrb[0].mxu0
  %2230 = vdwg.mxu0
  %v2231 = vmax.f32 %v2228, 0.0
  %v2232 = vld [vmem:[%s6] sm:$0xff]
  %v2233 = vld [vmem:[%s6 + $0x8] sm:$0xff]
  %v2234 = vld [vmem:[%s6 + $0x10] sm:$0xff]
  %v2235 = vld [vmem:[%s6 + $0x18] sm:$0xff]
  %v2236 = vld [vmem:[%s6 + $0x20] sm:$0xff]
  %v2237 = vld [vmem:[%s6 + $0x28] sm:$0xff]
  %v2238 = vld [vmem:[%s6 + $0x30] sm:$0xff]
  %v2239 = vld [vmem:[%s6 + $0x38] sm:$0xff]
  %v2240 = vld [vmem:[%s6 + $0x40] sm:$0x1]
  %v2241 = vlaneseq
  %v2242 = vshrl.u32 %v2241, 7
  %v2243 = vsub.s32 0, %v2242
  %v2244 = vrot.slane %v2240, %v2243
  %vm2245 = vcmask 523264
  %v2247 = vsel %vm2245, %v2231, 0
  %2249 = vmatprep.subr.mxu0 0.0
  %2250 = vmatpush1.msra.mxu0 %v2232
  %2251 = vmatprep.subr.mxu0 0.0
  %2252 = vmatpush1.msra.mxu0 %v2233
  %2253 = vmatprep.subr.mxu0 0.0
  %2254 = vmatpush1.msra.mxu0 %v2234
  %2255 = vmatprep.subr.mxu0 0.0
  %2256 = vmatpush1.msra.mxu0 %v2235
  %2257 = vmatprep.subr.mxu0 0.0
  %2258 = vmatpush1.msra.mxu0 %v2236
  %2259 = vmatprep.subr.mxu0 0.0
  %2260 = vmatpush1.msra.mxu0 %v2237
  %2261 = vmatprep.subr.mxu0 0.0
  %2262 = vmatpush1.msra.mxu0 %v2238
  %2263 = vmatprep.subr.mxu0 0.0
  %2264 = vmatpush1.msra.mxu0 %v2239
  %2265 = vmatprep.subr.mxu0 0.0
  %2266 = vmatpush1.msra.mxu0 0.0
  %2267 = vmatprep.subr.mxu0 0.0
  %2268 = vmatpush1.msra.mxu0 0.0
  %2269 = vmatprep.subr.mxu0 0.0
  %2270 = vmatpush1.msra.mxu0 0.0
  %2271 = vmatprep.subr.mxu0 0.0
  %2272 = vmatpush1.msra.mxu0 0.0
  %2273 = vmatprep.subr.mxu0 0.0
  %2274 = vmatpush1.msra.mxu0 0.0
  %2275 = vmatprep.subr.mxu0 0.0
  %2276 = vmatpush1.msra.mxu0 0.0
  %2277 = vmatprep.subr.mxu0 0.0
  %2278 = vmatpush1.msra.mxu0 0.0
  %2279 = vmatprep.subr.mxu0 0.0
  %2280 = vmatpush1.msra.mxu0 0.0
  %2281 = vmatprep.subr.mxu0 0.0
  %2282 = vmatpush1.msra.mxu0 0.0
  %2283 = vmatprep.subr.mxu0 0.0
  %2284 = vmatpush1.msra.mxu0 0.0
  %2285 = vmatprep.subr.mxu0 0.0
  %2286 = vmatpush1.msra.mxu0 0.0
  %2287 = vmatprep.subr.mxu0 0.0
  %2288 = vmatpush1.msra.mxu0 0.0
  %2289 = vmatprep.subr.mxu0 0.0
  %2290 = vmatpush1.msra.mxu0 0.0
  %2291 = vmatprep.subr.mxu0 0.0
  %2292 = vmatpush1.msra.mxu0 0.0
  %2293 = vmatprep.subr.mxu0 0.0
  %2294 = vmatpush1.msra.mxu0 0.0
  %2295 = vmatprep.subr.mxu0 0.0
  %2296 = vmatpush1.msra.mxu0 0.0
  %2297 = vmatprep.subr.mxu0 0.0
  %2298 = vmatpush1.msra.mxu0 0.0
  %2299 = vmatprep.subr.mxu0 0.0
  %2300 = vmatpush1.msra.mxu0 0.0
  %2301 = vmatprep.subr.mxu0 0.0
  %2302 = vmatpush1.msra.mxu0 0.0
  %2303 = vmatprep.subr.mxu0 0.0
  %2304 = vmatpush1.msra.mxu0 0.0
  %2305 = vmatprep.subr.mxu0 0.0
  %2306 = vmatpush1.msra.mxu0 0.0
  %2307 = vmatprep.subr.mxu0 0.0
  %2308 = vmatpush1.msra.mxu0 0.0
  %2309 = vmatprep.subr.mxu0 0.0
  %2310 = vmatpush1.msra.mxu0 0.0
  %2311 = vmatprep.subr.mxu0 0.0
  %2312 = vmatpush1.msra.mxu0 0.0
  %2313 = vmatprep.mubr.f32.mxu0 0.0
  %2314 = vmatmul.mubr.f32.gmra.mrb[0].mxu0 %v2247
  %v2315 = vpop.f32.mrb[0].mxu0
  %v2316 = vadd.f32 %v2244, %v2315
  %v2317 = vpop.f32.mrb[0].mxu0
  %2318 = vdwg.mxu0
  %vm2319 = vcmask 1024
  %2320 = vst.msk [vmem:[%s7] sm:$0x3] %vm2319, %v2316
  // Predicated region
  $region30: #{rnn_forward.1} parent=0 // pred_check
    _
  $region31: #{rnn_forward.1} parent=0 // pred_check_branch
    %2322 = sbr.rel (0) target = $region33
  $region32: #{rnn_forward.1} parent=0 // pred_region
    _
  $region33: #{rnn_forward.1} parent=0 // pred_fallthru
    _
  // Predicated region
  $region34: #{rnn_forward.1} parent=0 // pred_check
    _
  $region35: #{rnn_forward.1} parent=0 // pred_check_branch
    %2324 = sbr.rel (0) target = $region37
  $region36: #{rnn_forward.1} parent=0 // pred_region
    _
  $region37: #{rnn_forward.1} parent=0 // pred_fallthru
    _

</llo_original>
